<compile_context>
chip_gen: v7x
topology: tpu7x:2x2x1
jax: 0.10.0
libtpu: 0.0.40
codegen_flags: <defaults>
</compile_context>

<pallas_src>
import functools

import jax
import jax.numpy as jnp
from jax import lax
from jax.experimental import pallas as pl
from jax.experimental.pallas import tpu as pltpu


# ------------------------------ Pallas kernel -------------------------------

def _inception_kernel(c2_0, use_bf16,
                      x_ref, wh_ref, bh_ref,
                      w1p_ref, w2p_ref, w3p_ref, w4p_ref, ball_ref,
                      o_ref):
    """Fused Inception block for one batch image.

    x_ref : (1, H, W, Cin)            NHWC input tile
    wh_ref: (Cin, c2_0 + c3_0)        fused p2_1|p3_1 1x1 weights
    bh_ref: (1,   c2_0 + c3_0)        fused head bias
    w1p_ref: (Cin,        Ctot)       p1_1 weights, zero-padded to out columns
    w2p_ref: (9*c2_0,     Ctot)       p2_2 im2col weights, zero-padded
    w3p_ref: (25*c3_0,    Ctot)       p3_2 im2col weights, zero-padded
    w4p_ref: (Cin,        Ctot)       p4_2 weights, zero-padded
    ball_ref: (1, Ctot)               concatenated branch biases
    o_ref : (1, H, W, Ctot)           concatenated output tile
    """
    H, W, Cin = x_ref.shape[1], x_ref.shape[2], x_ref.shape[3]
    f32 = jnp.float32
    mm_dt = jnp.bfloat16 if use_bf16 else f32

    def mm(a, b):  # MXU matmul, f32 accumulation
        return jnp.dot(a.astype(mm_dt), b.astype(mm_dt),
                       preferred_element_type=f32)

    x = x_ref[0].astype(f32)                       # (H, W, Cin)
    xr = x.reshape(H * W, Cin)

    # ---- fused 1x1 head convs (p2_1 | p3_1) + ReLU -------------------------
    head = jnp.maximum(mm(xr, wh_ref[...]) + bh_ref[...], 0.0)   # (H*W, c2_0+c3_0)
    c3_0 = head.shape[1] - c2_0
    s2 = head[:, :c2_0].reshape(H, W, c2_0)
    s3 = head[:, c2_0:].reshape(H, W, c3_0)

    def im2col(s, k):
        """Zero-padded SAME im2col: (H, W, C) -> (H*W, k*k*C), all in VMEM."""
        C = s.shape[-1]
        p = k // 2
        zw = jnp.zeros((H, p, C), f32)
        sp = jnp.concatenate([zw, s, zw], axis=1)            # (H, W+2p, C)
        zh = jnp.zeros((p, W + 2 * p, C), f32)
        sp = jnp.concatenate([zh, sp, zh], axis=0)           # (H+2p, W+2p, C)
        cols = jnp.concatenate(
            [sp[i:i + H, j:j + W, :] for i in range(k) for j in range(k)],
            axis=-1)                                          # (H, W, k*k*C)
        return cols.reshape(H * W, k * k * C)

    # ---- branch 4: separable 3x3/s1 max pool (-inf borders, in-kernel) -----
    neg = float(jnp.finfo(jnp.float32).min)
    nw = jnp.full((H, 1, Cin), neg, f32)
    xw = jnp.concatenate([nw, x, nw], axis=1)                # (H, W+2, Cin)
    mw = jnp.maximum(jnp.maximum(xw[:, 0:W, :], xw[:, 1:W + 1, :]),
                     xw[:, 2:W + 2, :])
    nh = jnp.full((1, W, Cin), neg, f32)
    xh = jnp.concatenate([nh, mw, nh], axis=0)               # (H+2, W, Cin)
    pooled = jnp.maximum(jnp.maximum(xh[0:H], xh[1:H + 1]), xh[2:H + 2])

    # ---- every branch's final conv accumulates into its own channel offset
    #      of the concatenated output (zero-padded weights, disjoint columns) -
    out = mm(xr, w1p_ref[...])                               # p1_1 (1x1 on x)
    out = out + mm(im2col(s2, 3), w2p_ref[...])              # p2_2 (3x3)
    out = out + mm(im2col(s3, 5), w3p_ref[...])              # p3_2 (5x5)
    out = out + mm(pooled.reshape(H * W, Cin), w4p_ref[...])  # p4_2 (pool+1x1)
    out = jnp.maximum(out + ball_ref[...], 0.0)              # bias + ReLU

    o_ref[...] = out.reshape(1, H, W, out.shape[-1]).astype(o_ref.dtype)


# -------------------------------- wrapper ------------------------------------

def inception_forward(params, x_nchw, *, use_bf16=False):
    """Forward pass matching the PyTorch Inception.forward (NCHW in/out)."""
    x = jnp.transpose(x_nchw, (0, 2, 3, 1))                  # NCHW -> NHWC
    N, H, W, Cin = x.shape

    w1 = params["p1_1"]["w"][0, 0]                           # (Cin, c1)
    w2_1 = params["p2_1"]["w"][0, 0]                         # (Cin, c2_0)
    w2_2 = params["p2_2"]["w"]                               # (3,3,c2_0,c2_1)
    w3_1 = params["p3_1"]["w"][0, 0]                         # (Cin, c3_0)
    w3_2 = params["p3_2"]["w"]                               # (5,5,c3_0,c3_1)
    w4 = params["p4_2"]["w"][0, 0]                           # (Cin, c4)
    c1, c2_0, c2_1 = w1.shape[1], w2_1.shape[1], w2_2.shape[3]
    c3_0, c3_1, c4c = w3_1.shape[1], w3_2.shape[3], w4.shape[1]
    ctot = c1 + c2_1 + c3_1 + c4c
    o2, o3, o4 = c1, c1 + c2_1, c1 + c2_1 + c3_1

    # Fused head (p2_1 | p3_1) 1x1 weights.
    wh = jnp.concatenate([w2_1, w3_1], axis=-1)              # (Cin, c2_0+c3_0)
    bh = jnp.concatenate([params["p2_1"]["b"], params["p3_1"]["b"]], axis=-1)

    # Final conv of each branch, zero-padded to its channel offset in the
    # concatenated output (kernel then writes one wide slab, no concat copy).
    def pad_cols(w, off, width):
        return jnp.zeros((w.shape[0], ctot), jnp.float32).at[:, off:off + width].set(w)

    w1p = pad_cols(w1, 0, c1)
    w2p = pad_cols(w2_2.reshape(9 * c2_0, c2_1), o2, c2_1)   # HWIO row-major
    w3p = pad_cols(w3_2.reshape(25 * c3_0, c3_1), o3, c3_1)
    w4p = pad_cols(w4, o4, c4c)
    ball = jnp.concatenate([params["p1_1"]["b"], params["p2_2"]["b"],
                            params["p3_2"]["b"], params["p4_2"]["b"]], axis=-1)

    kernel = functools.partial(_inception_kernel, c2_0, use_bf16)
    out = pl.pallas_call(
        kernel,
        out_shape=jax.ShapeDtypeStruct((N, H, W, ctot), x.dtype),
        grid_spec=pltpu.PrefetchScalarGridSpec(
            num_scalar_prefetch=0,
            grid=(N,),
            in_specs=[
                pl.BlockSpec((1, H, W, Cin), lambda n: (n, 0, 0, 0)),
                pl.BlockSpec(wh.shape, lambda n: (0, 0)),
                pl.BlockSpec(bh.shape, lambda n: (0, 0)),
                pl.BlockSpec(w1p.shape, lambda n: (0, 0)),
                pl.BlockSpec(w2p.shape, lambda n: (0, 0)),
                pl.BlockSpec(w3p.shape, lambda n: (0, 0)),
                pl.BlockSpec(w4p.shape, lambda n: (0, 0)),
                pl.BlockSpec(ball.shape, lambda n: (0, 0)),
            ],
            out_specs=pl.BlockSpec((1, H, W, ctot), lambda n: (n, 0, 0, 0)),
        ),
        compiler_params=pltpu.CompilerParams(
            dimension_semantics=("parallel",)),
    )(x, wh, bh, w1p, w2p, w3p, w4p, ball)

    return jnp.transpose(out, (0, 3, 1, 2))                  # NHWC -> NCHW


# ------------------------ Inception module (params) --------------------------

def init_inception_params(key, in_c, c1, c2, c3, c4):
    """Deterministic init matching nn.Conv2d default (uniform(+-1/sqrt(fan_in)));
    weights stored HWIO."""
    def conv_params(k, kh, kw, cin, cout):
        kw_key, kb_key = jax.random.split(k)
        bound = 1.0 / float((cin * kh * kw) ** 0.5)
        w = jax.random.uniform(kw_key, (kh, kw, cin, cout), jnp.float32,
                               -bound, bound)
        b = jax.random.uniform(kb_key, (1, cout), jnp.float32, -bound, bound)
        return {"w": w, "b": b}

    keys = jax.random.split(key, 6)
    return {
        "p1_1": conv_params(keys[0], 1, 1, in_c, c1),
        "p2_1": conv_params(keys[1], 1, 1, in_c, c2[0]),
        "p2_2": conv_params(keys[2], 3, 3, c2[0], c2[1]),
        "p3_1": conv_params(keys[3], 1, 1, in_c, c3[0]),
        "p3_2": conv_params(keys[4], 5, 5, c3[0], c3[1]),
        "p4_2": conv_params(keys[5], 1, 1, in_c, c4),
    }


# ----------------------------- reference (JAX) --------------------------------

def _conv_ref(x_nhwc, p):
    y = lax.conv_general_dilated(x_nhwc, p["w"], (1, 1), "SAME",
                                 dimension_numbers=("NHWC", "HWIO", "NHWC"))
    return jnp.maximum(y + p["b"][0], 0.0)


def _inception_ref(params, x_nchw):
    x = jnp.transpose(x_nchw, (0, 2, 3, 1))
    r1 = _conv_ref(x, params["p1_1"])
    r2 = _conv_ref(_conv_ref(x, params["p2_1"]), params["p2_2"])
    r3 = _conv_ref(_conv_ref(x, params["p3_1"]), params["p3_2"])
    pooled = lax.reduce_window(x, -jnp.inf, lax.max,
                               (1, 3, 3, 1), (1, 1, 1, 1), "SAME")
    r4 = _conv_ref(pooled, params["p4_2"])
    return jnp.transpose(jnp.concatenate([r1, r2, r3, r4], axis=-1),
                         (0, 3, 1, 2))


# ---------------------------------- main --------------------------------------

if __name__ == "__main__":
    key = jax.random.PRNGKey(0)
    kx, kp = jax.random.split(key)

    N, in_c, H, W = 2, 4, 16, 16
    c1, c2, c3, c4 = 4, (4, 8), (2, 4), 4

    x = jax.random.normal(kx, (N, in_c, H, W), jnp.float32)
    params = init_inception_params(kp, in_c, c1, c2, c3, c4)

    ref = jax.block_until_ready(_inception_ref(params, x))

    # f32 matmul path (exact-tolerance check).
    out = jax.block_until_ready(inception_forward(params, x))
    assert out.shape == (N, c1 + c2[1] + c3[1] + c4, H, W), out.shape
    assert jnp.allclose(out, ref, atol=1e-3, rtol=1e-3), float(
        jnp.max(jnp.abs(out - ref)))

    # bf16 matmul operands + f32 accumulation (v6e/v7x fast path), loose check.
    out_bf16 = jax.block_until_ready(inception_forward(params, x, use_bf16=True))
    assert float(jnp.max(jnp.abs(out_bf16 - ref))) < 1e-1

    print("KERNEL_OK")
</pallas_src>

<mosaic_0001>
module attributes {stable_mosaic.version = 11 : i64} {
  func.func @_inception_kernel(%arg0: i32, %arg1: memref<1x16x16x4xf32, #tpu.memory_space<vmem>>, %arg2: memref<4x6xf32, #tpu.memory_space<vmem>>, %arg3: memref<1x6xf32, #tpu.memory_space<vmem>>, %arg4: memref<4x20xf32, #tpu.memory_space<vmem>>, %arg5: memref<36x20xf32, #tpu.memory_space<vmem>>, %arg6: memref<50x20xf32, #tpu.memory_space<vmem>>, %arg7: memref<4x20xf32, #tpu.memory_space<vmem>>, %arg8: memref<1x20xf32, #tpu.memory_space<vmem>>, %arg9: memref<1x16x16x20xf32, #tpu.memory_space<vmem>>) attributes {dimension_semantics = [#tpu.dimension_semantics<parallel>], iteration_bounds = array<i64: 2>, scalar_prefetch = 0 : i64, scratch_operands = 0 : i64, tpu.core_type = #tpu.core_type<tc>, window_params = [{transform_indices = @transform_0, window_bounds = array<i64: 1, 16, 16, 4>}, {pipeline_mode = #tpu.pipeline_mode<synchronous>, transform_indices = @transform_1, window_bounds = array<i64: 4, 6>}, {pipeline_mode = #tpu.pipeline_mode<synchronous>, transform_indices = @transform_2, window_bounds = array<i64: 1, 6>}, {pipeline_mode = #tpu.pipeline_mode<synchronous>, transform_indices = @transform_3, window_bounds = array<i64: 4, 20>}, {pipeline_mode = #tpu.pipeline_mode<synchronous>, transform_indices = @transform_4, window_bounds = array<i64: 36, 20>}, {pipeline_mode = #tpu.pipeline_mode<synchronous>, transform_indices = @transform_5, window_bounds = array<i64: 50, 20>}, {pipeline_mode = #tpu.pipeline_mode<synchronous>, transform_indices = @transform_6, window_bounds = array<i64: 4, 20>}, {pipeline_mode = #tpu.pipeline_mode<synchronous>, transform_indices = @transform_7, window_bounds = array<i64: 1, 20>}, {transform_indices = @transform_8, window_bounds = array<i64: 1, 16, 16, 20>}]} {
    %c0 = arith.constant 0 : index
    %c0_0 = arith.constant 0 : index
    %c0_1 = arith.constant 0 : index
    %c0_2 = arith.constant 0 : index
    %0 = vector.load %arg1[%c0, %c0_0, %c0_1, %c0_2] : memref<1x16x16x4xf32, #tpu.memory_space<vmem>>, vector<1x16x16x4xf32>
    %1 = vector.shape_cast %0 : vector<1x16x16x4xf32> to vector<16x16x4xf32>
    %2 = vector.shape_cast %1 : vector<16x16x4xf32> to vector<256x4xf32>
    %c0_3 = arith.constant 0 : index
    %c0_4 = arith.constant 0 : index
    %3 = vector.load %arg2[%c0_3, %c0_4] : memref<4x6xf32, #tpu.memory_space<vmem>>, vector<4x6xf32>
    %cst = arith.constant dense<0.000000e+00> : vector<256x6xf32>
    %4 = tpu.matmul %2, %3, %cst {dimension_numbers = #tpu.dot_dimension_numbers<[1], [0], [0], [1], [0, 0, 1, 1], [], []>} : vector<256x4xf32>, vector<4x6xf32>, vector<256x6xf32> -> vector<256x6xf32>
    %c0_5 = arith.constant 0 : index
    %c0_6 = arith.constant 0 : index
    %5 = vector.load %arg3[%c0_5, %c0_6] : memref<1x6xf32, #tpu.memory_space<vmem>>, vector<1x6xf32>
    %6 = vector.broadcast %5 : vector<1x6xf32> to vector<256x6xf32>
    %7 = arith.addf %4, %6 : vector<256x6xf32>
    %cst_7 = arith.constant 0.000000e+00 : f32
    %8 = vector.broadcast %cst_7 : f32 to vector<256x6xf32>
    %9 = arith.maximumf %7, %8 : vector<256x6xf32>
    %10 = vector.extract_strided_slice %9 {offsets = [0, 0], sizes = [256, 4], strides = [1, 1]} : vector<256x6xf32> to vector<256x4xf32>
    %11 = vector.shape_cast %10 : vector<256x4xf32> to vector<16x16x4xf32>
    %12 = vector.extract_strided_slice %9 {offsets = [0, 4], sizes = [256, 2], strides = [1, 1]} : vector<256x6xf32> to vector<256x2xf32>
    %13 = vector.shape_cast %12 : vector<256x2xf32> to vector<16x16x2xf32>
    %cst_8 = arith.constant -3.40282347E+38 : f32
    %14 = vector.broadcast %cst_8 : f32 to vector<16x1x4xf32>
    %15 = tpu.concatenate %14, %1, %14 in 1 : vector<16x1x4xf32>, vector<16x16x4xf32>, vector<16x1x4xf32> -> vector<16x18x4xf32>
    %16 = vector.extract_strided_slice %15 {offsets = [0, 0, 0], sizes = [16, 16, 4], strides = [1, 1, 1]} : vector<16x18x4xf32> to vector<16x16x4xf32>
    %17 = vector.extract_strided_slice %15 {offsets = [0, 1, 0], sizes = [16, 16, 4], strides = [1, 1, 1]} : vector<16x18x4xf32> to vector<16x16x4xf32>
    %18 = arith.maximumf %16, %17 : vector<16x16x4xf32>
    %19 = vector.extract_strided_slice %15 {offsets = [0, 2, 0], sizes = [16, 16, 4], strides = [1, 1, 1]} : vector<16x18x4xf32> to vector<16x16x4xf32>
    %20 = arith.maximumf %18, %19 : vector<16x16x4xf32>
    %cst_9 = arith.constant -3.40282347E+38 : f32
    %21 = vector.broadcast %cst_9 : f32 to vector<1x16x4xf32>
    %22 = tpu.concatenate %21, %20, %21 in 0 : vector<1x16x4xf32>, vector<16x16x4xf32>, vector<1x16x4xf32> -> vector<18x16x4xf32>
    %23 = vector.extract_strided_slice %22 {offsets = [0, 0, 0], sizes = [16, 16, 4], strides = [1, 1, 1]} : vector<18x16x4xf32> to vector<16x16x4xf32>
    %24 = vector.extract_strided_slice %22 {offsets = [1, 0, 0], sizes = [16, 16, 4], strides = [1, 1, 1]} : vector<18x16x4xf32> to vector<16x16x4xf32>
    %25 = arith.maximumf %23, %24 : vector<16x16x4xf32>
    %26 = vector.extract_strided_slice %22 {offsets = [2, 0, 0], sizes = [16, 16, 4], strides = [1, 1, 1]} : vector<18x16x4xf32> to vector<16x16x4xf32>
    %27 = arith.maximumf %25, %26 : vector<16x16x4xf32>
    %c0_10 = arith.constant 0 : index
    %c0_11 = arith.constant 0 : index
    %28 = vector.load %arg4[%c0_10, %c0_11] : memref<4x20xf32, #tpu.memory_space<vmem>>, vector<4x20xf32>
    %cst_12 = arith.constant dense<0.000000e+00> : vector<256x20xf32>
    %29 = tpu.matmul %2, %28, %cst_12 {dimension_numbers = #tpu.dot_dimension_numbers<[1], [0], [0], [1], [0, 0, 1, 1], [], []>} : vector<256x4xf32>, vector<4x20xf32>, vector<256x20xf32> -> vector<256x20xf32>
    %cst_13 = arith.constant 0.000000e+00 : f32
    %30 = vector.broadcast %cst_13 : f32 to vector<16x1x4xf32>
    %31 = tpu.concatenate %30, %11, %30 in 1 : vector<16x1x4xf32>, vector<16x16x4xf32>, vector<16x1x4xf32> -> vector<16x18x4xf32>
    %cst_14 = arith.constant 0.000000e+00 : f32
    %32 = vector.broadcast %cst_14 : f32 to vector<1x18x4xf32>
    %33 = tpu.concatenate %32, %31, %32 in 0 : vector<1x18x4xf32>, vector<16x18x4xf32>, vector<1x18x4xf32> -> vector<18x18x4xf32>
    %34 = vector.extract_strided_slice %33 {offsets = [0, 0, 0], sizes = [16, 16, 4], strides = [1, 1, 1]} : vector<18x18x4xf32> to vector<16x16x4xf32>
    %35 = vector.extract_strided_slice %33 {offsets = [0, 1, 0], sizes = [16, 16, 4], strides = [1, 1, 1]} : vector<18x18x4xf32> to vector<16x16x4xf32>
    %36 = vector.extract_strided_slice %33 {offsets = [0, 2, 0], sizes = [16, 16, 4], strides = [1, 1, 1]} : vector<18x18x4xf32> to vector<16x16x4xf32>
    %37 = vector.extract_strided_slice %33 {offsets = [1, 0, 0], sizes = [16, 16, 4], strides = [1, 1, 1]} : vector<18x18x4xf32> to vector<16x16x4xf32>
    %38 = vector.extract_strided_slice %33 {offsets = [1, 1, 0], sizes = [16, 16, 4], strides = [1, 1, 1]} : vector<18x18x4xf32> to vector<16x16x4xf32>
    %39 = vector.extract_strided_slice %33 {offsets = [1, 2, 0], sizes = [16, 16, 4], strides = [1, 1, 1]} : vector<18x18x4xf32> to vector<16x16x4xf32>
    %40 = vector.extract_strided_slice %33 {offsets = [2, 0, 0], sizes = [16, 16, 4], strides = [1, 1, 1]} : vector<18x18x4xf32> to vector<16x16x4xf32>
    %41 = vector.extract_strided_slice %33 {offsets = [2, 1, 0], sizes = [16, 16, 4], strides = [1, 1, 1]} : vector<18x18x4xf32> to vector<16x16x4xf32>
    %42 = vector.extract_strided_slice %33 {offsets = [2, 2, 0], sizes = [16, 16, 4], strides = [1, 1, 1]} : vector<18x18x4xf32> to vector<16x16x4xf32>
    %43 = tpu.concatenate %34, %35, %36, %37, %38, %39, %40, %41, %42 in 2 : vector<16x16x4xf32>, vector<16x16x4xf32>, vector<16x16x4xf32>, vector<16x16x4xf32>, vector<16x16x4xf32>, vector<16x16x4xf32>, vector<16x16x4xf32>, vector<16x16x4xf32>, vector<16x16x4xf32> -> vector<16x16x36xf32>
    %44 = vector.shape_cast %43 : vector<16x16x36xf32> to vector<256x36xf32>
    %c0_15 = arith.constant 0 : index
    %c0_16 = arith.constant 0 : index
    %45 = vector.load %arg5[%c0_15, %c0_16] : memref<36x20xf32, #tpu.memory_space<vmem>>, vector<36x20xf32>
    %cst_17 = arith.constant dense<0.000000e+00> : vector<256x20xf32>
    %46 = tpu.matmul %44, %45, %cst_17 {dimension_numbers = #tpu.dot_dimension_numbers<[1], [0], [0], [1], [0, 0, 1, 1], [], []>} : vector<256x36xf32>, vector<36x20xf32>, vector<256x20xf32> -> vector<256x20xf32>
    %47 = arith.addf %29, %46 : vector<256x20xf32>
    %cst_18 = arith.constant 0.000000e+00 : f32
    %48 = vector.broadcast %cst_18 : f32 to vector<16x2x2xf32>
    %49 = tpu.concatenate %48, %13, %48 in 1 : vector<16x2x2xf32>, vector<16x16x2xf32>, vector<16x2x2xf32> -> vector<16x20x2xf32>
    %cst_19 = arith.constant 0.000000e+00 : f32
    %50 = vector.broadcast %cst_19 : f32 to vector<2x20x2xf32>
    %51 = tpu.concatenate %50, %49, %50 in 0 : vector<2x20x2xf32>, vector<16x20x2xf32>, vector<2x20x2xf32> -> vector<20x20x2xf32>
    %52 = vector.extract_strided_slice %51 {offsets = [0, 0, 0], sizes = [16, 16, 2], strides = [1, 1, 1]} : vector<20x20x2xf32> to vector<16x16x2xf32>
    %53 = vector.extract_strided_slice %51 {offsets = [0, 1, 0], sizes = [16, 16, 2], strides = [1, 1, 1]} : vector<20x20x2xf32> to vector<16x16x2xf32>
    %54 = vector.extract_strided_slice %51 {offsets = [0, 2, 0], sizes = [16, 16, 2], strides = [1, 1, 1]} : vector<20x20x2xf32> to vector<16x16x2xf32>
    %55 = vector.extract_strided_slice %51 {offsets = [0, 3, 0], sizes = [16, 16, 2], strides = [1, 1, 1]} : vector<20x20x2xf32> to vector<16x16x2xf32>
    %56 = vector.extract_strided_slice %51 {offsets = [0, 4, 0], sizes = [16, 16, 2], strides = [1, 1, 1]} : vector<20x20x2xf32> to vector<16x16x2xf32>
    %57 = vector.extract_strided_slice %51 {offsets = [1, 0, 0], sizes = [16, 16, 2], strides = [1, 1, 1]} : vector<20x20x2xf32> to vector<16x16x2xf32>
    %58 = vector.extract_strided_slice %51 {offsets = [1, 1, 0], sizes = [16, 16, 2], strides = [1, 1, 1]} : vector<20x20x2xf32> to vector<16x16x2xf32>
    %59 = vector.extract_strided_slice %51 {offsets = [1, 2, 0], sizes = [16, 16, 2], strides = [1, 1, 1]} : vector<20x20x2xf32> to vector<16x16x2xf32>
    %60 = vector.extract_strided_slice %51 {offsets = [1, 3, 0], sizes = [16, 16, 2], strides = [1, 1, 1]} : vector<20x20x2xf32> to vector<16x16x2xf32>
    %61 = vector.extract_strided_slice %51 {offsets = [1, 4, 0], sizes = [16, 16, 2], strides = [1, 1, 1]} : vector<20x20x2xf32> to vector<16x16x2xf32>
    %62 = vector.extract_strided_slice %51 {offsets = [2, 0, 0], sizes = [16, 16, 2], strides = [1, 1, 1]} : vector<20x20x2xf32> to vector<16x16x2xf32>
    %63 = vector.extract_strided_slice %51 {offsets = [2, 1, 0], sizes = [16, 16, 2], strides = [1, 1, 1]} : vector<20x20x2xf32> to vector<16x16x2xf32>
    %64 = vector.extract_strided_slice %51 {offsets = [2, 2, 0], sizes = [16, 16, 2], strides = [1, 1, 1]} : vector<20x20x2xf32> to vector<16x16x2xf32>
    %65 = vector.extract_strided_slice %51 {offsets = [2, 3, 0], sizes = [16, 16, 2], strides = [1, 1, 1]} : vector<20x20x2xf32> to vector<16x16x2xf32>
    %66 = vector.extract_strided_slice %51 {offsets = [2, 4, 0], sizes = [16, 16, 2], strides = [1, 1, 1]} : vector<20x20x2xf32> to vector<16x16x2xf32>
    %67 = vector.extract_strided_slice %51 {offsets = [3, 0, 0], sizes = [16, 16, 2], strides = [1, 1, 1]} : vector<20x20x2xf32> to vector<16x16x2xf32>
    %68 = vector.extract_strided_slice %51 {offsets = [3, 1, 0], sizes = [16, 16, 2], strides = [1, 1, 1]} : vector<20x20x2xf32> to vector<16x16x2xf32>
    %69 = vector.extract_strided_slice %51 {offsets = [3, 2, 0], sizes = [16, 16, 2], strides = [1, 1, 1]} : vector<20x20x2xf32> to vector<16x16x2xf32>
    %70 = vector.extract_strided_slice %51 {offsets = [3, 3, 0], sizes = [16, 16, 2], strides = [1, 1, 1]} : vector<20x20x2xf32> to vector<16x16x2xf32>
    %71 = vector.extract_strided_slice %51 {offsets = [3, 4, 0], sizes = [16, 16, 2], strides = [1, 1, 1]} : vector<20x20x2xf32> to vector<16x16x2xf32>
    %72 = vector.extract_strided_slice %51 {offsets = [4, 0, 0], sizes = [16, 16, 2], strides = [1, 1, 1]} : vector<20x20x2xf32> to vector<16x16x2xf32>
    %73 = vector.extract_strided_slice %51 {offsets = [4, 1, 0], sizes = [16, 16, 2], strides = [1, 1, 1]} : vector<20x20x2xf32> to vector<16x16x2xf32>
    %74 = vector.extract_strided_slice %51 {offsets = [4, 2, 0], sizes = [16, 16, 2], strides = [1, 1, 1]} : vector<20x20x2xf32> to vector<16x16x2xf32>
    %75 = vector.extract_strided_slice %51 {offsets = [4, 3, 0], sizes = [16, 16, 2], strides = [1, 1, 1]} : vector<20x20x2xf32> to vector<16x16x2xf32>
    %76 = vector.extract_strided_slice %51 {offsets = [4, 4, 0], sizes = [16, 16, 2], strides = [1, 1, 1]} : vector<20x20x2xf32> to vector<16x16x2xf32>
    %77 = tpu.concatenate %52, %53, %54, %55, %56, %57, %58, %59, %60, %61, %62, %63, %64, %65, %66, %67 in 2 : vector<16x16x2xf32>, vector<16x16x2xf32>, vector<16x16x2xf32>, vector<16x16x2xf32>, vector<16x16x2xf32>, vector<16x16x2xf32>, vector<16x16x2xf32>, vector<16x16x2xf32>, vector<16x16x2xf32>, vector<16x16x2xf32>, vector<16x16x2xf32>, vector<16x16x2xf32>, vector<16x16x2xf32>, vector<16x16x2xf32>, vector<16x16x2xf32>, vector<16x16x2xf32> -> vector<16x16x32xf32>
    %78 = tpu.concatenate %68, %69, %70, %71, %72, %73, %74, %75, %76 in 2 : vector<16x16x2xf32>, vector<16x16x2xf32>, vector<16x16x2xf32>, vector<16x16x2xf32>, vector<16x16x2xf32>, vector<16x16x2xf32>, vector<16x16x2xf32>, vector<16x16x2xf32>, vector<16x16x2xf32> -> vector<16x16x18xf32>
    %79 = tpu.concatenate %77, %78 in 2 : vector<16x16x32xf32>, vector<16x16x18xf32> -> vector<16x16x50xf32>
    %80 = vector.shape_cast %79 : vector<16x16x50xf32> to vector<256x50xf32>
    %c0_20 = arith.constant 0 : index
    %c0_21 = arith.constant 0 : index
    %81 = vector.load %arg6[%c0_20, %c0_21] : memref<50x20xf32, #tpu.memory_space<vmem>>, vector<50x20xf32>
    %cst_22 = arith.constant dense<0.000000e+00> : vector<256x20xf32>
    %82 = tpu.matmul %80, %81, %cst_22 {dimension_numbers = #tpu.dot_dimension_numbers<[1], [0], [0], [1], [0, 0, 1, 1], [], []>} : vector<256x50xf32>, vector<50x20xf32>, vector<256x20xf32> -> vector<256x20xf32>
    %83 = arith.addf %47, %82 : vector<256x20xf32>
    %84 = vector.shape_cast %27 : vector<16x16x4xf32> to vector<256x4xf32>
    %c0_23 = arith.constant 0 : index
    %c0_24 = arith.constant 0 : index
    %85 = vector.load %arg7[%c0_23, %c0_24] : memref<4x20xf32, #tpu.memory_space<vmem>>, vector<4x20xf32>
    %cst_25 = arith.constant dense<0.000000e+00> : vector<256x20xf32>
    %86 = tpu.matmul %84, %85, %cst_25 {dimension_numbers = #tpu.dot_dimension_numbers<[1], [0], [0], [1], [0, 0, 1, 1], [], []>} : vector<256x4xf32>, vector<4x20xf32>, vector<256x20xf32> -> vector<256x20xf32>
    %87 = arith.addf %83, %86 : vector<256x20xf32>
    %c0_26 = arith.constant 0 : index
    %c0_27 = arith.constant 0 : index
    %88 = vector.load %arg8[%c0_26, %c0_27] : memref<1x20xf32, #tpu.memory_space<vmem>>, vector<1x20xf32>
    %89 = vector.broadcast %88 : vector<1x20xf32> to vector<256x20xf32>
    %90 = arith.addf %87, %89 : vector<256x20xf32>
    %cst_28 = arith.constant 0.000000e+00 : f32
    %91 = vector.broadcast %cst_28 : f32 to vector<256x20xf32>
    %92 = arith.maximumf %90, %91 : vector<256x20xf32>
    %93 = vector.shape_cast %92 : vector<256x20xf32> to vector<1x16x16x20xf32>
    %c0_29 = arith.constant 0 : index
    %c0_30 = arith.constant 0 : index
    %c0_31 = arith.constant 0 : index
    %c0_32 = arith.constant 0 : index
    %94 = vector.load %arg9[%c0_29, %c0_30, %c0_31, %c0_32] : memref<1x16x16x20xf32, #tpu.memory_space<vmem>>, vector<1x16x16x20xf32>
    tpu.vector_store %arg9[%c0_29, %c0_30, %c0_31, %c0_32], %93 {strides = array<i32>} : memref<1x16x16x20xf32, #tpu.memory_space<vmem>>, vector<1x16x16x20xf32>,
    return
  }
  func.func @transform_0(%arg0: i32) -> (i32, i32, i32, i32) {
    %c0_i32 = arith.constant 0 : i32
    %c0_i32_0 = arith.constant 0 : i32
    %c0_i32_1 = arith.constant 0 : i32
    %c0_i32_2 = arith.constant 0 : i32
    return %arg0, %c0_i32, %c0_i32_0, %c0_i32_1 : i32, i32, i32, i32
  }
  func.func @transform_1(%arg0: i32) -> (i32, i32) {
    %c0_i32 = arith.constant 0 : i32
    %c0_i32_0 = arith.constant 0 : i32
    %c0_i32_1 = arith.constant 0 : i32
    return %c0_i32, %c0_i32_0 : i32, i32
  }
  func.func @transform_2(%arg0: i32) -> (i32, i32) {
    %c0_i32 = arith.constant 0 : i32
    %c0_i32_0 = arith.constant 0 : i32
    %c0_i32_1 = arith.constant 0 : i32
    return %c0_i32, %c0_i32_0 : i32, i32
  }
  func.func @transform_3(%arg0: i32) -> (i32, i32) {
    %c0_i32 = arith.constant 0 : i32
    %c0_i32_0 = arith.constant 0 : i32
    %c0_i32_1 = arith.constant 0 : i32
    return %c0_i32, %c0_i32_0 : i32, i32
  }
  func.func @transform_4(%arg0: i32) -> (i32, i32) {
    %c0_i32 = arith.constant 0 : i32
    %c0_i32_0 = arith.constant 0 : i32
    %c0_i32_1 = arith.constant 0 : i32
    return %c0_i32, %c0_i32_0 : i32, i32
  }
  func.func @transform_5(%arg0: i32) -> (i32, i32) {
    %c0_i32 = arith.constant 0 : i32
    %c0_i32_0 = arith.constant 0 : i32
    %c0_i32_1 = arith.constant 0 : i32
    return %c0_i32, %c0_i32_0 : i32, i32
  }
  func.func @transform_6(%arg0: i32) -> (i32, i32) {
    %c0_i32 = arith.constant 0 : i32
    %c0_i32_0 = arith.constant 0 : i32
    %c0_i32_1 = arith.constant 0 : i32
    return %c0_i32, %c0_i32_0 : i32, i32
  }
  func.func @transform_7(%arg0: i32) -> (i32, i32) {
    %c0_i32 = arith.constant 0 : i32
    %c0_i32_0 = arith.constant 0 : i32
    %c0_i32_1 = arith.constant 0 : i32
    return %c0_i32, %c0_i32_0 : i32, i32
  }
  func.func @transform_8(%arg0: i32) -> (i32, i32, i32, i32) {
    %c0_i32 = arith.constant 0 : i32
    %c0_i32_0 = arith.constant 0 : i32
    %c0_i32_1 = arith.constant 0 : i32
    %c0_i32_2 = arith.constant 0 : i32
    return %arg0, %c0_i32, %c0_i32_0, %c0_i32_1 : i32, i32, i32, i32
  }
}

</mosaic_0001>

<llo_original>
// kernel: tpu_custom_call.1
$region0: #{tpu_custom_call.1}
  #allocation0 [shape = 'u32[]', space=smem, size = 0x4, offset = 0x4, fixed_abs, tag = 'smem constant byte address 0x4 - core index']
  #allocation1 [shape = 'u32[144,128]{1,0:T(1,128)}', space=vmem, size = 0x12000, scoped, tag = 'internal scratch']
  %s0 = inlined_call_operand.vmem [shape: f32[2,16,16,4], index: 0, kind: input, shape index: {}]
  %s1 = inlined_call_operand.vmem [shape: f32[4,6], index: 1, kind: input, shape index: {}]
  %s2 = inlined_call_operand.vmem [shape: f32[1,6], index: 2, kind: input, shape index: {}]
  %s3 = inlined_call_operand.vmem [shape: f32[4,20], index: 3, kind: input, shape index: {}]
  %s4 = inlined_call_operand.vmem [shape: f32[36,20], index: 4, kind: input, shape index: {}]
  %s5 = inlined_call_operand.vmem [shape: f32[50,20], index: 5, kind: input, shape index: {}]
  %s6 = inlined_call_operand.vmem [shape: f32[4,20], index: 6, kind: input, shape index: {}]
  %s7 = inlined_call_operand.vmem [shape: f32[1,20], index: 7, kind: input, shape index: {}]
  %s8 = inlined_call_operand.hbm [shape: f32[2,16,16,20], index: 8, kind: output, shape index: {}]
  %s9 = sld [smem:[#allocation0]]
  $region65: #{tpu_custom_call.1} parent=0
    _
  %s11 = ssub.s32 1, %s9
  %s12 = scalar_select 0, %s11, %s9
  $region1: #{tpu_custom_call.1} parent=0
    #allocation2 [shape = 'u8[262144]{0}', space=vmem, size = 0x40000, scoped, tag = 'output window, operand 0']
    #allocation3 [shape = 's32[2]{0}', space=sflag, size = 0x8, scoped, tag = 'scoped memory for tpu_custom_call.1']
    %13 = vsyncpa [#allocation3], 0
    %s14 = scalar_lea.sflag [#allocation3], 1
    %15 = vsyncpa %s14, 0
    loop: start=0, step=1, limit=4
    $region2: #{tpu_custom_call.1} parent=1 // loop_pre_header
      _
    $region3: #{tpu_custom_call.1} parent=1 // loop_header
      %s17 = sphi 0, %s21
      %p18 = scmp.ge.s32.totalorder %s17, 4
      %s27 = sphi 0, %s29
      %s30 = sphi 0, %s27
      %s31 = sphi 0, %s30
      %s47 = sphi 0, %s31
      %s51 = sphi 0, %s51
      %s53 = sphi 0, %s51
      %s54 = sphi 0, %s53
      %s68 = sphi 0, %s54
      %s72 = sphi 0, %s72
      %s74 = sphi 0, %s72
      %s75 = sphi 0, %s74
      %s89 = sphi 0, %s75
      %s93 = sphi 0, %s93
      %s95 = sphi 0, %s93
      %s96 = sphi 0, %s95
      %s110 = sphi 0, %s96
      %s114 = sphi 0, %s114
      %s116 = sphi 0, %s114
      %s117 = sphi 0, %s116
      %s131 = sphi 0, %s117
      %s135 = sphi 0, %s135
      %s137 = sphi 0, %s135
      %s138 = sphi 0, %s137
      %s152 = sphi 0, %s138
      %s156 = sphi 0, %s156
      %s158 = sphi 0, %s156
      %s159 = sphi 0, %s158
      %s173 = sphi 0, %s159
      %s177 = sphi 0, %s177
      %s179 = sphi 0, %s177
      %s180 = sphi 0, %s179
      %s194 = sphi 0, %s180
      %s200 = sphi 0, %s202
      %s203 = sphi 0, %s200
      %s204 = sphi 0, %s203
      %s220 = sphi 0, %s204
    $region4: #{tpu_custom_call.1} parent=1 // loop_header_branch
      %20 = sbr.rel (%p18) target = $region8
    $region5: #{tpu_custom_call.1} parent=1 // loop_body
      %s22 = ssub.s32 %s17, 1
      %s23 = ssub.s32 %s17, 2
      %s24 = sadd.s32 %s17, 1
      %s25 = ssub.s32 %s17, %s24
      %p26 = scmp.eq.s32.totalorder %s25, 0
      %s28 = sadd.s32 %s27, 1
      %s29 = scalar_select %p26, %s27, %s28
      %p32 = pneg %p26
      %p33 = scmp.eq.s32.totalorder %s17, 1
      %p34 = por %p32, %p33
      %p35 = scmp.ne.s32.totalorder %s27, %s30
      %p36 = scmp.eq.s32.totalorder %s17, 0
      %p37 = por %p35, %p36
      %p38 = scmp.ne.s32.totalorder %s27, %s30
      %p39 = scmp.eq.s32.totalorder %s22, 1
      %p40 = por %p38, %p39
      %p41 = scmp.ne.s32.totalorder %s30, %s31
      %p42 = scmp.eq.s32.totalorder %s22, 0
      %p43 = por %p41, %p42
      %p44 = scmp.ne.s32.totalorder %s30, %s31
      %p45 = scmp.eq.s32.totalorder %s23, 1
      %p46 = por %p44, %p45
      %p48 = scmp.ne.s32.totalorder %s31, %s47
      %p49 = scmp.eq.s32.totalorder %s23, 0
      %p50 = por %p48, %p49
      %s52 = sadd.s32 %s51, 1
      %p55 = scmp.eq.s32.totalorder %s17, 1
      %p56 = scmp.ne.s32.totalorder %s51, %s53
      %p57 = scmp.eq.s32.totalorder %s17, 0
      %p58 = por %p56, %p57
      %p59 = scmp.ne.s32.totalorder %s51, %s53
      %p60 = scmp.eq.s32.totalorder %s22, 1
      %p61 = por %p59, %p60
      %p62 = scmp.ne.s32.totalorder %s53, %s54
      %p63 = scmp.eq.s32.totalorder %s22, 0
      %p64 = por %p62, %p63
      %p65 = scmp.ne.s32.totalorder %s53, %s54
      %p66 = scmp.eq.s32.totalorder %s23, 1
      %p67 = por %p65, %p66
      %p69 = scmp.ne.s32.totalorder %s54, %s68
      %p70 = scmp.eq.s32.totalorder %s23, 0
      %p71 = por %p69, %p70
      %s73 = sadd.s32 %s72, 1
      %p76 = scmp.eq.s32.totalorder %s17, 1
      %p77 = scmp.ne.s32.totalorder %s72, %s74
      %p78 = scmp.eq.s32.totalorder %s17, 0
      %p79 = por %p77, %p78
      %p80 = scmp.ne.s32.totalorder %s72, %s74
      %p81 = scmp.eq.s32.totalorder %s22, 1
      %p82 = por %p80, %p81
      %p83 = scmp.ne.s32.totalorder %s74, %s75
      %p84 = scmp.eq.s32.totalorder %s22, 0
      %p85 = por %p83, %p84
      %p86 = scmp.ne.s32.totalorder %s74, %s75
      %p87 = scmp.eq.s32.totalorder %s23, 1
      %p88 = por %p86, %p87
      %p90 = scmp.ne.s32.totalorder %s75, %s89
      %p91 = scmp.eq.s32.totalorder %s23, 0
      %p92 = por %p90, %p91
      %s94 = sadd.s32 %s93, 1
      %p97 = scmp.eq.s32.totalorder %s17, 1
      %p98 = scmp.ne.s32.totalorder %s93, %s95
      %p99 = scmp.eq.s32.totalorder %s17, 0
      %p100 = por %p98, %p99
      %p101 = scmp.ne.s32.totalorder %s93, %s95
      %p102 = scmp.eq.s32.totalorder %s22, 1
      %p103 = por %p101, %p102
      %p104 = scmp.ne.s32.totalorder %s95, %s96
      %p105 = scmp.eq.s32.totalorder %s22, 0
      %p106 = por %p104, %p105
      %p107 = scmp.ne.s32.totalorder %s95, %s96
      %p108 = scmp.eq.s32.totalorder %s23, 1
      %p109 = por %p107, %p108
      %p111 = scmp.ne.s32.totalorder %s96, %s110
      %p112 = scmp.eq.s32.totalorder %s23, 0
      %p113 = por %p111, %p112
      %s115 = sadd.s32 %s114, 1
      %p118 = scmp.eq.s32.totalorder %s17, 1
      %p119 = scmp.ne.s32.totalorder %s114, %s116
      %p120 = scmp.eq.s32.totalorder %s17, 0
      %p121 = por %p119, %p120
      %p122 = scmp.ne.s32.totalorder %s114, %s116
      %p123 = scmp.eq.s32.totalorder %s22, 1
      %p124 = por %p122, %p123
      %p125 = scmp.ne.s32.totalorder %s116, %s117
      %p126 = scmp.eq.s32.totalorder %s22, 0
      %p127 = por %p125, %p126
      %p128 = scmp.ne.s32.totalorder %s116, %s117
      %p129 = scmp.eq.s32.totalorder %s23, 1
      %p130 = por %p128, %p129
      %p132 = scmp.ne.s32.totalorder %s117, %s131
      %p133 = scmp.eq.s32.totalorder %s23, 0
      %p134 = por %p132, %p133
      %s136 = sadd.s32 %s135, 1
      %p139 = scmp.eq.s32.totalorder %s17, 1
      %p140 = scmp.ne.s32.totalorder %s135, %s137
      %p141 = scmp.eq.s32.totalorder %s17, 0
      %p142 = por %p140, %p141
      %p143 = scmp.ne.s32.totalorder %s135, %s137
      %p144 = scmp.eq.s32.totalorder %s22, 1
      %p145 = por %p143, %p144
      %p146 = scmp.ne.s32.totalorder %s137, %s138
      %p147 = scmp.eq.s32.totalorder %s22, 0
      %p148 = por %p146, %p147
      %p149 = scmp.ne.s32.totalorder %s137, %s138
      %p150 = scmp.eq.s32.totalorder %s23, 1
      %p151 = por %p149, %p150
      %p153 = scmp.ne.s32.totalorder %s138, %s152
      %p154 = scmp.eq.s32.totalorder %s23, 0
      %p155 = por %p153, %p154
      %s157 = sadd.s32 %s156, 1
      %p160 = scmp.eq.s32.totalorder %s17, 1
      %p161 = scmp.ne.s32.totalorder %s156, %s158
      %p162 = scmp.eq.s32.totalorder %s17, 0
      %p163 = por %p161, %p162
      %p164 = scmp.ne.s32.totalorder %s156, %s158
      %p165 = scmp.eq.s32.totalorder %s22, 1
      %p166 = por %p164, %p165
      %p167 = scmp.ne.s32.totalorder %s158, %s159
      %p168 = scmp.eq.s32.totalorder %s22, 0
      %p169 = por %p167, %p168
      %p170 = scmp.ne.s32.totalorder %s158, %s159
      %p171 = scmp.eq.s32.totalorder %s23, 1
      %p172 = por %p170, %p171
      %p174 = scmp.ne.s32.totalorder %s159, %s173
      %p175 = scmp.eq.s32.totalorder %s23, 0
      %p176 = por %p174, %p175
      %s178 = sadd.s32 %s177, 1
      %p181 = scmp.eq.s32.totalorder %s17, 1
      %p182 = scmp.ne.s32.totalorder %s177, %s179
      %p183 = scmp.eq.s32.totalorder %s17, 0
      %p184 = por %p182, %p183
      %p185 = scmp.ne.s32.totalorder %s177, %s179
      %p186 = scmp.eq.s32.totalorder %s22, 1
      %p187 = por %p185, %p186
      %p188 = scmp.ne.s32.totalorder %s179, %s180
      %p189 = scmp.eq.s32.totalorder %s22, 0
      %p190 = por %p188, %p189
      %p191 = scmp.ne.s32.totalorder %s179, %s180
      %p192 = scmp.eq.s32.totalorder %s23, 1
      %p193 = por %p191, %p192
      %p195 = scmp.ne.s32.totalorder %s180, %s194
      %p196 = scmp.eq.s32.totalorder %s23, 0
      %p197 = por %p195, %p196
      %s198 = ssub.s32 %s17, %s24
      %p199 = scmp.eq.s32.totalorder %s198, 0
      %s201 = sadd.s32 %s200, 1
      %s202 = scalar_select %p199, %s200, %s201
      %p205 = pneg %p199
      %p206 = scmp.eq.s32.totalorder %s17, 1
      %p207 = por %p205, %p206
      %p208 = scmp.ne.s32.totalorder %s200, %s203
      %p209 = scmp.eq.s32.totalorder %s17, 0
      %p210 = por %p208, %p209
      %p211 = scmp.ne.s32.totalorder %s200, %s203
      %p212 = scmp.eq.s32.totalorder %s22, 1
      %p213 = por %p211, %p212
      %p214 = scmp.ne.s32.totalorder %s203, %s204
      %p215 = scmp.eq.s32.totalorder %s22, 0
      %p216 = por %p214, %p215
      %p217 = scmp.ne.s32.totalorder %s203, %s204
      %p218 = scmp.eq.s32.totalorder %s23, 1
      %p219 = por %p217, %p218
      %p221 = scmp.ne.s32.totalorder %s204, %s220
      %p222 = scmp.eq.s32.totalorder %s23, 0
      %p223 = por %p221, %p222
      %p224 = scmp.le.s32.totalorder 1, %s17
      %p225 = scmp.lt.s32.totalorder %s17, 3
      %p226 = pnand %p224, %p225
      %p227 = pneg %p226
      // Predicated region
      $region9: #{tpu_custom_call.1} parent=5 // pred_check
        _
      $region10: #{tpu_custom_call.1} parent=5 // pred_check_branch
        %229 = sbr.rel (%p226) target = $region12
      $region11: #{tpu_custom_call.1} parent=5 // pred_region
        %s230 = ssub.s32 %s17, 1
        // Predicated region
        $region13: #{tpu_custom_call.1} parent=11 // pred_check
          %p231 = pneg %p64
        $region14: #{tpu_custom_call.1} parent=11 // pred_check_branch
          %233 = sbr.rel (%p231) target = $region16
        $region15: #{tpu_custom_call.1} parent=11 // pred_region
          _
        $region16: #{tpu_custom_call.1} parent=11 // pred_fallthru
          _
        // Predicated region
        $region17: #{tpu_custom_call.1} parent=11 // pred_check
          %p234 = pneg %p85
        $region18: #{tpu_custom_call.1} parent=11 // pred_check_branch
          %236 = sbr.rel (%p234) target = $region20
        $region19: #{tpu_custom_call.1} parent=11 // pred_region
          _
        $region20: #{tpu_custom_call.1} parent=11 // pred_fallthru
          _
        // Predicated region
        $region21: #{tpu_custom_call.1} parent=11 // pred_check
          %p237 = pneg %p106
        $region22: #{tpu_custom_call.1} parent=11 // pred_check_branch
          %239 = sbr.rel (%p237) target = $region24
        $region23: #{tpu_custom_call.1} parent=11 // pred_region
          _
        $region24: #{tpu_custom_call.1} parent=11 // pred_fallthru
          _
        // Predicated region
        $region25: #{tpu_custom_call.1} parent=11 // pred_check
          %p240 = pneg %p127
        $region26: #{tpu_custom_call.1} parent=11 // pred_check_branch
          %242 = sbr.rel (%p240) target = $region28
        $region27: #{tpu_custom_call.1} parent=11 // pred_region
          _
        $region28: #{tpu_custom_call.1} parent=11 // pred_fallthru
          _
        // Predicated region
        $region29: #{tpu_custom_call.1} parent=11 // pred_check
          %p243 = pneg %p148
        $region30: #{tpu_custom_call.1} parent=11 // pred_check_branch
          %245 = sbr.rel (%p243) target = $region32
        $region31: #{tpu_custom_call.1} parent=11 // pred_region
          _
        $region32: #{tpu_custom_call.1} parent=11 // pred_fallthru
          _
        // Predicated region
        $region33: #{tpu_custom_call.1} parent=11 // pred_check
          %p246 = pneg %p169
        $region34: #{tpu_custom_call.1} parent=11 // pred_check_branch
          %248 = sbr.rel (%p246) target = $region36
        $region35: #{tpu_custom_call.1} parent=11 // pred_region
          _
        $region36: #{tpu_custom_call.1} parent=11 // pred_fallthru
          _
        // Predicated region
        $region37: #{tpu_custom_call.1} parent=11 // pred_check
          %p249 = pneg %p190
        $region38: #{tpu_custom_call.1} parent=11 // pred_check_branch
          %251 = sbr.rel (%p249) target = $region40
        $region39: #{tpu_custom_call.1} parent=11 // pred_region
          _
        $region40: #{tpu_custom_call.1} parent=11 // pred_fallthru
          _
      $region12: #{tpu_custom_call.1} parent=5 // pred_fallthru
        _
      %p252 = scmp.lt.s32.totalorder %s17, 2
      // Predicated region
      $region41: #{tpu_custom_call.1} parent=5 // pred_check
        %p253 = pneg %p252
      $region42: #{tpu_custom_call.1} parent=5 // pred_check_branch
        %255 = sbr.rel (%p253) target = $region44
      $region43: #{tpu_custom_call.1} parent=5 // pred_region
        // Predicated region
        $region45: #{tpu_custom_call.1} parent=43 // pred_check
          %p256 = pneg %p37
        $region46: #{tpu_custom_call.1} parent=43 // pred_check_branch
          %258 = sbr.rel (%p256) target = $region48
        $region47: #{tpu_custom_call.1} parent=43 // pred_region
          %p259 = scmp.lt.s32.totalorder %s17, 1
          %s260 = scalar_select %p259, %s17, 1
          %s261 = smul.addr %s260, 32
          %s262 = smul.addr %s261, 8
          %s263 = scalar_lea.vmem %s0, %s262
        $region48: #{tpu_custom_call.1} parent=43 // pred_fallthru
          _
      $region44: #{tpu_custom_call.1} parent=5 // pred_fallthru
        _
      %p264 = scmp.le.s32.totalorder 1, %s17
      %p265 = scmp.lt.s32.totalorder %s17, 3
      %p266 = pnand %p264, %p265
      %p267 = pneg %p266
      // Predicated region
      $region49: #{tpu_custom_call.1} parent=5 // pred_check
        _
      $region50: #{tpu_custom_call.1} parent=5 // pred_check_branch
        %269 = sbr.rel (%p266) target = $region52
      $region51: #{tpu_custom_call.1} parent=5 // pred_region
        %s270 = ssub.s32 %s17, 1
        %p271 = scmp.lt.s32.totalorder %s22, 1
        %s272 = scalar_select %p271, %s22, 1
        %s273 = smul.addr %s272, 32
        %s274 = smul.addr %s273, 8
        %s275 = scalar_lea.vmem %s0, %s274
        %p276 = pneg %p43
        %p277 = pneg %p40
        %p278 = pneg %p64
        %p279 = pneg %p61
        %p280 = pneg %p85
        %p281 = pneg %p82
        %p282 = pneg %p106
        %p283 = pneg %p103
        %p284 = pneg %p127
        %p285 = pneg %p124
        %p286 = pneg %p148
        %p287 = pneg %p145
        %p288 = pneg %p169
        %p289 = pneg %p166
        %p290 = pneg %p190
        %p291 = pneg %p187
        %p292 = pneg %p216
        %p293 = pneg %p213
        %s294 = sand.u32 %s203, 1
        %s295 = scalar_lea.sflag [#allocation3], %s294
        %s296 = sand.u32 %s203, 1
        %s297 = smul.addr %s296, 256
        %s298 = scalar_lea.vmem [#allocation2], %s297
        %p299 = scmp.lt.s32.totalorder %s22, 1
        %s300 = scalar_select %p299, %s22, 1
        %s301 = smul.addr %s300, 32
        %s302 = smul.addr %s301, 8
        %s303 = scalar_lea.vmem %s0, %s302
        %v304 = vld [vmem:[%s303] sm:$0xff]
        %v305 = vld [vmem:[%s303 + $0x8] sm:$0xff]
        %v306 = vld [vmem:[%s303 + $0x10] sm:$0xff]
        %v307 = vld [vmem:[%s303 + $0x18] sm:$0xff]
        %v308 = vld [vmem:[%s303 + $0x20] sm:$0xff]
        %v309 = vld [vmem:[%s303 + $0x28] sm:$0xff]
        %v310 = vld [vmem:[%s303 + $0x30] sm:$0xff]
        %v311 = vld [vmem:[%s303 + $0x38] sm:$0xff]
        %v312 = vld [vmem:[%s303 + $0x40] sm:$0xff]
        %v313 = vld [vmem:[%s303 + $0x48] sm:$0xff]
        %v314 = vld [vmem:[%s303 + $0x50] sm:$0xff]
        %v315 = vld [vmem:[%s303 + $0x58] sm:$0xff]
        %v316 = vld [vmem:[%s303 + $0x60] sm:$0xff]
        %v317 = vld [vmem:[%s303 + $0x68] sm:$0xff]
        %v318 = vld [vmem:[%s303 + $0x70] sm:$0xff]
        %v319 = vld [vmem:[%s303 + $0x78] sm:$0xff]
        %v320 = vld [vmem:[%s303 + $0x80] sm:$0xff]
        %v321 = vld [vmem:[%s303 + $0x88] sm:$0xff]
        %v322 = vld [vmem:[%s303 + $0x90] sm:$0xff]
        %v323 = vld [vmem:[%s303 + $0x98] sm:$0xff]
        %v324 = vld [vmem:[%s303 + $0xa0] sm:$0xff]
        %v325 = vld [vmem:[%s303 + $0xa8] sm:$0xff]
        %v326 = vld [vmem:[%s303 + $0xb0] sm:$0xff]
        %v327 = vld [vmem:[%s303 + $0xb8] sm:$0xff]
        %v328 = vld [vmem:[%s303 + $0xc0] sm:$0xff]
        %v329 = vld [vmem:[%s303 + $0xc8] sm:$0xff]
        %v330 = vld [vmem:[%s303 + $0xd0] sm:$0xff]
        %v331 = vld [vmem:[%s303 + $0xd8] sm:$0xff]
        %v332 = vld [vmem:[%s303 + $0xe0] sm:$0xff]
        %v333 = vld [vmem:[%s303 + $0xe8] sm:$0xff]
        %v334 = vld [vmem:[%s303 + $0xf0] sm:$0xff]
        %v335 = vld [vmem:[%s303 + $0xf8] sm:$0xff]
        %v336 = vld [vmem:[%s1] sm:$0xf]
        %v337 = vld [vmem:[%s2] sm:$0x1]
        %v339 = vlaneseq
        %v340 = vshrl.u32 %v339, 7
        %v341 = vsub.s32 0, %v340
        %v342 = vrot.slane %v337, %v341
        %vm344 = vcmask 31744
        %v346 = vsel %vm344, %v304, 0
        %v349 = vsel %vm344, %v305, 0
        %v352 = vsel %vm344, %v306, 0
        %v355 = vsel %vm344, %v307, 0
        %v358 = vsel %vm344, %v308, 0
        %v361 = vsel %vm344, %v309, 0
        %v364 = vsel %vm344, %v310, 0
        %v367 = vsel %vm344, %v311, 0
        %v370 = vsel %vm344, %v312, 0
        %v373 = vsel %vm344, %v313, 0
        %v376 = vsel %vm344, %v314, 0
        %v379 = vsel %vm344, %v315, 0
        %v382 = vsel %vm344, %v316, 0
        %v385 = vsel %vm344, %v317, 0
        %v388 = vsel %vm344, %v318, 0
        %v391 = vsel %vm344, %v319, 0
        %v394 = vsel %vm344, %v320, 0
        %v397 = vsel %vm344, %v321, 0
        %v400 = vsel %vm344, %v322, 0
        %v403 = vsel %vm344, %v323, 0
        %v406 = vsel %vm344, %v324, 0
        %v409 = vsel %vm344, %v325, 0
        %v412 = vsel %vm344, %v326, 0
        %v415 = vsel %vm344, %v327, 0
        %v418 = vsel %vm344, %v328, 0
        %v421 = vsel %vm344, %v329, 0
        %v424 = vsel %vm344, %v330, 0
        %v427 = vsel %vm344, %v331, 0
        %v430 = vsel %vm344, %v332, 0
        %v433 = vsel %vm344, %v333, 0
        %v436 = vsel %vm344, %v334, 0
        %v439 = vsel %vm344, %v335, 0
        %vm441 = vcmask 1043456
        %v443 = vsel %vm441, %v336, 0
        %445 = vmatprep.subr.mxu0 0.0
        %446 = vmatpush1.msra.mxu0 %v443
        %447 = vmatprep.subr.mxu0 0.0
        %448 = vmatpush1.msra.mxu0 0.0
        %449 = vmatprep.subr.mxu0 0.0
        %450 = vmatpush1.msra.mxu0 0.0
        %451 = vmatprep.subr.mxu0 0.0
        %452 = vmatpush1.msra.mxu0 0.0
        %453 = vmatprep.subr.mxu0 0.0
        %454 = vmatpush1.msra.mxu0 0.0
        %455 = vmatprep.subr.mxu0 0.0
        %456 = vmatpush1.msra.mxu0 0.0
        %457 = vmatprep.subr.mxu0 0.0
        %458 = vmatpush1.msra.mxu0 0.0
        %459 = vmatprep.subr.mxu0 0.0
        %460 = vmatpush1.msra.mxu0 0.0
        %461 = vmatprep.subr.mxu0 0.0
        %462 = vmatpush1.msra.mxu0 0.0
        %463 = vmatprep.subr.mxu0 0.0
        %464 = vmatpush1.msra.mxu0 0.0
        %465 = vmatprep.subr.mxu0 0.0
        %466 = vmatpush1.msra.mxu0 0.0
        %467 = vmatprep.subr.mxu0 0.0
        %468 = vmatpush1.msra.mxu0 0.0
        %469 = vmatprep.subr.mxu0 0.0
        %470 = vmatpush1.msra.mxu0 0.0
        %471 = vmatprep.subr.mxu0 0.0
        %472 = vmatpush1.msra.mxu0 0.0
        %473 = vmatprep.subr.mxu0 0.0
        %474 = vmatpush1.msra.mxu0 0.0
        %475 = vmatprep.subr.mxu0 0.0
        %476 = vmatpush1.msra.mxu0 0.0
        %477 = vmatprep.subr.mxu0 0.0
        %478 = vmatpush1.msra.mxu0 0.0
        %479 = vmatprep.subr.mxu0 0.0
        %480 = vmatpush1.msra.mxu0 0.0
        %481 = vmatprep.subr.mxu0 0.0
        %482 = vmatpush1.msra.mxu0 0.0
        %483 = vmatprep.subr.mxu0 0.0
        %484 = vmatpush1.msra.mxu0 0.0
        %485 = vmatprep.subr.mxu0 0.0
        %486 = vmatpush1.msra.mxu0 0.0
        %487 = vmatprep.subr.mxu0 0.0
        %488 = vmatpush1.msra.mxu0 0.0
        %489 = vmatprep.subr.mxu0 0.0
        %490 = vmatpush1.msra.mxu0 0.0
        %491 = vmatprep.subr.mxu0 0.0
        %492 = vmatpush1.msra.mxu0 0.0
        %493 = vmatprep.subr.mxu0 0.0
        %494 = vmatpush1.msra.mxu0 0.0
        %495 = vmatprep.subr.mxu0 0.0
        %496 = vmatpush1.msra.mxu0 0.0
        %497 = vmatprep.subr.mxu0 0.0
        %498 = vmatpush1.msra.mxu0 0.0
        %499 = vmatprep.subr.mxu0 0.0
        %500 = vmatpush1.msra.mxu0 0.0
        %501 = vmatprep.subr.mxu0 0.0
        %502 = vmatpush1.msra.mxu0 0.0
        %503 = vmatprep.subr.mxu0 0.0
        %504 = vmatpush1.msra.mxu0 0.0
        %505 = vmatprep.subr.mxu0 0.0
        %506 = vmatpush1.msra.mxu0 0.0
        %507 = vmatprep.subr.mxu0 0.0
        %508 = vmatpush1.msra.mxu0 0.0
        %509 = vmatprep.mubr.f32.mxu0 0.0
        %510 = vmatmul.mubr.f32.gmra.mrb[0].mxu0 %v346
        %v511 = vpop.f32.mrb[0].mxu0
        %v512 = vadd.f32 %v342, %v511
        %v513 = vpop.f32.mrb[0].mxu0
        %514 = vmatprep.mubr.f32.mxu0 0.0
        %515 = vmatmul.mubr.f32.gmra.mrb[0].mxu0 %v349
        %v516 = vpop.f32.mrb[0].mxu0
        %v517 = vadd.f32 %v342, %v516
        %v518 = vpop.f32.mrb[0].mxu0
        %519 = vmatprep.mubr.f32.mxu0 0.0
        %520 = vmatmul.mubr.f32.gmra.mrb[0].mxu0 %v352
        %v521 = vpop.f32.mrb[0].mxu0
        %v522 = vadd.f32 %v342, %v521
        %v523 = vpop.f32.mrb[0].mxu0
        %524 = vmatprep.mubr.f32.mxu0 0.0
        %525 = vmatmul.mubr.f32.gmra.mrb[0].mxu0 %v355
        %v526 = vpop.f32.mrb[0].mxu0
        %v527 = vadd.f32 %v342, %v526
        %v528 = vpop.f32.mrb[0].mxu0
        %529 = vmatprep.mubr.f32.mxu0 0.0
        %530 = vmatmul.mubr.f32.gmra.mrb[0].mxu0 %v358
        %v531 = vpop.f32.mrb[0].mxu0
        %v532 = vadd.f32 %v342, %v531
        %v533 = vpop.f32.mrb[0].mxu0
        %534 = vmatprep.mubr.f32.mxu0 0.0
        %535 = vmatmul.mubr.f32.gmra.mrb[0].mxu0 %v361
        %v536 = vpop.f32.mrb[0].mxu0
        %v537 = vadd.f32 %v342, %v536
        %v538 = vpop.f32.mrb[0].mxu0
        %539 = vmatprep.mubr.f32.mxu0 0.0
        %540 = vmatmul.mubr.f32.gmra.mrb[0].mxu0 %v364
        %v541 = vpop.f32.mrb[0].mxu0
        %v542 = vadd.f32 %v342, %v541
        %v543 = vpop.f32.mrb[0].mxu0
        %544 = vmatprep.mubr.f32.mxu0 0.0
        %545 = vmatmul.mubr.f32.gmra.mrb[0].mxu0 %v367
        %v546 = vpop.f32.mrb[0].mxu0
        %v547 = vadd.f32 %v342, %v546
        %v548 = vpop.f32.mrb[0].mxu0
        %549 = vmatprep.mubr.f32.mxu0 0.0
        %550 = vmatmul.mubr.f32.gmra.mrb[0].mxu0 %v370
        %v551 = vpop.f32.mrb[0].mxu0
        %v552 = vadd.f32 %v342, %v551
        %v553 = vpop.f32.mrb[0].mxu0
        %554 = vmatprep.mubr.f32.mxu0 0.0
        %555 = vmatmul.mubr.f32.gmra.mrb[0].mxu0 %v373
        %v556 = vpop.f32.mrb[0].mxu0
        %v557 = vadd.f32 %v342, %v556
        %v558 = vpop.f32.mrb[0].mxu0
        %559 = vmatprep.mubr.f32.mxu0 0.0
        %560 = vmatmul.mubr.f32.gmra.mrb[0].mxu0 %v376
        %v561 = vpop.f32.mrb[0].mxu0
        %v562 = vadd.f32 %v342, %v561
        %v563 = vpop.f32.mrb[0].mxu0
        %564 = vmatprep.mubr.f32.mxu0 0.0
        %565 = vmatmul.mubr.f32.gmra.mrb[0].mxu0 %v379
        %v566 = vpop.f32.mrb[0].mxu0
        %v567 = vadd.f32 %v342, %v566
        %v568 = vpop.f32.mrb[0].mxu0
        %569 = vmatprep.mubr.f32.mxu0 0.0
        %570 = vmatmul.mubr.f32.gmra.mrb[0].mxu0 %v382
        %v571 = vpop.f32.mrb[0].mxu0
        %v572 = vadd.f32 %v342, %v571
        %v573 = vpop.f32.mrb[0].mxu0
        %574 = vmatprep.mubr.f32.mxu0 0.0
        %575 = vmatmul.mubr.f32.gmra.mrb[0].mxu0 %v385
        %v576 = vpop.f32.mrb[0].mxu0
        %v577 = vadd.f32 %v342, %v576
        %v578 = vpop.f32.mrb[0].mxu0
        %579 = vmatprep.mubr.f32.mxu0 0.0
        %580 = vmatmul.mubr.f32.gmra.mrb[0].mxu0 %v388
        %v581 = vpop.f32.mrb[0].mxu0
        %v582 = vadd.f32 %v342, %v581
        %v583 = vpop.f32.mrb[0].mxu0
        %584 = vmatprep.mubr.f32.mxu0 0.0
        %585 = vmatmul.mubr.f32.gmra.mrb[0].mxu0 %v391
        %v586 = vpop.f32.mrb[0].mxu0
        %v587 = vadd.f32 %v342, %v586
        %v588 = vpop.f32.mrb[0].mxu0
        %589 = vmatprep.mubr.f32.mxu0 0.0
        %590 = vmatmul.mubr.f32.gmra.mrb[0].mxu0 %v394
        %v591 = vpop.f32.mrb[0].mxu0
        %v592 = vadd.f32 %v342, %v591
        %v593 = vpop.f32.mrb[0].mxu0
        %594 = vmatprep.mubr.f32.mxu0 0.0
        %595 = vmatmul.mubr.f32.gmra.mrb[0].mxu0 %v397
        %v596 = vpop.f32.mrb[0].mxu0
        %v597 = vadd.f32 %v342, %v596
        %v598 = vpop.f32.mrb[0].mxu0
        %599 = vmatprep.mubr.f32.mxu0 0.0
        %600 = vmatmul.mubr.f32.gmra.mrb[0].mxu0 %v400
        %v601 = vpop.f32.mrb[0].mxu0
        %v602 = vadd.f32 %v342, %v601
        %v603 = vpop.f32.mrb[0].mxu0
        %604 = vmatprep.mubr.f32.mxu0 0.0
        %605 = vmatmul.mubr.f32.gmra.mrb[0].mxu0 %v403
        %v606 = vpop.f32.mrb[0].mxu0
        %v607 = vadd.f32 %v342, %v606
        %v608 = vpop.f32.mrb[0].mxu0
        %609 = vmatprep.mubr.f32.mxu0 0.0
        %610 = vmatmul.mubr.f32.gmra.mrb[0].mxu0 %v406
        %v611 = vpop.f32.mrb[0].mxu0
        %v612 = vadd.f32 %v342, %v611
        %v613 = vpop.f32.mrb[0].mxu0
        %614 = vmatprep.mubr.f32.mxu0 0.0
        %615 = vmatmul.mubr.f32.gmra.mrb[0].mxu0 %v409
        %v616 = vpop.f32.mrb[0].mxu0
        %v617 = vadd.f32 %v342, %v616
        %v618 = vpop.f32.mrb[0].mxu0
        %619 = vmatprep.mubr.f32.mxu0 0.0
        %620 = vmatmul.mubr.f32.gmra.mrb[0].mxu0 %v412
        %v621 = vpop.f32.mrb[0].mxu0
        %v622 = vadd.f32 %v342, %v621
        %v623 = vpop.f32.mrb[0].mxu0
        %624 = vmatprep.mubr.f32.mxu0 0.0
        %625 = vmatmul.mubr.f32.gmra.mrb[0].mxu0 %v415
        %v626 = vpop.f32.mrb[0].mxu0
        %v627 = vadd.f32 %v342, %v626
        %v628 = vpop.f32.mrb[0].mxu0
        %629 = vmatprep.mubr.f32.mxu0 0.0
        %630 = vmatmul.mubr.f32.gmra.mrb[0].mxu0 %v418
        %v631 = vpop.f32.mrb[0].mxu0
        %v632 = vadd.f32 %v342, %v631
        %v633 = vpop.f32.mrb[0].mxu0
        %634 = vmatprep.mubr.f32.mxu0 0.0
        %635 = vmatmul.mubr.f32.gmra.mrb[0].mxu0 %v421
        %v636 = vpop.f32.mrb[0].mxu0
        %v637 = vadd.f32 %v342, %v636
        %v638 = vpop.f32.mrb[0].mxu0
        %639 = vmatprep.mubr.f32.mxu0 0.0
        %640 = vmatmul.mubr.f32.gmra.mrb[0].mxu0 %v424
        %v641 = vpop.f32.mrb[0].mxu0
        %v642 = vadd.f32 %v342, %v641
        %v643 = vpop.f32.mrb[0].mxu0
        %644 = vmatprep.mubr.f32.mxu0 0.0
        %645 = vmatmul.mubr.f32.gmra.mrb[0].mxu0 %v427
        %v646 = vpop.f32.mrb[0].mxu0
        %v647 = vadd.f32 %v342, %v646
        %v648 = vpop.f32.mrb[0].mxu0
        %649 = vmatprep.mubr.f32.mxu0 0.0
        %650 = vmatmul.mubr.f32.gmra.mrb[0].mxu0 %v430
        %v651 = vpop.f32.mrb[0].mxu0
        %v652 = vadd.f32 %v342, %v651
        %v653 = vpop.f32.mrb[0].mxu0
        %654 = vmatprep.mubr.f32.mxu0 0.0
        %655 = vmatmul.mubr.f32.gmra.mrb[0].mxu0 %v433
        %v656 = vpop.f32.mrb[0].mxu0
        %v657 = vadd.f32 %v342, %v656
        %v658 = vpop.f32.mrb[0].mxu0
        %659 = vmatprep.mubr.f32.mxu0 0.0
        %660 = vmatmul.mubr.f32.gmra.mrb[0].mxu0 %v436
        %v661 = vpop.f32.mrb[0].mxu0
        %v662 = vadd.f32 %v342, %v661
        %v663 = vpop.f32.mrb[0].mxu0
        %664 = vmatprep.mubr.f32.mxu0 0.0
        %665 = vmatmul.mubr.f32.gmra.mrb[0].mxu0 %v439
        %v666 = vpop.f32.mrb[0].mxu0
        %v667 = vadd.f32 %v342, %v666
        %v668 = vpop.f32.mrb[0].mxu0
        %669 = vdwg.mxu0
        %v670 = vmax.f32 %v512, 0.0
        %v671 = vmax.f32 %v517, 0.0
        %v672 = vmax.f32 %v522, 0.0
        %v673 = vmax.f32 %v527, 0.0
        %v674 = vmax.f32 %v532, 0.0
        %v675 = vmax.f32 %v537, 0.0
        %v676 = vmax.f32 %v542, 0.0
        %v677 = vmax.f32 %v547, 0.0
        %v678 = vmax.f32 %v552, 0.0
        %v679 = vmax.f32 %v557, 0.0
        %v680 = vmax.f32 %v562, 0.0
        %v681 = vmax.f32 %v567, 0.0
        %v682 = vmax.f32 %v572, 0.0
        %v683 = vmax.f32 %v577, 0.0
        %v684 = vmax.f32 %v582, 0.0
        %v685 = vmax.f32 %v587, 0.0
        %v686 = vmax.f32 %v592, 0.0
        %v687 = vmax.f32 %v597, 0.0
        %v688 = vmax.f32 %v602, 0.0
        %v689 = vmax.f32 %v607, 0.0
        %v690 = vmax.f32 %v612, 0.0
        %v691 = vmax.f32 %v617, 0.0
        %v692 = vmax.f32 %v622, 0.0
        %v693 = vmax.f32 %v627, 0.0
        %v694 = vmax.f32 %v632, 0.0
        %v695 = vmax.f32 %v637, 0.0
        %v696 = vmax.f32 %v642, 0.0
        %v697 = vmax.f32 %v647, 0.0
        %v698 = vmax.f32 %v652, 0.0
        %v699 = vmax.f32 %v657, 0.0
        %v700 = vmax.f32 %v662, 0.0
        %v701 = vmax.f32 %v667, 0.0
        %vm702 = vcmask 1040384
        %v703 = vrot.slane %v304, 7
        %v704 = vrot.slane %v305, 7
        %v705 = vsel %vm702, %v703, %v704
        %v706 = vrot.slane %v306, 7
        %v707 = vrot.slane %v307, 7
        %v708 = vsel %vm702, %v706, %v707
        %v709 = vrot.slane %v308, 7
        %v710 = vrot.slane %v309, 7
        %v711 = vsel %vm702, %v709, %v710
        %v712 = vrot.slane %v310, 7
        %v713 = vrot.slane %v311, 7
        %v714 = vsel %vm702, %v712, %v713
        %v715 = vrot.slane %v312, 7
        %v716 = vrot.slane %v313, 7
        %v717 = vsel %vm702, %v715, %v716
        %v718 = vrot.slane %v314, 7
        %v719 = vrot.slane %v315, 7
        %v720 = vsel %vm702, %v718, %v719
        %v721 = vrot.slane %v316, 7
        %v722 = vrot.slane %v317, 7
        %v723 = vsel %vm702, %v721, %v722
        %v724 = vrot.slane %v318, 7
        %v725 = vrot.slane %v319, 7
        %v726 = vsel %vm702, %v724, %v725
        %v727 = vrot.slane %v320, 7
        %v728 = vrot.slane %v321, 7
        %v729 = vsel %vm702, %v727, %v728
        %v730 = vrot.slane %v322, 7
        %v731 = vrot.slane %v323, 7
        %v732 = vsel %vm702, %v730, %v731
        %v733 = vrot.slane %v324, 7
        %v734 = vrot.slane %v325, 7
        %v735 = vsel %vm702, %v733, %v734
        %v736 = vrot.slane %v326, 7
        %v737 = vrot.slane %v327, 7
        %v738 = vsel %vm702, %v736, %v737
        %v739 = vrot.slane %v328, 7
        %v740 = vrot.slane %v329, 7
        %v741 = vsel %vm702, %v739, %v740
        %v742 = vrot.slane %v330, 7
        %v743 = vrot.slane %v331, 7
        %v744 = vsel %vm702, %v742, %v743
        %v745 = vrot.slane %v332, 7
        %v746 = vrot.slane %v333, 7
        %v747 = vsel %vm702, %v745, %v746
        %v748 = vrot.slane %v334, 7
        %v749 = vrot.slane %v335, 7
        %v750 = vsel %vm702, %v748, %v749
        %v799 = vsel %vm702, -3.4028235e+38, %v703
        %v800 = vsel %vm702, -3.4028235e+38, %v706
        %v801 = vsel %vm702, -3.4028235e+38, %v709
        %v802 = vsel %vm702, -3.4028235e+38, %v712
        %v803 = vsel %vm702, -3.4028235e+38, %v715
        %v804 = vsel %vm702, -3.4028235e+38, %v718
        %v805 = vsel %vm702, -3.4028235e+38, %v721
        %v806 = vsel %vm702, -3.4028235e+38, %v724
        %v807 = vsel %vm702, -3.4028235e+38, %v727
        %v808 = vsel %vm702, -3.4028235e+38, %v730
        %v809 = vsel %vm702, -3.4028235e+38, %v733
        %v810 = vsel %vm702, -3.4028235e+38, %v736
        %v811 = vsel %vm702, -3.4028235e+38, %v739
        %v812 = vsel %vm702, -3.4028235e+38, %v742
        %v813 = vsel %vm702, -3.4028235e+38, %v745
        %v814 = vsel %vm702, -3.4028235e+38, %v748
        %v815 = vsel %vm702, %v704, -3.4028235e+38
        %v816 = vsel %vm702, %v707, -3.4028235e+38
        %v817 = vsel %vm702, %v710, -3.4028235e+38
        %v818 = vsel %vm702, %v713, -3.4028235e+38
        %v819 = vsel %vm702, %v716, -3.4028235e+38
        %v820 = vsel %vm702, %v719, -3.4028235e+38
        %v821 = vsel %vm702, %v722, -3.4028235e+38
        %v822 = vsel %vm702, %v725, -3.4028235e+38
        %v823 = vsel %vm702, %v728, -3.4028235e+38
        %v824 = vsel %vm702, %v731, -3.4028235e+38
        %v825 = vsel %vm702, %v734, -3.4028235e+38
        %v826 = vsel %vm702, %v737, -3.4028235e+38
        %v827 = vsel %vm702, %v740, -3.4028235e+38
        %v828 = vsel %vm702, %v743, -3.4028235e+38
        %v829 = vsel %vm702, %v746, -3.4028235e+38
        %v830 = vsel %vm702, %v749, -3.4028235e+38
        %vm863 = vcmask 1046528
        %v864 = vrot.slane %v799, 1
        %v865 = vrot.slane %v705, 1
        %v866 = vsel %vm863, %v864, %v865
        %v867 = vrot.slane %v815, 1
        %v868 = vsel %vm863, %v865, %v867
        %v869 = vrot.slane %v800, 1
        %v870 = vrot.slane %v708, 1
        %v871 = vsel %vm863, %v869, %v870
        %v872 = vrot.slane %v816, 1
        %v873 = vsel %vm863, %v870, %v872
        %v874 = vrot.slane %v801, 1
        %v875 = vrot.slane %v711, 1
        %v876 = vsel %vm863, %v874, %v875
        %v877 = vrot.slane %v817, 1
        %v878 = vsel %vm863, %v875, %v877
        %v879 = vrot.slane %v802, 1
        %v880 = vrot.slane %v714, 1
        %v881 = vsel %vm863, %v879, %v880
        %v882 = vrot.slane %v818, 1
        %v883 = vsel %vm863, %v880, %v882
        %v884 = vrot.slane %v803, 1
        %v885 = vrot.slane %v717, 1
        %v886 = vsel %vm863, %v884, %v885
        %v887 = vrot.slane %v819, 1
        %v888 = vsel %vm863, %v885, %v887
        %v889 = vrot.slane %v804, 1
        %v890 = vrot.slane %v720, 1
        %v891 = vsel %vm863, %v889, %v890
        %v892 = vrot.slane %v820, 1
        %v893 = vsel %vm863, %v890, %v892
        %v894 = vrot.slane %v805, 1
        %v895 = vrot.slane %v723, 1
        %v896 = vsel %vm863, %v894, %v895
        %v897 = vrot.slane %v821, 1
        %v898 = vsel %vm863, %v895, %v897
        %v899 = vrot.slane %v806, 1
        %v900 = vrot.slane %v726, 1
        %v901 = vsel %vm863, %v899, %v900
        %v902 = vrot.slane %v822, 1
        %v903 = vsel %vm863, %v900, %v902
        %v904 = vrot.slane %v807, 1
        %v905 = vrot.slane %v729, 1
        %v906 = vsel %vm863, %v904, %v905
        %v907 = vrot.slane %v823, 1
        %v908 = vsel %vm863, %v905, %v907
        %v909 = vrot.slane %v808, 1
        %v910 = vrot.slane %v732, 1
        %v911 = vsel %vm863, %v909, %v910
        %v912 = vrot.slane %v824, 1
        %v913 = vsel %vm863, %v910, %v912
        %v914 = vrot.slane %v809, 1
        %v915 = vrot.slane %v735, 1
        %v916 = vsel %vm863, %v914, %v915
        %v917 = vrot.slane %v825, 1
        %v918 = vsel %vm863, %v915, %v917
        %v919 = vrot.slane %v810, 1
        %v920 = vrot.slane %v738, 1
        %v921 = vsel %vm863, %v919, %v920
        %v922 = vrot.slane %v826, 1
        %v923 = vsel %vm863, %v920, %v922
        %v924 = vrot.slane %v811, 1
        %v925 = vrot.slane %v741, 1
        %v926 = vsel %vm863, %v924, %v925
        %v927 = vrot.slane %v827, 1
        %v928 = vsel %vm863, %v925, %v927
        %v929 = vrot.slane %v812, 1
        %v930 = vrot.slane %v744, 1
        %v931 = vsel %vm863, %v929, %v930
        %v932 = vrot.slane %v828, 1
        %v933 = vsel %vm863, %v930, %v932
        %v934 = vrot.slane %v813, 1
        %v935 = vrot.slane %v747, 1
        %v936 = vsel %vm863, %v934, %v935
        %v937 = vrot.slane %v829, 1
        %v938 = vsel %vm863, %v935, %v937
        %v939 = vrot.slane %v814, 1
        %v940 = vrot.slane %v750, 1
        %v941 = vsel %vm863, %v939, %v940
        %v942 = vrot.slane %v830, 1
        %v943 = vsel %vm863, %v940, %v942
        %v976 = vmax.f32 %v799, %v866
        %v977 = vmax.f32 %v705, %v868
        %v978 = vmax.f32 %v800, %v871
        %v979 = vmax.f32 %v708, %v873
        %v980 = vmax.f32 %v801, %v876
        %v981 = vmax.f32 %v711, %v878
        %v982 = vmax.f32 %v802, %v881
        %v983 = vmax.f32 %v714, %v883
        %v984 = vmax.f32 %v803, %v886
        %v985 = vmax.f32 %v717, %v888
        %v986 = vmax.f32 %v804, %v891
        %v987 = vmax.f32 %v720, %v893
        %v988 = vmax.f32 %v805, %v896
        %v989 = vmax.f32 %v723, %v898
        %v990 = vmax.f32 %v806, %v901
        %v991 = vmax.f32 %v726, %v903
        %v992 = vmax.f32 %v807, %v906
        %v993 = vmax.f32 %v729, %v908
        %v994 = vmax.f32 %v808, %v911
        %v995 = vmax.f32 %v732, %v913
        %v996 = vmax.f32 %v809, %v916
        %v997 = vmax.f32 %v735, %v918
        %v998 = vmax.f32 %v810, %v921
        %v999 = vmax.f32 %v738, %v923
        %v1000 = vmax.f32 %v811, %v926
        %v1001 = vmax.f32 %v741, %v928
        %v1002 = vmax.f32 %v812, %v931
        %v1003 = vmax.f32 %v744, %v933
        %v1004 = vmax.f32 %v813, %v936
        %v1005 = vmax.f32 %v747, %v938
        %v1006 = vmax.f32 %v814, %v941
        %v1007 = vmax.f32 %v750, %v943
        %vm1008 = vcmask 1045504
        %v1009 = vrot.slane %v799, 2
        %v1010 = vrot.slane %v705, 2
        %v1011 = vsel %vm1008, %v1009, %v1010
        %v1012 = vrot.slane %v815, 2
        %v1013 = vsel %vm1008, %v1010, %v1012
        %v1014 = vrot.slane %v800, 2
        %v1015 = vrot.slane %v708, 2
        %v1016 = vsel %vm1008, %v1014, %v1015
        %v1017 = vrot.slane %v816, 2
        %v1018 = vsel %vm1008, %v1015, %v1017
        %v1019 = vrot.slane %v801, 2
        %v1020 = vrot.slane %v711, 2
        %v1021 = vsel %vm1008, %v1019, %v1020
        %v1022 = vrot.slane %v817, 2
        %v1023 = vsel %vm1008, %v1020, %v1022
        %v1024 = vrot.slane %v802, 2
        %v1025 = vrot.slane %v714, 2
        %v1026 = vsel %vm1008, %v1024, %v1025
        %v1027 = vrot.slane %v818, 2
        %v1028 = vsel %vm1008, %v1025, %v1027
        %v1029 = vrot.slane %v803, 2
        %v1030 = vrot.slane %v717, 2
        %v1031 = vsel %vm1008, %v1029, %v1030
        %v1032 = vrot.slane %v819, 2
        %v1033 = vsel %vm1008, %v1030, %v1032
        %v1034 = vrot.slane %v804, 2
        %v1035 = vrot.slane %v720, 2
        %v1036 = vsel %vm1008, %v1034, %v1035
        %v1037 = vrot.slane %v820, 2
        %v1038 = vsel %vm1008, %v1035, %v1037
        %v1039 = vrot.slane %v805, 2
        %v1040 = vrot.slane %v723, 2
        %v1041 = vsel %vm1008, %v1039, %v1040
        %v1042 = vrot.slane %v821, 2
        %v1043 = vsel %vm1008, %v1040, %v1042
        %v1044 = vrot.slane %v806, 2
        %v1045 = vrot.slane %v726, 2
        %v1046 = vsel %vm1008, %v1044, %v1045
        %v1047 = vrot.slane %v822, 2
        %v1048 = vsel %vm1008, %v1045, %v1047
        %v1049 = vrot.slane %v807, 2
        %v1050 = vrot.slane %v729, 2
        %v1051 = vsel %vm1008, %v1049, %v1050
        %v1052 = vrot.slane %v823, 2
        %v1053 = vsel %vm1008, %v1050, %v1052
        %v1054 = vrot.slane %v808, 2
        %v1055 = vrot.slane %v732, 2
        %v1056 = vsel %vm1008, %v1054, %v1055
        %v1057 = vrot.slane %v824, 2
        %v1058 = vsel %vm1008, %v1055, %v1057
        %v1059 = vrot.slane %v809, 2
        %v1060 = vrot.slane %v735, 2
        %v1061 = vsel %vm1008, %v1059, %v1060
        %v1062 = vrot.slane %v825, 2
        %v1063 = vsel %vm1008, %v1060, %v1062
        %v1064 = vrot.slane %v810, 2
        %v1065 = vrot.slane %v738, 2
        %v1066 = vsel %vm1008, %v1064, %v1065
        %v1067 = vrot.slane %v826, 2
        %v1068 = vsel %vm1008, %v1065, %v1067
        %v1069 = vrot.slane %v811, 2
        %v1070 = vrot.slane %v741, 2
        %v1071 = vsel %vm1008, %v1069, %v1070
        %v1072 = vrot.slane %v827, 2
        %v1073 = vsel %vm1008, %v1070, %v1072
        %v1074 = vrot.slane %v812, 2
        %v1075 = vrot.slane %v744, 2
        %v1076 = vsel %vm1008, %v1074, %v1075
        %v1077 = vrot.slane %v828, 2
        %v1078 = vsel %vm1008, %v1075, %v1077
        %v1079 = vrot.slane %v813, 2
        %v1080 = vrot.slane %v747, 2
        %v1081 = vsel %vm1008, %v1079, %v1080
        %v1082 = vrot.slane %v829, 2
        %v1083 = vsel %vm1008, %v1080, %v1082
        %v1084 = vrot.slane %v814, 2
        %v1085 = vrot.slane %v750, 2
        %v1086 = vsel %vm1008, %v1084, %v1085
        %v1087 = vrot.slane %v830, 2
        %v1088 = vsel %vm1008, %v1085, %v1087
        %v1121 = vmax.f32 %v976, %v1011
        %v1122 = vmax.f32 %v977, %v1013
        %v1123 = vmax.f32 %v978, %v1016
        %v1124 = vmax.f32 %v979, %v1018
        %v1125 = vmax.f32 %v980, %v1021
        %v1126 = vmax.f32 %v981, %v1023
        %v1127 = vmax.f32 %v982, %v1026
        %v1128 = vmax.f32 %v983, %v1028
        %v1129 = vmax.f32 %v984, %v1031
        %v1130 = vmax.f32 %v985, %v1033
        %v1131 = vmax.f32 %v986, %v1036
        %v1132 = vmax.f32 %v987, %v1038
        %v1133 = vmax.f32 %v988, %v1041
        %v1134 = vmax.f32 %v989, %v1043
        %v1135 = vmax.f32 %v990, %v1046
        %v1136 = vmax.f32 %v991, %v1048
        %v1137 = vmax.f32 %v992, %v1051
        %v1138 = vmax.f32 %v993, %v1053
        %v1139 = vmax.f32 %v994, %v1056
        %v1140 = vmax.f32 %v995, %v1058
        %v1141 = vmax.f32 %v996, %v1061
        %v1142 = vmax.f32 %v997, %v1063
        %v1143 = vmax.f32 %v998, %v1066
        %v1144 = vmax.f32 %v999, %v1068
        %v1145 = vmax.f32 %v1000, %v1071
        %v1146 = vmax.f32 %v1001, %v1073
        %v1147 = vmax.f32 %v1002, %v1076
        %v1148 = vmax.f32 %v1003, %v1078
        %v1149 = vmax.f32 %v1004, %v1081
        %v1150 = vmax.f32 %v1005, %v1083
        %v1151 = vmax.f32 %v1006, %v1086
        %v1152 = vmax.f32 %v1007, %v1088
        %v1153 = vmax.f32 %v1121, -3.4028235e+38
        %v1154 = vmax.f32 %v1122, -3.4028235e+38
        %v1155 = vmax.f32 %v1121, %v1123
        %v1156 = vmax.f32 %v1122, %v1124
        %v1157 = vmax.f32 %v1123, %v1125
        %v1158 = vmax.f32 %v1124, %v1126
        %v1159 = vmax.f32 %v1125, %v1127
        %v1160 = vmax.f32 %v1126, %v1128
        %v1161 = vmax.f32 %v1127, %v1129
        %v1162 = vmax.f32 %v1128, %v1130
        %v1163 = vmax.f32 %v1129, %v1131
        %v1164 = vmax.f32 %v1130, %v1132
        %v1165 = vmax.f32 %v1131, %v1133
        %v1166 = vmax.f32 %v1132, %v1134
        %v1167 = vmax.f32 %v1133, %v1135
        %v1168 = vmax.f32 %v1134, %v1136
        %v1169 = vmax.f32 %v1135, %v1137
        %v1170 = vmax.f32 %v1136, %v1138
        %v1171 = vmax.f32 %v1137, %v1139
        %v1172 = vmax.f32 %v1138, %v1140
        %v1173 = vmax.f32 %v1139, %v1141
        %v1174 = vmax.f32 %v1140, %v1142
        %v1175 = vmax.f32 %v1141, %v1143
        %v1176 = vmax.f32 %v1142, %v1144
        %v1177 = vmax.f32 %v1143, %v1145
        %v1178 = vmax.f32 %v1144, %v1146
        %v1179 = vmax.f32 %v1145, %v1147
        %v1180 = vmax.f32 %v1146, %v1148
        %v1181 = vmax.f32 %v1147, %v1149
        %v1182 = vmax.f32 %v1148, %v1150
        %v1183 = vmax.f32 %v1149, %v1151
        %v1184 = vmax.f32 %v1150, %v1152
        %v1185 = vmax.f32 %v1153, %v1123
        %v1186 = vmax.f32 %v1154, %v1124
        %v1187 = vmax.f32 %v1155, %v1125
        %v1188 = vmax.f32 %v1156, %v1126
        %v1189 = vmax.f32 %v1157, %v1127
        %v1190 = vmax.f32 %v1158, %v1128
        %v1191 = vmax.f32 %v1159, %v1129
        %v1192 = vmax.f32 %v1160, %v1130
        %v1193 = vmax.f32 %v1161, %v1131
        %v1194 = vmax.f32 %v1162, %v1132
        %v1195 = vmax.f32 %v1163, %v1133
        %v1196 = vmax.f32 %v1164, %v1134
        %v1197 = vmax.f32 %v1165, %v1135
        %v1198 = vmax.f32 %v1166, %v1136
        %v1199 = vmax.f32 %v1167, %v1137
        %v1200 = vmax.f32 %v1168, %v1138
        %v1201 = vmax.f32 %v1169, %v1139
        %v1202 = vmax.f32 %v1170, %v1140
        %v1203 = vmax.f32 %v1171, %v1141
        %v1204 = vmax.f32 %v1172, %v1142
        %v1205 = vmax.f32 %v1173, %v1143
        %v1206 = vmax.f32 %v1174, %v1144
        %v1207 = vmax.f32 %v1175, %v1145
        %v1208 = vmax.f32 %v1176, %v1146
        %v1209 = vmax.f32 %v1177, %v1147
        %v1210 = vmax.f32 %v1178, %v1148
        %v1211 = vmax.f32 %v1179, %v1149
        %v1212 = vmax.f32 %v1180, %v1150
        %v1213 = vmax.f32 %v1181, %v1151
        %v1214 = vmax.f32 %v1182, %v1152
        %v1215 = vmax.f32 %v1183, -3.4028235e+38
        %v1216 = vmax.f32 %v1184, -3.4028235e+38
        %v1217 = vld [vmem:[%s3] sm:$0xf]
        %v1250 = vrot.slane %v670, 7
        %v1251 = vrot.slane %v671, 7
        %v1252 = vsel %vm702, %v1250, %v1251
        %v1253 = vrot.slane %v672, 7
        %v1254 = vrot.slane %v673, 7
        %v1255 = vsel %vm702, %v1253, %v1254
        %v1256 = vrot.slane %v674, 7
        %v1257 = vrot.slane %v675, 7
        %v1258 = vsel %vm702, %v1256, %v1257
        %v1259 = vrot.slane %v676, 7
        %v1260 = vrot.slane %v677, 7
        %v1261 = vsel %vm702, %v1259, %v1260
        %v1262 = vrot.slane %v678, 7
        %v1263 = vrot.slane %v679, 7
        %v1264 = vsel %vm702, %v1262, %v1263
        %v1265 = vrot.slane %v680, 7
        %v1266 = vrot.slane %v681, 7
        %v1267 = vsel %vm702, %v1265, %v1266
        %v1268 = vrot.slane %v682, 7
        %v1269 = vrot.slane %v683, 7
        %v1270 = vsel %vm702, %v1268, %v1269
        %v1271 = vrot.slane %v684, 7
        %v1272 = vrot.slane %v685, 7
        %v1273 = vsel %vm702, %v1271, %v1272
        %v1274 = vrot.slane %v686, 7
        %v1275 = vrot.slane %v687, 7
        %v1276 = vsel %vm702, %v1274, %v1275
        %v1277 = vrot.slane %v688, 7
        %v1278 = vrot.slane %v689, 7
        %v1279 = vsel %vm702, %v1277, %v1278
        %v1280 = vrot.slane %v690, 7
        %v1281 = vrot.slane %v691, 7
        %v1282 = vsel %vm702, %v1280, %v1281
        %v1283 = vrot.slane %v692, 7
        %v1284 = vrot.slane %v693, 7
        %v1285 = vsel %vm702, %v1283, %v1284
        %v1286 = vrot.slane %v694, 7
        %v1287 = vrot.slane %v695, 7
        %v1288 = vsel %vm702, %v1286, %v1287
        %v1289 = vrot.slane %v696, 7
        %v1290 = vrot.slane %v697, 7
        %v1291 = vsel %vm702, %v1289, %v1290
        %v1292 = vrot.slane %v698, 7
        %v1293 = vrot.slane %v699, 7
        %v1294 = vsel %vm702, %v1292, %v1293
        %v1295 = vrot.slane %v700, 7
        %v1296 = vrot.slane %v701, 7
        %v1297 = vsel %vm702, %v1295, %v1296
        %v1345 = vsel %vm702, 0.0, %v1250
        %v1346 = vsel %vm702, 0.0, %v1253
        %v1347 = vsel %vm702, 0.0, %v1256
        %v1348 = vsel %vm702, 0.0, %v1259
        %v1349 = vsel %vm702, 0.0, %v1262
        %v1350 = vsel %vm702, 0.0, %v1265
        %v1351 = vsel %vm702, 0.0, %v1268
        %v1352 = vsel %vm702, 0.0, %v1271
        %v1353 = vsel %vm702, 0.0, %v1274
        %v1354 = vsel %vm702, 0.0, %v1277
        %v1355 = vsel %vm702, 0.0, %v1280
        %v1356 = vsel %vm702, 0.0, %v1283
        %v1357 = vsel %vm702, 0.0, %v1286
        %v1358 = vsel %vm702, 0.0, %v1289
        %v1359 = vsel %vm702, 0.0, %v1292
        %v1360 = vsel %vm702, 0.0, %v1295
        %v1361 = vsel %vm702, %v1251, 0.0
        %v1362 = vsel %vm702, %v1254, 0.0
        %v1363 = vsel %vm702, %v1257, 0.0
        %v1364 = vsel %vm702, %v1260, 0.0
        %v1365 = vsel %vm702, %v1263, 0.0
        %v1366 = vsel %vm702, %v1266, 0.0
        %v1367 = vsel %vm702, %v1269, 0.0
        %v1368 = vsel %vm702, %v1272, 0.0
        %v1369 = vsel %vm702, %v1275, 0.0
        %v1370 = vsel %vm702, %v1278, 0.0
        %v1371 = vsel %vm702, %v1281, 0.0
        %v1372 = vsel %vm702, %v1284, 0.0
        %v1373 = vsel %vm702, %v1287, 0.0
        %v1374 = vsel %vm702, %v1290, 0.0
        %v1375 = vsel %vm702, %v1293, 0.0
        %v1376 = vsel %vm702, %v1296, 0.0
        %v1408 = vrot.slane 0.0, 1
        %v1409 = vsel %vm863, %v1408, %v1408
        %v1410 = vrot.slane %v1345, 1
        %v1411 = vrot.slane %v1252, 1
        %v1412 = vsel %vm863, %v1410, %v1411
        %v1413 = vrot.slane %v1361, 1
        %v1414 = vsel %vm863, %v1411, %v1413
        %v1415 = vrot.slane %v1346, 1
        %v1416 = vrot.slane %v1255, 1
        %v1417 = vsel %vm863, %v1415, %v1416
        %v1418 = vrot.slane %v1362, 1
        %v1419 = vsel %vm863, %v1416, %v1418
        %v1420 = vrot.slane %v1347, 1
        %v1421 = vrot.slane %v1258, 1
        %v1422 = vsel %vm863, %v1420, %v1421
        %v1423 = vrot.slane %v1363, 1
        %v1424 = vsel %vm863, %v1421, %v1423
        %v1425 = vrot.slane %v1348, 1
        %v1426 = vrot.slane %v1261, 1
        %v1427 = vsel %vm863, %v1425, %v1426
        %v1428 = vrot.slane %v1364, 1
        %v1429 = vsel %vm863, %v1426, %v1428
        %v1430 = vrot.slane %v1349, 1
        %v1431 = vrot.slane %v1264, 1
        %v1432 = vsel %vm863, %v1430, %v1431
        %v1433 = vrot.slane %v1365, 1
        %v1434 = vsel %vm863, %v1431, %v1433
        %v1435 = vrot.slane %v1350, 1
        %v1436 = vrot.slane %v1267, 1
        %v1437 = vsel %vm863, %v1435, %v1436
        %v1438 = vrot.slane %v1366, 1
        %v1439 = vsel %vm863, %v1436, %v1438
        %v1440 = vrot.slane %v1351, 1
        %v1441 = vrot.slane %v1270, 1
        %v1442 = vsel %vm863, %v1440, %v1441
        %v1443 = vrot.slane %v1367, 1
        %v1444 = vsel %vm863, %v1441, %v1443
        %v1445 = vrot.slane %v1352, 1
        %v1446 = vrot.slane %v1273, 1
        %v1447 = vsel %vm863, %v1445, %v1446
        %v1448 = vrot.slane %v1368, 1
        %v1449 = vsel %vm863, %v1446, %v1448
        %v1450 = vrot.slane %v1353, 1
        %v1451 = vrot.slane %v1276, 1
        %v1452 = vsel %vm863, %v1450, %v1451
        %v1453 = vrot.slane %v1369, 1
        %v1454 = vsel %vm863, %v1451, %v1453
        %v1455 = vrot.slane %v1354, 1
        %v1456 = vrot.slane %v1279, 1
        %v1457 = vsel %vm863, %v1455, %v1456
        %v1458 = vrot.slane %v1370, 1
        %v1459 = vsel %vm863, %v1456, %v1458
        %v1460 = vrot.slane %v1355, 1
        %v1461 = vrot.slane %v1282, 1
        %v1462 = vsel %vm863, %v1460, %v1461
        %v1463 = vrot.slane %v1371, 1
        %v1464 = vsel %vm863, %v1461, %v1463
        %v1465 = vrot.slane %v1356, 1
        %v1466 = vrot.slane %v1285, 1
        %v1467 = vsel %vm863, %v1465, %v1466
        %v1468 = vrot.slane %v1372, 1
        %v1469 = vsel %vm863, %v1466, %v1468
        %v1470 = vrot.slane %v1357, 1
        %v1471 = vrot.slane %v1288, 1
        %v1472 = vsel %vm863, %v1470, %v1471
        %v1473 = vrot.slane %v1373, 1
        %v1474 = vsel %vm863, %v1471, %v1473
        %v1475 = vrot.slane %v1358, 1
        %v1476 = vrot.slane %v1291, 1
        %v1477 = vsel %vm863, %v1475, %v1476
        %v1478 = vrot.slane %v1374, 1
        %v1479 = vsel %vm863, %v1476, %v1478
        %v1480 = vrot.slane %v1359, 1
        %v1481 = vrot.slane %v1294, 1
        %v1482 = vsel %vm863, %v1480, %v1481
        %v1483 = vrot.slane %v1375, 1
        %v1484 = vsel %vm863, %v1481, %v1483
        %1485 = vrot.lane.b32.xlu0 %v1409, 4
        %v1486 = vpop.permute.xlu0 %1485
        %1487 = vrot.lane.b32.xlu0 %v1412, 4
        %v1488 = vpop.permute.xlu0 %1487
        %1489 = vrot.lane.b32.xlu0 %v1414, 4
        %v1490 = vpop.permute.xlu0 %1489
        %1491 = vrot.lane.b32.xlu0 %v1417, 4
        %v1492 = vpop.permute.xlu0 %1491
        %1493 = vrot.lane.b32.xlu0 %v1419, 4
        %v1494 = vpop.permute.xlu0 %1493
        %1495 = vrot.lane.b32.xlu0 %v1422, 4
        %v1496 = vpop.permute.xlu0 %1495
        %1497 = vrot.lane.b32.xlu0 %v1424, 4
        %v1498 = vpop.permute.xlu0 %1497
        %1499 = vrot.lane.b32.xlu0 %v1427, 4
        %v1500 = vpop.permute.xlu0 %1499
        %1501 = vrot.lane.b32.xlu0 %v1429, 4
        %v1502 = vpop.permute.xlu0 %1501
        %1503 = vrot.lane.b32.xlu0 %v1432, 4
        %v1504 = vpop.permute.xlu0 %1503
        %1505 = vrot.lane.b32.xlu0 %v1434, 4
        %v1506 = vpop.permute.xlu0 %1505
        %1507 = vrot.lane.b32.xlu0 %v1437, 4
        %v1508 = vpop.permute.xlu0 %1507
        %1509 = vrot.lane.b32.xlu0 %v1439, 4
        %v1510 = vpop.permute.xlu0 %1509
        %1511 = vrot.lane.b32.xlu0 %v1442, 4
        %v1512 = vpop.permute.xlu0 %1511
        %1513 = vrot.lane.b32.xlu0 %v1444, 4
        %v1514 = vpop.permute.xlu0 %1513
        %1515 = vrot.lane.b32.xlu0 %v1447, 4
        %v1516 = vpop.permute.xlu0 %1515
        %1517 = vrot.lane.b32.xlu0 %v1449, 4
        %v1518 = vpop.permute.xlu0 %1517
        %1519 = vrot.lane.b32.xlu0 %v1452, 4
        %v1520 = vpop.permute.xlu0 %1519
        %1521 = vrot.lane.b32.xlu0 %v1454, 4
        %v1522 = vpop.permute.xlu0 %1521
        %1523 = vrot.lane.b32.xlu0 %v1457, 4
        %v1524 = vpop.permute.xlu0 %1523
        %1525 = vrot.lane.b32.xlu0 %v1459, 4
        %v1526 = vpop.permute.xlu0 %1525
        %1527 = vrot.lane.b32.xlu0 %v1462, 4
        %v1528 = vpop.permute.xlu0 %1527
        %1529 = vrot.lane.b32.xlu0 %v1464, 4
        %v1530 = vpop.permute.xlu0 %1529
        %1531 = vrot.lane.b32.xlu0 %v1467, 4
        %v1532 = vpop.permute.xlu0 %1531
        %1533 = vrot.lane.b32.xlu0 %v1469, 4
        %v1534 = vpop.permute.xlu0 %1533
        %1535 = vrot.lane.b32.xlu0 %v1472, 4
        %v1536 = vpop.permute.xlu0 %1535
        %1537 = vrot.lane.b32.xlu0 %v1474, 4
        %v1538 = vpop.permute.xlu0 %1537
        %1539 = vrot.lane.b32.xlu0 %v1477, 4
        %v1540 = vpop.permute.xlu0 %1539
        %1541 = vrot.lane.b32.xlu0 %v1479, 4
        %v1542 = vpop.permute.xlu0 %1541
        %1543 = vrot.lane.b32.xlu0 %v1482, 4
        %v1544 = vpop.permute.xlu0 %1543
        %1545 = vrot.lane.b32.xlu0 %v1484, 4
        %v1546 = vpop.permute.xlu0 %1545
        %v1578 = vrot.slane 0.0, 2
        %v1579 = vsel %vm1008, %v1578, %v1578
        %v1580 = vrot.slane %v1345, 2
        %v1581 = vrot.slane %v1252, 2
        %v1582 = vsel %vm1008, %v1580, %v1581
        %v1583 = vrot.slane %v1361, 2
        %v1584 = vsel %vm1008, %v1581, %v1583
        %v1585 = vrot.slane %v1346, 2
        %v1586 = vrot.slane %v1255, 2
        %v1587 = vsel %vm1008, %v1585, %v1586
        %v1588 = vrot.slane %v1362, 2
        %v1589 = vsel %vm1008, %v1586, %v1588
        %v1590 = vrot.slane %v1347, 2
        %v1591 = vrot.slane %v1258, 2
        %v1592 = vsel %vm1008, %v1590, %v1591
        %v1593 = vrot.slane %v1363, 2
        %v1594 = vsel %vm1008, %v1591, %v1593
        %v1595 = vrot.slane %v1348, 2
        %v1596 = vrot.slane %v1261, 2
        %v1597 = vsel %vm1008, %v1595, %v1596
        %v1598 = vrot.slane %v1364, 2
        %v1599 = vsel %vm1008, %v1596, %v1598
        %v1600 = vrot.slane %v1349, 2
        %v1601 = vrot.slane %v1264, 2
        %v1602 = vsel %vm1008, %v1600, %v1601
        %v1603 = vrot.slane %v1365, 2
        %v1604 = vsel %vm1008, %v1601, %v1603
        %v1605 = vrot.slane %v1350, 2
        %v1606 = vrot.slane %v1267, 2
        %v1607 = vsel %vm1008, %v1605, %v1606
        %v1608 = vrot.slane %v1366, 2
        %v1609 = vsel %vm1008, %v1606, %v1608
        %v1610 = vrot.slane %v1351, 2
        %v1611 = vrot.slane %v1270, 2
        %v1612 = vsel %vm1008, %v1610, %v1611
        %v1613 = vrot.slane %v1367, 2
        %v1614 = vsel %vm1008, %v1611, %v1613
        %v1615 = vrot.slane %v1352, 2
        %v1616 = vrot.slane %v1273, 2
        %v1617 = vsel %vm1008, %v1615, %v1616
        %v1618 = vrot.slane %v1368, 2
        %v1619 = vsel %vm1008, %v1616, %v1618
        %v1620 = vrot.slane %v1353, 2
        %v1621 = vrot.slane %v1276, 2
        %v1622 = vsel %vm1008, %v1620, %v1621
        %v1623 = vrot.slane %v1369, 2
        %v1624 = vsel %vm1008, %v1621, %v1623
        %v1625 = vrot.slane %v1354, 2
        %v1626 = vrot.slane %v1279, 2
        %v1627 = vsel %vm1008, %v1625, %v1626
        %v1628 = vrot.slane %v1370, 2
        %v1629 = vsel %vm1008, %v1626, %v1628
        %v1630 = vrot.slane %v1355, 2
        %v1631 = vrot.slane %v1282, 2
        %v1632 = vsel %vm1008, %v1630, %v1631
        %v1633 = vrot.slane %v1371, 2
        %v1634 = vsel %vm1008, %v1631, %v1633
        %v1635 = vrot.slane %v1356, 2
        %v1636 = vrot.slane %v1285, 2
        %v1637 = vsel %vm1008, %v1635, %v1636
        %v1638 = vrot.slane %v1372, 2
        %v1639 = vsel %vm1008, %v1636, %v1638
        %v1640 = vrot.slane %v1357, 2
        %v1641 = vrot.slane %v1288, 2
        %v1642 = vsel %vm1008, %v1640, %v1641
        %v1643 = vrot.slane %v1373, 2
        %v1644 = vsel %vm1008, %v1641, %v1643
        %v1645 = vrot.slane %v1358, 2
        %v1646 = vrot.slane %v1291, 2
        %v1647 = vsel %vm1008, %v1645, %v1646
        %v1648 = vrot.slane %v1374, 2
        %v1649 = vsel %vm1008, %v1646, %v1648
        %v1650 = vrot.slane %v1359, 2
        %v1651 = vrot.slane %v1294, 2
        %v1652 = vsel %vm1008, %v1650, %v1651
        %v1653 = vrot.slane %v1375, 2
        %v1654 = vsel %vm1008, %v1651, %v1653
        %1655 = vrot.lane.b32.xlu0 %v1579, 8
        %v1656 = vpop.permute.xlu0 %1655
        %1657 = vrot.lane.b32.xlu0 %v1582, 8
        %v1658 = vpop.permute.xlu0 %1657
        %1659 = vrot.lane.b32.xlu0 %v1584, 8
        %v1660 = vpop.permute.xlu0 %1659
        %1661 = vrot.lane.b32.xlu0 %v1587, 8
        %v1662 = vpop.permute.xlu0 %1661
        %1663 = vrot.lane.b32.xlu0 %v1589, 8
        %v1664 = vpop.permute.xlu0 %1663
        %1665 = vrot.lane.b32.xlu0 %v1592, 8
        %v1666 = vpop.permute.xlu0 %1665
        %1667 = vrot.lane.b32.xlu0 %v1594, 8
        %v1668 = vpop.permute.xlu0 %1667
        %1669 = vrot.lane.b32.xlu0 %v1597, 8
        %v1670 = vpop.permute.xlu0 %1669
        %1671 = vrot.lane.b32.xlu0 %v1599, 8
        %v1672 = vpop.permute.xlu0 %1671
        %1673 = vrot.lane.b32.xlu0 %v1602, 8
        %v1674 = vpop.permute.xlu0 %1673
        %1675 = vrot.lane.b32.xlu0 %v1604, 8
        %v1676 = vpop.permute.xlu0 %1675
        %1677 = vrot.lane.b32.xlu0 %v1607, 8
        %v1678 = vpop.permute.xlu0 %1677
        %1679 = vrot.lane.b32.xlu0 %v1609, 8
        %v1680 = vpop.permute.xlu0 %1679
        %1681 = vrot.lane.b32.xlu0 %v1612, 8
        %v1682 = vpop.permute.xlu0 %1681
        %1683 = vrot.lane.b32.xlu0 %v1614, 8
        %v1684 = vpop.permute.xlu0 %1683
        %1685 = vrot.lane.b32.xlu0 %v1617, 8
        %v1686 = vpop.permute.xlu0 %1685
        %1687 = vrot.lane.b32.xlu0 %v1619, 8
        %v1688 = vpop.permute.xlu0 %1687
        %1689 = vrot.lane.b32.xlu0 %v1622, 8
        %v1690 = vpop.permute.xlu0 %1689
        %1691 = vrot.lane.b32.xlu0 %v1624, 8
        %v1692 = vpop.permute.xlu0 %1691
        %1693 = vrot.lane.b32.xlu0 %v1627, 8
        %v1694 = vpop.permute.xlu0 %1693
        %1695 = vrot.lane.b32.xlu0 %v1629, 8
        %v1696 = vpop.permute.xlu0 %1695
        %1697 = vrot.lane.b32.xlu0 %v1632, 8
        %v1698 = vpop.permute.xlu0 %1697
        %1699 = vrot.lane.b32.xlu0 %v1634, 8
        %v1700 = vpop.permute.xlu0 %1699
        %1701 = vrot.lane.b32.xlu0 %v1637, 8
        %v1702 = vpop.permute.xlu0 %1701
        %1703 = vrot.lane.b32.xlu0 %v1639, 8
        %v1704 = vpop.permute.xlu0 %1703
        %1705 = vrot.lane.b32.xlu0 %v1642, 8
        %v1706 = vpop.permute.xlu0 %1705
        %1707 = vrot.lane.b32.xlu0 %v1644, 8
        %v1708 = vpop.permute.xlu0 %1707
        %1709 = vrot.lane.b32.xlu0 %v1647, 8
        %v1710 = vpop.permute.xlu0 %1709
        %1711 = vrot.lane.b32.xlu0 %v1649, 8
        %v1712 = vpop.permute.xlu0 %1711
        %1713 = vrot.lane.b32.xlu0 %v1652, 8
        %v1714 = vpop.permute.xlu0 %1713
        %1715 = vrot.lane.b32.xlu0 %v1654, 8
        %v1716 = vpop.permute.xlu0 %1715
        %1749 = vrot.lane.b32.xlu0 %v1345, 12
        %v1750 = vpop.permute.xlu0 %1749
        %1751 = vrot.lane.b32.xlu0 %v1252, 12
        %v1752 = vpop.permute.xlu0 %1751
        %1753 = vrot.lane.b32.xlu0 %v1346, 12
        %v1754 = vpop.permute.xlu0 %1753
        %1755 = vrot.lane.b32.xlu0 %v1255, 12
        %v1756 = vpop.permute.xlu0 %1755
        %1757 = vrot.lane.b32.xlu0 %v1347, 12
        %v1758 = vpop.permute.xlu0 %1757
        %1759 = vrot.lane.b32.xlu0 %v1258, 12
        %v1760 = vpop.permute.xlu0 %1759
        %1761 = vrot.lane.b32.xlu0 %v1348, 12
        %v1762 = vpop.permute.xlu0 %1761
        %1763 = vrot.lane.b32.xlu0 %v1261, 12
        %v1764 = vpop.permute.xlu0 %1763
        %1765 = vrot.lane.b32.xlu0 %v1349, 12
        %v1766 = vpop.permute.xlu0 %1765
        %1767 = vrot.lane.b32.xlu0 %v1264, 12
        %v1768 = vpop.permute.xlu0 %1767
        %1769 = vrot.lane.b32.xlu0 %v1350, 12
        %v1770 = vpop.permute.xlu0 %1769
        %1771 = vrot.lane.b32.xlu0 %v1267, 12
        %v1772 = vpop.permute.xlu0 %1771
        %1773 = vrot.lane.b32.xlu0 %v1351, 12
        %v1774 = vpop.permute.xlu0 %1773
        %1775 = vrot.lane.b32.xlu0 %v1270, 12
        %v1776 = vpop.permute.xlu0 %1775
        %1777 = vrot.lane.b32.xlu0 %v1352, 12
        %v1778 = vpop.permute.xlu0 %1777
        %1779 = vrot.lane.b32.xlu0 %v1273, 12
        %v1780 = vpop.permute.xlu0 %1779
        %1781 = vrot.lane.b32.xlu0 %v1353, 12
        %v1782 = vpop.permute.xlu0 %1781
        %1783 = vrot.lane.b32.xlu0 %v1276, 12
        %v1784 = vpop.permute.xlu0 %1783
        %1785 = vrot.lane.b32.xlu0 %v1354, 12
        %v1786 = vpop.permute.xlu0 %1785
        %1787 = vrot.lane.b32.xlu0 %v1279, 12
        %v1788 = vpop.permute.xlu0 %1787
        %1789 = vrot.lane.b32.xlu0 %v1355, 12
        %v1790 = vpop.permute.xlu0 %1789
        %1791 = vrot.lane.b32.xlu0 %v1282, 12
        %v1792 = vpop.permute.xlu0 %1791
        %1793 = vrot.lane.b32.xlu0 %v1356, 12
        %v1794 = vpop.permute.xlu0 %1793
        %1795 = vrot.lane.b32.xlu0 %v1285, 12
        %v1796 = vpop.permute.xlu0 %1795
        %1797 = vrot.lane.b32.xlu0 %v1357, 12
        %v1798 = vpop.permute.xlu0 %1797
        %1799 = vrot.lane.b32.xlu0 %v1288, 12
        %v1800 = vpop.permute.xlu0 %1799
        %1801 = vrot.lane.b32.xlu0 %v1358, 12
        %v1802 = vpop.permute.xlu0 %1801
        %1803 = vrot.lane.b32.xlu0 %v1291, 12
        %v1804 = vpop.permute.xlu0 %1803
        %1805 = vrot.lane.b32.xlu0 %v1359, 12
        %v1806 = vpop.permute.xlu0 %1805
        %1807 = vrot.lane.b32.xlu0 %v1294, 12
        %v1808 = vpop.permute.xlu0 %1807
        %1809 = vrot.lane.b32.xlu0 %v1360, 12
        %v1810 = vpop.permute.xlu0 %1809
        %1811 = vrot.lane.b32.xlu0 %v1297, 12
        %v1812 = vpop.permute.xlu0 %1811
        %v1846 = vrot.slane %v1360, 1
        %v1847 = vrot.slane %v1297, 1
        %v1848 = vsel %vm863, %v1846, %v1847
        %v1849 = vrot.slane %v1376, 1
        %v1850 = vsel %vm863, %v1847, %v1849
        %1851 = vrot.lane.b32.xlu0 %v1412, 16
        %v1852 = vpop.permute.xlu0 %1851
        %1853 = vrot.lane.b32.xlu0 %v1414, 16
        %v1854 = vpop.permute.xlu0 %1853
        %1855 = vrot.lane.b32.xlu0 %v1417, 16
        %v1856 = vpop.permute.xlu0 %1855
        %1857 = vrot.lane.b32.xlu0 %v1419, 16
        %v1858 = vpop.permute.xlu0 %1857
        %1859 = vrot.lane.b32.xlu0 %v1422, 16
        %v1860 = vpop.permute.xlu0 %1859
        %1861 = vrot.lane.b32.xlu0 %v1424, 16
        %v1862 = vpop.permute.xlu0 %1861
        %1863 = vrot.lane.b32.xlu0 %v1427, 16
        %v1864 = vpop.permute.xlu0 %1863
        %1865 = vrot.lane.b32.xlu0 %v1429, 16
        %v1866 = vpop.permute.xlu0 %1865
        %1867 = vrot.lane.b32.xlu0 %v1432, 16
        %v1868 = vpop.permute.xlu0 %1867
        %1869 = vrot.lane.b32.xlu0 %v1434, 16
        %v1870 = vpop.permute.xlu0 %1869
        %1871 = vrot.lane.b32.xlu0 %v1437, 16
        %v1872 = vpop.permute.xlu0 %1871
        %1873 = vrot.lane.b32.xlu0 %v1439, 16
        %v1874 = vpop.permute.xlu0 %1873
        %1875 = vrot.lane.b32.xlu0 %v1442, 16
        %v1876 = vpop.permute.xlu0 %1875
        %1877 = vrot.lane.b32.xlu0 %v1444, 16
        %v1878 = vpop.permute.xlu0 %1877
        %1879 = vrot.lane.b32.xlu0 %v1447, 16
        %v1880 = vpop.permute.xlu0 %1879
        %1881 = vrot.lane.b32.xlu0 %v1449, 16
        %v1882 = vpop.permute.xlu0 %1881
        %1883 = vrot.lane.b32.xlu0 %v1452, 16
        %v1884 = vpop.permute.xlu0 %1883
        %1885 = vrot.lane.b32.xlu0 %v1454, 16
        %v1886 = vpop.permute.xlu0 %1885
        %1887 = vrot.lane.b32.xlu0 %v1457, 16
        %v1888 = vpop.permute.xlu0 %1887
        %1889 = vrot.lane.b32.xlu0 %v1459, 16
        %v1890 = vpop.permute.xlu0 %1889
        %1891 = vrot.lane.b32.xlu0 %v1462, 16
        %v1892 = vpop.permute.xlu0 %1891
        %1893 = vrot.lane.b32.xlu0 %v1464, 16
        %v1894 = vpop.permute.xlu0 %1893
        %1895 = vrot.lane.b32.xlu0 %v1467, 16
        %v1896 = vpop.permute.xlu0 %1895
        %1897 = vrot.lane.b32.xlu0 %v1469, 16
        %v1898 = vpop.permute.xlu0 %1897
        %1899 = vrot.lane.b32.xlu0 %v1472, 16
        %v1900 = vpop.permute.xlu0 %1899
        %1901 = vrot.lane.b32.xlu0 %v1474, 16
        %v1902 = vpop.permute.xlu0 %1901
        %1903 = vrot.lane.b32.xlu0 %v1477, 16
        %v1904 = vpop.permute.xlu0 %1903
        %1905 = vrot.lane.b32.xlu0 %v1479, 16
        %v1906 = vpop.permute.xlu0 %1905
        %1907 = vrot.lane.b32.xlu0 %v1482, 16
        %v1908 = vpop.permute.xlu0 %1907
        %1909 = vrot.lane.b32.xlu0 %v1484, 16
        %v1910 = vpop.permute.xlu0 %1909
        %1911 = vrot.lane.b32.xlu0 %v1848, 16
        %v1912 = vpop.permute.xlu0 %1911
        %1913 = vrot.lane.b32.xlu0 %v1850, 16
        %v1914 = vpop.permute.xlu0 %1913
        %v1947 = vrot.slane %v1360, 2
        %v1948 = vrot.slane %v1297, 2
        %v1949 = vsel %vm1008, %v1947, %v1948
        %v1950 = vrot.slane %v1376, 2
        %v1951 = vsel %vm1008, %v1948, %v1950
        %1952 = vrot.lane.b32.xlu0 %v1582, 20
        %v1953 = vpop.permute.xlu0 %1952
        %1954 = vrot.lane.b32.xlu0 %v1584, 20
        %v1955 = vpop.permute.xlu0 %1954
        %1956 = vrot.lane.b32.xlu0 %v1587, 20
        %v1957 = vpop.permute.xlu0 %1956
        %1958 = vrot.lane.b32.xlu0 %v1589, 20
        %v1959 = vpop.permute.xlu0 %1958
        %1960 = vrot.lane.b32.xlu0 %v1592, 20
        %v1961 = vpop.permute.xlu0 %1960
        %1962 = vrot.lane.b32.xlu0 %v1594, 20
        %v1963 = vpop.permute.xlu0 %1962
        %1964 = vrot.lane.b32.xlu0 %v1597, 20
        %v1965 = vpop.permute.xlu0 %1964
        %1966 = vrot.lane.b32.xlu0 %v1599, 20
        %v1967 = vpop.permute.xlu0 %1966
        %1968 = vrot.lane.b32.xlu0 %v1602, 20
        %v1969 = vpop.permute.xlu0 %1968
        %1970 = vrot.lane.b32.xlu0 %v1604, 20
        %v1971 = vpop.permute.xlu0 %1970
        %1972 = vrot.lane.b32.xlu0 %v1607, 20
        %v1973 = vpop.permute.xlu0 %1972
        %1974 = vrot.lane.b32.xlu0 %v1609, 20
        %v1975 = vpop.permute.xlu0 %1974
        %1976 = vrot.lane.b32.xlu0 %v1612, 20
        %v1977 = vpop.permute.xlu0 %1976
        %1978 = vrot.lane.b32.xlu0 %v1614, 20
        %v1979 = vpop.permute.xlu0 %1978
        %1980 = vrot.lane.b32.xlu0 %v1617, 20
        %v1981 = vpop.permute.xlu0 %1980
        %1982 = vrot.lane.b32.xlu0 %v1619, 20
        %v1983 = vpop.permute.xlu0 %1982
        %1984 = vrot.lane.b32.xlu0 %v1622, 20
        %v1985 = vpop.permute.xlu0 %1984
        %1986 = vrot.lane.b32.xlu0 %v1624, 20
        %v1987 = vpop.permute.xlu0 %1986
        %1988 = vrot.lane.b32.xlu0 %v1627, 20
        %v1989 = vpop.permute.xlu0 %1988
        %1990 = vrot.lane.b32.xlu0 %v1629, 20
        %v1991 = vpop.permute.xlu0 %1990
        %1992 = vrot.lane.b32.xlu0 %v1632, 20
        %v1993 = vpop.permute.xlu0 %1992
        %1994 = vrot.lane.b32.xlu0 %v1634, 20
        %v1995 = vpop.permute.xlu0 %1994
        %1996 = vrot.lane.b32.xlu0 %v1637, 20
        %v1997 = vpop.permute.xlu0 %1996
        %1998 = vrot.lane.b32.xlu0 %v1639, 20
        %v1999 = vpop.permute.xlu0 %1998
        %2000 = vrot.lane.b32.xlu0 %v1642, 20
        %v2001 = vpop.permute.xlu0 %2000
        %2002 = vrot.lane.b32.xlu0 %v1644, 20
        %v2003 = vpop.permute.xlu0 %2002
        %2004 = vrot.lane.b32.xlu0 %v1647, 20
        %v2005 = vpop.permute.xlu0 %2004
        %2006 = vrot.lane.b32.xlu0 %v1649, 20
        %v2007 = vpop.permute.xlu0 %2006
        %2008 = vrot.lane.b32.xlu0 %v1652, 20
        %v2009 = vpop.permute.xlu0 %2008
        %2010 = vrot.lane.b32.xlu0 %v1654, 20
        %v2011 = vpop.permute.xlu0 %2010
        %2012 = vrot.lane.b32.xlu0 %v1949, 20
        %v2013 = vpop.permute.xlu0 %2012
        %2014 = vrot.lane.b32.xlu0 %v1951, 20
        %v2015 = vpop.permute.xlu0 %2014
        %2048 = vrot.lane.b32.xlu0 %v1346, 24
        %v2049 = vpop.permute.xlu0 %2048
        %2050 = vrot.lane.b32.xlu0 %v1255, 24
        %v2051 = vpop.permute.xlu0 %2050
        %2052 = vrot.lane.b32.xlu0 %v1347, 24
        %v2053 = vpop.permute.xlu0 %2052
        %2054 = vrot.lane.b32.xlu0 %v1258, 24
        %v2055 = vpop.permute.xlu0 %2054
        %2056 = vrot.lane.b32.xlu0 %v1348, 24
        %v2057 = vpop.permute.xlu0 %2056
        %2058 = vrot.lane.b32.xlu0 %v1261, 24
        %v2059 = vpop.permute.xlu0 %2058
        %2060 = vrot.lane.b32.xlu0 %v1349, 24
        %v2061 = vpop.permute.xlu0 %2060
        %2062 = vrot.lane.b32.xlu0 %v1264, 24
        %v2063 = vpop.permute.xlu0 %2062
        %2064 = vrot.lane.b32.xlu0 %v1350, 24
        %v2065 = vpop.permute.xlu0 %2064
        %2066 = vrot.lane.b32.xlu0 %v1267, 24
        %v2067 = vpop.permute.xlu0 %2066
        %2068 = vrot.lane.b32.xlu0 %v1351, 24
        %v2069 = vpop.permute.xlu0 %2068
        %2070 = vrot.lane.b32.xlu0 %v1270, 24
        %v2071 = vpop.permute.xlu0 %2070
        %2072 = vrot.lane.b32.xlu0 %v1352, 24
        %v2073 = vpop.permute.xlu0 %2072
        %2074 = vrot.lane.b32.xlu0 %v1273, 24
        %v2075 = vpop.permute.xlu0 %2074
        %2076 = vrot.lane.b32.xlu0 %v1353, 24
        %v2077 = vpop.permute.xlu0 %2076
        %2078 = vrot.lane.b32.xlu0 %v1276, 24
        %v2079 = vpop.permute.xlu0 %2078
        %2080 = vrot.lane.b32.xlu0 %v1354, 24
        %v2081 = vpop.permute.xlu0 %2080
        %2082 = vrot.lane.b32.xlu0 %v1279, 24
        %v2083 = vpop.permute.xlu0 %2082
        %2084 = vrot.lane.b32.xlu0 %v1355, 24
        %v2085 = vpop.permute.xlu0 %2084
        %2086 = vrot.lane.b32.xlu0 %v1282, 24
        %v2087 = vpop.permute.xlu0 %2086
        %2088 = vrot.lane.b32.xlu0 %v1356, 24
        %v2089 = vpop.permute.xlu0 %2088
        %2090 = vrot.lane.b32.xlu0 %v1285, 24
        %v2091 = vpop.permute.xlu0 %2090
        %2092 = vrot.lane.b32.xlu0 %v1357, 24
        %v2093 = vpop.permute.xlu0 %2092
        %2094 = vrot.lane.b32.xlu0 %v1288, 24
        %v2095 = vpop.permute.xlu0 %2094
        %2096 = vrot.lane.b32.xlu0 %v1358, 24
        %v2097 = vpop.permute.xlu0 %2096
        %2098 = vrot.lane.b32.xlu0 %v1291, 24
        %v2099 = vpop.permute.xlu0 %2098
        %2100 = vrot.lane.b32.xlu0 %v1359, 24
        %v2101 = vpop.permute.xlu0 %2100
        %2102 = vrot.lane.b32.xlu0 %v1294, 24
        %v2103 = vpop.permute.xlu0 %2102
        %2104 = vrot.lane.b32.xlu0 %v1360, 24
        %v2105 = vpop.permute.xlu0 %2104
        %2106 = vrot.lane.b32.xlu0 %v1297, 24
        %v2107 = vpop.permute.xlu0 %2106
        %2108 = vrot.lane.b32.xlu0 0.0, 24
        %v2109 = vpop.permute.xlu0 %2108
        %2141 = vrot.lane.b32.xlu0 %v1417, 28
        %v2142 = vpop.permute.xlu0 %2141
        %2143 = vrot.lane.b32.xlu0 %v1419, 28
        %v2144 = vpop.permute.xlu0 %2143
        %2145 = vrot.lane.b32.xlu0 %v1422, 28
        %v2146 = vpop.permute.xlu0 %2145
        %2147 = vrot.lane.b32.xlu0 %v1424, 28
        %v2148 = vpop.permute.xlu0 %2147
        %2149 = vrot.lane.b32.xlu0 %v1427, 28
        %v2150 = vpop.permute.xlu0 %2149
        %2151 = vrot.lane.b32.xlu0 %v1429, 28
        %v2152 = vpop.permute.xlu0 %2151
        %2153 = vrot.lane.b32.xlu0 %v1432, 28
        %v2154 = vpop.permute.xlu0 %2153
        %2155 = vrot.lane.b32.xlu0 %v1434, 28
        %v2156 = vpop.permute.xlu0 %2155
        %2157 = vrot.lane.b32.xlu0 %v1437, 28
        %v2158 = vpop.permute.xlu0 %2157
        %2159 = vrot.lane.b32.xlu0 %v1439, 28
        %v2160 = vpop.permute.xlu0 %2159
        %2161 = vrot.lane.b32.xlu0 %v1442, 28
        %v2162 = vpop.permute.xlu0 %2161
        %2163 = vrot.lane.b32.xlu0 %v1444, 28
        %v2164 = vpop.permute.xlu0 %2163
        %2165 = vrot.lane.b32.xlu0 %v1447, 28
        %v2166 = vpop.permute.xlu0 %2165
        %2167 = vrot.lane.b32.xlu0 %v1449, 28
        %v2168 = vpop.permute.xlu0 %2167
        %2169 = vrot.lane.b32.xlu0 %v1452, 28
        %v2170 = vpop.permute.xlu0 %2169
        %2171 = vrot.lane.b32.xlu0 %v1454, 28
        %v2172 = vpop.permute.xlu0 %2171
        %2173 = vrot.lane.b32.xlu0 %v1457, 28
        %v2174 = vpop.permute.xlu0 %2173
        %2175 = vrot.lane.b32.xlu0 %v1459, 28
        %v2176 = vpop.permute.xlu0 %2175
        %2177 = vrot.lane.b32.xlu0 %v1462, 28
        %v2178 = vpop.permute.xlu0 %2177
        %2179 = vrot.lane.b32.xlu0 %v1464, 28
        %v2180 = vpop.permute.xlu0 %2179
        %2181 = vrot.lane.b32.xlu0 %v1467, 28
        %v2182 = vpop.permute.xlu0 %2181
        %2183 = vrot.lane.b32.xlu0 %v1469, 28
        %v2184 = vpop.permute.xlu0 %2183
        %2185 = vrot.lane.b32.xlu0 %v1472, 28
        %v2186 = vpop.permute.xlu0 %2185
        %2187 = vrot.lane.b32.xlu0 %v1474, 28
        %v2188 = vpop.permute.xlu0 %2187
        %2189 = vrot.lane.b32.xlu0 %v1477, 28
        %v2190 = vpop.permute.xlu0 %2189
        %2191 = vrot.lane.b32.xlu0 %v1479, 28
        %v2192 = vpop.permute.xlu0 %2191
        %2193 = vrot.lane.b32.xlu0 %v1482, 28
        %v2194 = vpop.permute.xlu0 %2193
        %2195 = vrot.lane.b32.xlu0 %v1484, 28
        %v2196 = vpop.permute.xlu0 %2195
        %2197 = vrot.lane.b32.xlu0 %v1848, 28
        %v2198 = vpop.permute.xlu0 %2197
        %2199 = vrot.lane.b32.xlu0 %v1850, 28
        %v2200 = vpop.permute.xlu0 %2199
        %2201 = vrot.lane.b32.xlu0 %v1409, 28
        %v2202 = vpop.permute.xlu0 %2201
        %2234 = vrot.lane.b32.xlu0 %v1587, 32
        %v2235 = vpop.permute.xlu0 %2234
        %2236 = vrot.lane.b32.xlu0 %v1589, 32
        %v2237 = vpop.permute.xlu0 %2236
        %2238 = vrot.lane.b32.xlu0 %v1592, 32
        %v2239 = vpop.permute.xlu0 %2238
        %2240 = vrot.lane.b32.xlu0 %v1594, 32
        %v2241 = vpop.permute.xlu0 %2240
        %2242 = vrot.lane.b32.xlu0 %v1597, 32
        %v2243 = vpop.permute.xlu0 %2242
        %2244 = vrot.lane.b32.xlu0 %v1599, 32
        %v2245 = vpop.permute.xlu0 %2244
        %2246 = vrot.lane.b32.xlu0 %v1602, 32
        %v2247 = vpop.permute.xlu0 %2246
        %2248 = vrot.lane.b32.xlu0 %v1604, 32
        %v2249 = vpop.permute.xlu0 %2248
        %2250 = vrot.lane.b32.xlu0 %v1607, 32
        %v2251 = vpop.permute.xlu0 %2250
        %2252 = vrot.lane.b32.xlu0 %v1609, 32
        %v2253 = vpop.permute.xlu0 %2252
        %2254 = vrot.lane.b32.xlu0 %v1612, 32
        %v2255 = vpop.permute.xlu0 %2254
        %2256 = vrot.lane.b32.xlu0 %v1614, 32
        %v2257 = vpop.permute.xlu0 %2256
        %2258 = vrot.lane.b32.xlu0 %v1617, 32
        %v2259 = vpop.permute.xlu0 %2258
        %2260 = vrot.lane.b32.xlu0 %v1619, 32
        %v2261 = vpop.permute.xlu0 %2260
        %2262 = vrot.lane.b32.xlu0 %v1622, 32
        %v2263 = vpop.permute.xlu0 %2262
        %2264 = vrot.lane.b32.xlu0 %v1624, 32
        %v2265 = vpop.permute.xlu0 %2264
        %2266 = vrot.lane.b32.xlu0 %v1627, 32
        %v2267 = vpop.permute.xlu0 %2266
        %2268 = vrot.lane.b32.xlu0 %v1629, 32
        %v2269 = vpop.permute.xlu0 %2268
        %2270 = vrot.lane.b32.xlu0 %v1632, 32
        %v2271 = vpop.permute.xlu0 %2270
        %2272 = vrot.lane.b32.xlu0 %v1634, 32
        %v2273 = vpop.permute.xlu0 %2272
        %2274 = vrot.lane.b32.xlu0 %v1637, 32
        %v2275 = vpop.permute.xlu0 %2274
        %2276 = vrot.lane.b32.xlu0 %v1639, 32
        %v2277 = vpop.permute.xlu0 %2276
        %2278 = vrot.lane.b32.xlu0 %v1642, 32
        %v2279 = vpop.permute.xlu0 %2278
        %2280 = vrot.lane.b32.xlu0 %v1644, 32
        %v2281 = vpop.permute.xlu0 %2280
        %2282 = vrot.lane.b32.xlu0 %v1647, 32
        %v2283 = vpop.permute.xlu0 %2282
        %2284 = vrot.lane.b32.xlu0 %v1649, 32
        %v2285 = vpop.permute.xlu0 %2284
        %2286 = vrot.lane.b32.xlu0 %v1652, 32
        %v2287 = vpop.permute.xlu0 %2286
        %2288 = vrot.lane.b32.xlu0 %v1654, 32
        %v2289 = vpop.permute.xlu0 %2288
        %2290 = vrot.lane.b32.xlu0 %v1949, 32
        %v2291 = vpop.permute.xlu0 %2290
        %2292 = vrot.lane.b32.xlu0 %v1951, 32
        %v2293 = vpop.permute.xlu0 %2292
        %2294 = vrot.lane.b32.xlu0 %v1579, 32
        %v2295 = vpop.permute.xlu0 %2294
        %v2327 = vsel %vm344, 0.0, %v1486
        %v2328 = vsel %vm344, %v1345, %v1488
        %v2329 = vsel %vm344, %v1252, %v1490
        %v2330 = vsel %vm344, %v1346, %v1492
        %v2331 = vsel %vm344, %v1255, %v1494
        %v2332 = vsel %vm344, %v1347, %v1496
        %v2333 = vsel %vm344, %v1258, %v1498
        %v2334 = vsel %vm344, %v1348, %v1500
        %v2335 = vsel %vm344, %v1261, %v1502
        %v2336 = vsel %vm344, %v1349, %v1504
        %v2337 = vsel %vm344, %v1264, %v1506
        %v2338 = vsel %vm344, %v1350, %v1508
        %v2339 = vsel %vm344, %v1267, %v1510
        %v2340 = vsel %vm344, %v1351, %v1512
        %v2341 = vsel %vm344, %v1270, %v1514
        %v2342 = vsel %vm344, %v1352, %v1516
        %v2343 = vsel %vm344, %v1273, %v1518
        %v2344 = vsel %vm344, %v1353, %v1520
        %v2345 = vsel %vm344, %v1276, %v1522
        %v2346 = vsel %vm344, %v1354, %v1524
        %v2347 = vsel %vm344, %v1279, %v1526
        %v2348 = vsel %vm344, %v1355, %v1528
        %v2349 = vsel %vm344, %v1282, %v1530
        %v2350 = vsel %vm344, %v1356, %v1532
        %v2351 = vsel %vm344, %v1285, %v1534
        %v2352 = vsel %vm344, %v1357, %v1536
        %v2353 = vsel %vm344, %v1288, %v1538
        %v2354 = vsel %vm344, %v1358, %v1540
        %v2355 = vsel %vm344, %v1291, %v1542
        %v2356 = vsel %vm344, %v1359, %v1544
        %v2357 = vsel %vm344, %v1294, %v1546
        %vm2358 = vcmask 64512
        %v2359 = vsel %vm2358, %v2327, %v1656
        %v2360 = vsel %vm2358, %v2328, %v1658
        %v2361 = vsel %vm2358, %v2329, %v1660
        %v2362 = vsel %vm2358, %v2330, %v1662
        %v2363 = vsel %vm2358, %v2331, %v1664
        %v2364 = vsel %vm2358, %v2332, %v1666
        %v2365 = vsel %vm2358, %v2333, %v1668
        %v2366 = vsel %vm2358, %v2334, %v1670
        %v2367 = vsel %vm2358, %v2335, %v1672
        %v2368 = vsel %vm2358, %v2336, %v1674
        %v2369 = vsel %vm2358, %v2337, %v1676
        %v2370 = vsel %vm2358, %v2338, %v1678
        %v2371 = vsel %vm2358, %v2339, %v1680
        %v2372 = vsel %vm2358, %v2340, %v1682
        %v2373 = vsel %vm2358, %v2341, %v1684
        %v2374 = vsel %vm2358, %v2342, %v1686
        %v2375 = vsel %vm2358, %v2343, %v1688
        %v2376 = vsel %vm2358, %v2344, %v1690
        %v2377 = vsel %vm2358, %v2345, %v1692
        %v2378 = vsel %vm2358, %v2346, %v1694
        %v2379 = vsel %vm2358, %v2347, %v1696
        %v2380 = vsel %vm2358, %v2348, %v1698
        %v2381 = vsel %vm2358, %v2349, %v1700
        %v2382 = vsel %vm2358, %v2350, %v1702
        %v2383 = vsel %vm2358, %v2351, %v1704
        %v2384 = vsel %vm2358, %v2352, %v1706
        %v2385 = vsel %vm2358, %v2353, %v1708
        %v2386 = vsel %vm2358, %v2354, %v1710
        %v2387 = vsel %vm2358, %v2355, %v1712
        %v2388 = vsel %vm2358, %v2356, %v1714
        %v2389 = vsel %vm2358, %v2357, %v1716
        %vm2390 = vcmask 97280
        %v2391 = vsel %vm2390, %v2359, %v1750
        %v2392 = vsel %vm2390, %v2359, %v1752
        %v2393 = vsel %vm2390, %v2360, %v1754
        %v2394 = vsel %vm2390, %v2361, %v1756
        %v2395 = vsel %vm2390, %v2362, %v1758
        %v2396 = vsel %vm2390, %v2363, %v1760
        %v2397 = vsel %vm2390, %v2364, %v1762
        %v2398 = vsel %vm2390, %v2365, %v1764
        %v2399 = vsel %vm2390, %v2366, %v1766
        %v2400 = vsel %vm2390, %v2367, %v1768
        %v2401 = vsel %vm2390, %v2368, %v1770
        %v2402 = vsel %vm2390, %v2369, %v1772
        %v2403 = vsel %vm2390, %v2370, %v1774
        %v2404 = vsel %vm2390, %v2371, %v1776
        %v2405 = vsel %vm2390, %v2372, %v1778
        %v2406 = vsel %vm2390, %v2373, %v1780
        %v2407 = vsel %vm2390, %v2374, %v1782
        %v2408 = vsel %vm2390, %v2375, %v1784
        %v2409 = vsel %vm2390, %v2376, %v1786
        %v2410 = vsel %vm2390, %v2377, %v1788
        %v2411 = vsel %vm2390, %v2378, %v1790
        %v2412 = vsel %vm2390, %v2379, %v1792
        %v2413 = vsel %vm2390, %v2380, %v1794
        %v2414 = vsel %vm2390, %v2381, %v1796
        %v2415 = vsel %vm2390, %v2382, %v1798
        %v2416 = vsel %vm2390, %v2383, %v1800
        %v2417 = vsel %vm2390, %v2384, %v1802
        %v2418 = vsel %vm2390, %v2385, %v1804
        %v2419 = vsel %vm2390, %v2386, %v1806
        %v2420 = vsel %vm2390, %v2387, %v1808
        %v2421 = vsel %vm2390, %v2388, %v1810
        %v2422 = vsel %vm2390, %v2389, %v1812
        %vm2423 = vcmask 130048
        %v2424 = vsel %vm2423, %v2391, %v1852
        %v2425 = vsel %vm2423, %v2392, %v1854
        %v2426 = vsel %vm2423, %v2393, %v1856
        %v2427 = vsel %vm2423, %v2394, %v1858
        %v2428 = vsel %vm2423, %v2395, %v1860
        %v2429 = vsel %vm2423, %v2396, %v1862
        %v2430 = vsel %vm2423, %v2397, %v1864
        %v2431 = vsel %vm2423, %v2398, %v1866
        %v2432 = vsel %vm2423, %v2399, %v1868
        %v2433 = vsel %vm2423, %v2400, %v1870
        %v2434 = vsel %vm2423, %v2401, %v1872
        %v2435 = vsel %vm2423, %v2402, %v1874
        %v2436 = vsel %vm2423, %v2403, %v1876
        %v2437 = vsel %vm2423, %v2404, %v1878
        %v2438 = vsel %vm2423, %v2405, %v1880
        %v2439 = vsel %vm2423, %v2406, %v1882
        %v2440 = vsel %vm2423, %v2407, %v1884
        %v2441 = vsel %vm2423, %v2408, %v1886
        %v2442 = vsel %vm2423, %v2409, %v1888
        %v2443 = vsel %vm2423, %v2410, %v1890
        %v2444 = vsel %vm2423, %v2411, %v1892
        %v2445 = vsel %vm2423, %v2412, %v1894
        %v2446 = vsel %vm2423, %v2413, %v1896
        %v2447 = vsel %vm2423, %v2414, %v1898
        %v2448 = vsel %vm2423, %v2415, %v1900
        %v2449 = vsel %vm2423, %v2416, %v1902
        %v2450 = vsel %vm2423, %v2417, %v1904
        %v2451 = vsel %vm2423, %v2418, %v1906
        %v2452 = vsel %vm2423, %v2419, %v1908
        %v2453 = vsel %vm2423, %v2420, %v1910
        %v2454 = vsel %vm2423, %v2421, %v1912
        %v2455 = vsel %vm2423, %v2422, %v1914
        %vm2456 = vcmask 162816
        %v2457 = vsel %vm2456, %v2424, %v1953
        %v2458 = vsel %vm2456, %v2425, %v1955
        %v2459 = vsel %vm2456, %v2426, %v1957
        %v2460 = vsel %vm2456, %v2427, %v1959
        %v2461 = vsel %vm2456, %v2428, %v1961
        %v2462 = vsel %vm2456, %v2429, %v1963
        %v2463 = vsel %vm2456, %v2430, %v1965
        %v2464 = vsel %vm2456, %v2431, %v1967
        %v2465 = vsel %vm2456, %v2432, %v1969
        %v2466 = vsel %vm2456, %v2433, %v1971
        %v2467 = vsel %vm2456, %v2434, %v1973
        %v2468 = vsel %vm2456, %v2435, %v1975
        %v2469 = vsel %vm2456, %v2436, %v1977
        %v2470 = vsel %vm2456, %v2437, %v1979
        %v2471 = vsel %vm2456, %v2438, %v1981
        %v2472 = vsel %vm2456, %v2439, %v1983
        %v2473 = vsel %vm2456, %v2440, %v1985
        %v2474 = vsel %vm2456, %v2441, %v1987
        %v2475 = vsel %vm2456, %v2442, %v1989
        %v2476 = vsel %vm2456, %v2443, %v1991
        %v2477 = vsel %vm2456, %v2444, %v1993
        %v2478 = vsel %vm2456, %v2445, %v1995
        %v2479 = vsel %vm2456, %v2446, %v1997
        %v2480 = vsel %vm2456, %v2447, %v1999
        %v2481 = vsel %vm2456, %v2448, %v2001
        %v2482 = vsel %vm2456, %v2449, %v2003
        %v2483 = vsel %vm2456, %v2450, %v2005
        %v2484 = vsel %vm2456, %v2451, %v2007
        %v2485 = vsel %vm2456, %v2452, %v2009
        %v2486 = vsel %vm2456, %v2453, %v2011
        %v2487 = vsel %vm2456, %v2454, %v2013
        %v2488 = vsel %vm2456, %v2455, %v2015
        %vm2489 = vcmask 195584
        %v2490 = vsel %vm2489, %v2457, %v2049
        %v2491 = vsel %vm2489, %v2458, %v2051
        %v2492 = vsel %vm2489, %v2459, %v2053
        %v2493 = vsel %vm2489, %v2460, %v2055
        %v2494 = vsel %vm2489, %v2461, %v2057
        %v2495 = vsel %vm2489, %v2462, %v2059
        %v2496 = vsel %vm2489, %v2463, %v2061
        %v2497 = vsel %vm2489, %v2464, %v2063
        %v2498 = vsel %vm2489, %v2465, %v2065
        %v2499 = vsel %vm2489, %v2466, %v2067
        %v2500 = vsel %vm2489, %v2467, %v2069
        %v2501 = vsel %vm2489, %v2468, %v2071
        %v2502 = vsel %vm2489, %v2469, %v2073
        %v2503 = vsel %vm2489, %v2470, %v2075
        %v2504 = vsel %vm2489, %v2471, %v2077
        %v2505 = vsel %vm2489, %v2472, %v2079
        %v2506 = vsel %vm2489, %v2473, %v2081
        %v2507 = vsel %vm2489, %v2474, %v2083
        %v2508 = vsel %vm2489, %v2475, %v2085
        %v2509 = vsel %vm2489, %v2476, %v2087
        %v2510 = vsel %vm2489, %v2477, %v2089
        %v2511 = vsel %vm2489, %v2478, %v2091
        %v2512 = vsel %vm2489, %v2479, %v2093
        %v2513 = vsel %vm2489, %v2480, %v2095
        %v2514 = vsel %vm2489, %v2481, %v2097
        %v2515 = vsel %vm2489, %v2482, %v2099
        %v2516 = vsel %vm2489, %v2483, %v2101
        %v2517 = vsel %vm2489, %v2484, %v2103
        %v2518 = vsel %vm2489, %v2485, %v2105
        %v2519 = vsel %vm2489, %v2486, %v2107
        %v2520 = vsel %vm2489, %v2487, %v2109
        %v2521 = vsel %vm2489, %v2488, %v2109
        %vm2522 = vcmask 228352
        %v2523 = vsel %vm2522, %v2490, %v2142
        %v2524 = vsel %vm2522, %v2491, %v2144
        %v2525 = vsel %vm2522, %v2492, %v2146
        %v2526 = vsel %vm2522, %v2493, %v2148
        %v2527 = vsel %vm2522, %v2494, %v2150
        %v2528 = vsel %vm2522, %v2495, %v2152
        %v2529 = vsel %vm2522, %v2496, %v2154
        %v2530 = vsel %vm2522, %v2497, %v2156
        %v2531 = vsel %vm2522, %v2498, %v2158
        %v2532 = vsel %vm2522, %v2499, %v2160
        %v2533 = vsel %vm2522, %v2500, %v2162
        %v2534 = vsel %vm2522, %v2501, %v2164
        %v2535 = vsel %vm2522, %v2502, %v2166
        %v2536 = vsel %vm2522, %v2503, %v2168
        %v2537 = vsel %vm2522, %v2504, %v2170
        %v2538 = vsel %vm2522, %v2505, %v2172
        %v2539 = vsel %vm2522, %v2506, %v2174
        %v2540 = vsel %vm2522, %v2507, %v2176
        %v2541 = vsel %vm2522, %v2508, %v2178
        %v2542 = vsel %vm2522, %v2509, %v2180
        %v2543 = vsel %vm2522, %v2510, %v2182
        %v2544 = vsel %vm2522, %v2511, %v2184
        %v2545 = vsel %vm2522, %v2512, %v2186
        %v2546 = vsel %vm2522, %v2513, %v2188
        %v2547 = vsel %vm2522, %v2514, %v2190
        %v2548 = vsel %vm2522, %v2515, %v2192
        %v2549 = vsel %vm2522, %v2516, %v2194
        %v2550 = vsel %vm2522, %v2517, %v2196
        %v2551 = vsel %vm2522, %v2518, %v2198
        %v2552 = vsel %vm2522, %v2519, %v2200
        %v2553 = vsel %vm2522, %v2520, %v2202
        %v2554 = vsel %vm2522, %v2521, %v2202
        %vm2555 = vcmask 261120
        %v2556 = vsel %vm2555, %v2523, %v2235
        %v2557 = vsel %vm2555, %v2524, %v2237
        %v2558 = vsel %vm2555, %v2525, %v2239
        %v2559 = vsel %vm2555, %v2526, %v2241
        %v2560 = vsel %vm2555, %v2527, %v2243
        %v2561 = vsel %vm2555, %v2528, %v2245
        %v2562 = vsel %vm2555, %v2529, %v2247
        %v2563 = vsel %vm2555, %v2530, %v2249
        %v2564 = vsel %vm2555, %v2531, %v2251
        %v2565 = vsel %vm2555, %v2532, %v2253
        %v2566 = vsel %vm2555, %v2533, %v2255
        %v2567 = vsel %vm2555, %v2534, %v2257
        %v2568 = vsel %vm2555, %v2535, %v2259
        %v2569 = vsel %vm2555, %v2536, %v2261
        %v2570 = vsel %vm2555, %v2537, %v2263
        %v2571 = vsel %vm2555, %v2538, %v2265
        %v2572 = vsel %vm2555, %v2539, %v2267
        %v2573 = vsel %vm2555, %v2540, %v2269
        %v2574 = vsel %vm2555, %v2541, %v2271
        %v2575 = vsel %vm2555, %v2542, %v2273
        %v2576 = vsel %vm2555, %v2543, %v2275
        %v2577 = vsel %vm2555, %v2544, %v2277
        %v2578 = vsel %vm2555, %v2545, %v2279
        %v2579 = vsel %vm2555, %v2546, %v2281
        %v2580 = vsel %vm2555, %v2547, %v2283
        %v2581 = vsel %vm2555, %v2548, %v2285
        %v2582 = vsel %vm2555, %v2549, %v2287
        %v2583 = vsel %vm2555, %v2550, %v2289
        %v2584 = vsel %vm2555, %v2551, %v2291
        %v2585 = vsel %vm2555, %v2552, %v2293
        %v2586 = vsel %vm2555, %v2553, %v2295
        %v2587 = vsel %vm2555, %v2554, %v2295
        %v2588 = vld [vmem:[%s4] sm:$0xff]
        %v2589 = vld [vmem:[%s4 + $0x8] sm:$0xff]
        %v2590 = vld [vmem:[%s4 + $0x10] sm:$0xff]
        %v2591 = vld [vmem:[%s4 + $0x18] sm:$0xff]
        %v2592 = vld [vmem:[%s4 + $0x20] sm:$0xf]
        %vm2593 = vcmask 293888
        %v2595 = vsel %vm2593, %v2556, 0
        %v2598 = vsel %vm2593, %v2557, 0
        %v2601 = vsel %vm2593, %v2558, 0
        %v2604 = vsel %vm2593, %v2559, 0
        %v2607 = vsel %vm2593, %v2560, 0
        %v2610 = vsel %vm2593, %v2561, 0
        %v2613 = vsel %vm2593, %v2562, 0
        %v2616 = vsel %vm2593, %v2563, 0
        %v2619 = vsel %vm2593, %v2564, 0
        %v2622 = vsel %vm2593, %v2565, 0
        %v2625 = vsel %vm2593, %v2566, 0
        %v2628 = vsel %vm2593, %v2567, 0
        %v2631 = vsel %vm2593, %v2568, 0
        %v2634 = vsel %vm2593, %v2569, 0
        %v2637 = vsel %vm2593, %v2570, 0
        %v2640 = vsel %vm2593, %v2571, 0
        %v2643 = vsel %vm2593, %v2572, 0
        %v2646 = vsel %vm2593, %v2573, 0
        %v2649 = vsel %vm2593, %v2574, 0
        %v2652 = vsel %vm2593, %v2575, 0
        %v2655 = vsel %vm2593, %v2576, 0
        %v2658 = vsel %vm2593, %v2577, 0
        %v2661 = vsel %vm2593, %v2578, 0
        %v2664 = vsel %vm2593, %v2579, 0
        %v2667 = vsel %vm2593, %v2580, 0
        %v2670 = vsel %vm2593, %v2581, 0
        %v2673 = vsel %vm2593, %v2582, 0
        %v2676 = vsel %vm2593, %v2583, 0
        %v2679 = vsel %vm2593, %v2584, 0
        %v2682 = vsel %vm2593, %v2585, 0
        %v2685 = vsel %vm2593, %v2586, 0
        %v2688 = vsel %vm2593, %v2587, 0
        %v2691 = vsel %vm441, %v2592, 0
        %2693 = vmatprep.subr.mxu0 0.0
        %2694 = vmatpush1.msra.mxu0 %v2588
        %2695 = vmatprep.subr.mxu0 0.0
        %2696 = vmatpush1.msra.mxu0 %v2589
        %2697 = vmatprep.subr.mxu0 0.0
        %2698 = vmatpush1.msra.mxu0 %v2590
        %2699 = vmatprep.subr.mxu0 0.0
        %2700 = vmatpush1.msra.mxu0 %v2591
        %2701 = vmatprep.subr.mxu0 0.0
        %2702 = vmatpush1.msra.mxu0 %v2691
        %2703 = vmatprep.subr.mxu0 0.0
        %2704 = vmatpush1.msra.mxu0 0.0
        %2705 = vmatprep.subr.mxu0 0.0
        %2706 = vmatpush1.msra.mxu0 0.0
        %2707 = vmatprep.subr.mxu0 0.0
        %2708 = vmatpush1.msra.mxu0 0.0
        %2709 = vmatprep.subr.mxu0 0.0
        %2710 = vmatpush1.msra.mxu0 0.0
        %2711 = vmatprep.subr.mxu0 0.0
        %2712 = vmatpush1.msra.mxu0 0.0
        %2713 = vmatprep.subr.mxu0 0.0
        %2714 = vmatpush1.msra.mxu0 0.0
        %2715 = vmatprep.subr.mxu0 0.0
        %2716 = vmatpush1.msra.mxu0 0.0
        %2717 = vmatprep.subr.mxu0 0.0
        %2718 = vmatpush1.msra.mxu0 0.0
        %2719 = vmatprep.subr.mxu0 0.0
        %2720 = vmatpush1.msra.mxu0 0.0
        %2721 = vmatprep.subr.mxu0 0.0
        %2722 = vmatpush1.msra.mxu0 0.0
        %2723 = vmatprep.subr.mxu0 0.0
        %2724 = vmatpush1.msra.mxu0 0.0
        %2725 = vmatprep.subr.mxu0 0.0
        %2726 = vmatpush1.msra.mxu0 0.0
        %2727 = vmatprep.subr.mxu0 0.0
        %2728 = vmatpush1.msra.mxu0 0.0
        %2729 = vmatprep.subr.mxu0 0.0
        %2730 = vmatpush1.msra.mxu0 0.0
        %2731 = vmatprep.subr.mxu0 0.0
        %2732 = vmatpush1.msra.mxu0 0.0
        %2733 = vmatprep.subr.mxu0 0.0
        %2734 = vmatpush1.msra.mxu0 0.0
        %2735 = vmatprep.subr.mxu0 0.0
        %2736 = vmatpush1.msra.mxu0 0.0
        %2737 = vmatprep.subr.mxu0 0.0
        %2738 = vmatpush1.msra.mxu0 0.0
        %2739 = vmatprep.subr.mxu0 0.0
        %2740 = vmatpush1.msra.mxu0 0.0
        %2741 = vmatprep.subr.mxu0 0.0
        %2742 = vmatpush1.msra.mxu0 0.0
        %2743 = vmatprep.subr.mxu0 0.0
        %2744 = vmatpush1.msra.mxu0 0.0
        %2745 = vmatprep.subr.mxu0 0.0
        %2746 = vmatpush1.msra.mxu0 0.0
        %2747 = vmatprep.subr.mxu0 0.0
        %2748 = vmatpush1.msra.mxu0 0.0
        %2749 = vmatprep.subr.mxu0 0.0
        %2750 = vmatpush1.msra.mxu0 0.0
        %2751 = vmatprep.subr.mxu0 0.0
        %2752 = vmatpush1.msra.mxu0 0.0
        %2753 = vmatprep.subr.mxu0 0.0
        %2754 = vmatpush1.msra.mxu0 0.0
        %2755 = vmatprep.subr.mxu0 0.0
        %2756 = vmatpush1.msra.mxu0 0.0
        %2757 = vmatprep.mubr.f32.mxu0 0.0
        %2758 = vmatmul.mubr.f32.gmra.mrb[0].mxu0 %v2595
        %v2759 = vpop.f32.mrb[0].mxu0
        %v2760 = vadd.f32 0.0, %v2759
        %v2761 = vpop.f32.mrb[0].mxu0
        %2762 = vmatprep.mubr.f32.mxu0 0.0
        %2763 = vmatmul.mubr.f32.gmra.mrb[0].mxu0 %v2598
        %v2764 = vpop.f32.mrb[0].mxu0
        %v2765 = vadd.f32 0.0, %v2764
        %v2766 = vpop.f32.mrb[0].mxu0
        %2767 = vmatprep.mubr.f32.mxu0 0.0
        %2768 = vmatmul.mubr.f32.gmra.mrb[0].mxu0 %v2601
        %v2769 = vpop.f32.mrb[0].mxu0
        %v2770 = vadd.f32 0.0, %v2769
        %v2771 = vpop.f32.mrb[0].mxu0
        %2772 = vmatprep.mubr.f32.mxu0 0.0
        %2773 = vmatmul.mubr.f32.gmra.mrb[0].mxu0 %v2604
        %v2774 = vpop.f32.mrb[0].mxu0
        %v2775 = vadd.f32 0.0, %v2774
        %v2776 = vpop.f32.mrb[0].mxu0
        %2777 = vmatprep.mubr.f32.mxu0 0.0
        %2778 = vmatmul.mubr.f32.gmra.mrb[0].mxu0 %v2607
        %v2779 = vpop.f32.mrb[0].mxu0
        %v2780 = vadd.f32 0.0, %v2779
        %v2781 = vpop.f32.mrb[0].mxu0
        %2782 = vmatprep.mubr.f32.mxu0 0.0
        %2783 = vmatmul.mubr.f32.gmra.mrb[0].mxu0 %v2610
        %v2784 = vpop.f32.mrb[0].mxu0
        %v2785 = vadd.f32 0.0, %v2784
        %v2786 = vpop.f32.mrb[0].mxu0
        %2787 = vmatprep.mubr.f32.mxu0 0.0
        %2788 = vmatmul.mubr.f32.gmra.mrb[0].mxu0 %v2613
        %v2789 = vpop.f32.mrb[0].mxu0
        %v2790 = vadd.f32 0.0, %v2789
        %v2791 = vpop.f32.mrb[0].mxu0
        %2792 = vmatprep.mubr.f32.mxu0 0.0
        %2793 = vmatmul.mubr.f32.gmra.mrb[0].mxu0 %v2616
        %v2794 = vpop.f32.mrb[0].mxu0
        %v2795 = vadd.f32 0.0, %v2794
        %v2796 = vpop.f32.mrb[0].mxu0
        %2797 = vmatprep.mubr.f32.mxu0 0.0
        %2798 = vmatmul.mubr.f32.gmra.mrb[0].mxu0 %v2619
        %v2799 = vpop.f32.mrb[0].mxu0
        %v2800 = vadd.f32 0.0, %v2799
        %v2801 = vpop.f32.mrb[0].mxu0
        %2802 = vmatprep.mubr.f32.mxu0 0.0
        %2803 = vmatmul.mubr.f32.gmra.mrb[0].mxu0 %v2622
        %v2804 = vpop.f32.mrb[0].mxu0
        %v2805 = vadd.f32 0.0, %v2804
        %v2806 = vpop.f32.mrb[0].mxu0
        %2807 = vmatprep.mubr.f32.mxu0 0.0
        %2808 = vmatmul.mubr.f32.gmra.mrb[0].mxu0 %v2625
        %v2809 = vpop.f32.mrb[0].mxu0
        %v2810 = vadd.f32 0.0, %v2809
        %v2811 = vpop.f32.mrb[0].mxu0
        %2812 = vmatprep.mubr.f32.mxu0 0.0
        %2813 = vmatmul.mubr.f32.gmra.mrb[0].mxu0 %v2628
        %v2814 = vpop.f32.mrb[0].mxu0
        %v2815 = vadd.f32 0.0, %v2814
        %v2816 = vpop.f32.mrb[0].mxu0
        %2817 = vmatprep.mubr.f32.mxu0 0.0
        %2818 = vmatmul.mubr.f32.gmra.mrb[0].mxu0 %v2631
        %v2819 = vpop.f32.mrb[0].mxu0
        %v2820 = vadd.f32 0.0, %v2819
        %v2821 = vpop.f32.mrb[0].mxu0
        %2822 = vmatprep.mubr.f32.mxu0 0.0
        %2823 = vmatmul.mubr.f32.gmra.mrb[0].mxu0 %v2634
        %v2824 = vpop.f32.mrb[0].mxu0
        %v2825 = vadd.f32 0.0, %v2824
        %v2826 = vpop.f32.mrb[0].mxu0
        %2827 = vmatprep.mubr.f32.mxu0 0.0
        %2828 = vmatmul.mubr.f32.gmra.mrb[0].mxu0 %v2637
        %v2829 = vpop.f32.mrb[0].mxu0
        %v2830 = vadd.f32 0.0, %v2829
        %v2831 = vpop.f32.mrb[0].mxu0
        %2832 = vmatprep.mubr.f32.mxu0 0.0
        %2833 = vmatmul.mubr.f32.gmra.mrb[0].mxu0 %v2640
        %v2834 = vpop.f32.mrb[0].mxu0
        %v2835 = vadd.f32 0.0, %v2834
        %v2836 = vpop.f32.mrb[0].mxu0
        %2837 = vmatprep.mubr.f32.mxu0 0.0
        %2838 = vmatmul.mubr.f32.gmra.mrb[0].mxu0 %v2643
        %v2839 = vpop.f32.mrb[0].mxu0
        %v2840 = vadd.f32 0.0, %v2839
        %v2841 = vpop.f32.mrb[0].mxu0
        %2842 = vmatprep.mubr.f32.mxu0 0.0
        %2843 = vmatmul.mubr.f32.gmra.mrb[0].mxu0 %v2646
        %v2844 = vpop.f32.mrb[0].mxu0
        %v2845 = vadd.f32 0.0, %v2844
        %v2846 = vpop.f32.mrb[0].mxu0
        %2847 = vmatprep.mubr.f32.mxu0 0.0
        %2848 = vmatmul.mubr.f32.gmra.mrb[0].mxu0 %v2649
        %v2849 = vpop.f32.mrb[0].mxu0
        %v2850 = vadd.f32 0.0, %v2849
        %v2851 = vpop.f32.mrb[0].mxu0
        %2852 = vmatprep.mubr.f32.mxu0 0.0
        %2853 = vmatmul.mubr.f32.gmra.mrb[0].mxu0 %v2652
        %v2854 = vpop.f32.mrb[0].mxu0
        %v2855 = vadd.f32 0.0, %v2854
        %v2856 = vpop.f32.mrb[0].mxu0
        %2857 = vmatprep.mubr.f32.mxu0 0.0
        %2858 = vmatmul.mubr.f32.gmra.mrb[0].mxu0 %v2655
        %v2859 = vpop.f32.mrb[0].mxu0
        %v2860 = vadd.f32 0.0, %v2859
        %v2861 = vpop.f32.mrb[0].mxu0
        %2862 = vmatprep.mubr.f32.mxu0 0.0
        %2863 = vmatmul.mubr.f32.gmra.mrb[0].mxu0 %v2658
        %v2864 = vpop.f32.mrb[0].mxu0
        %v2865 = vadd.f32 0.0, %v2864
        %v2866 = vpop.f32.mrb[0].mxu0
        %2867 = vmatprep.mubr.f32.mxu0 0.0
        %2868 = vmatmul.mubr.f32.gmra.mrb[0].mxu0 %v2661
        %v2869 = vpop.f32.mrb[0].mxu0
        %v2870 = vadd.f32 0.0, %v2869
        %v2871 = vpop.f32.mrb[0].mxu0
        %2872 = vmatprep.mubr.f32.mxu0 0.0
        %2873 = vmatmul.mubr.f32.gmra.mrb[0].mxu0 %v2664
        %v2874 = vpop.f32.mrb[0].mxu0
        %v2875 = vadd.f32 0.0, %v2874
        %v2876 = vpop.f32.mrb[0].mxu0
        %2877 = vmatprep.mubr.f32.mxu0 0.0
        %2878 = vmatmul.mubr.f32.gmra.mrb[0].mxu0 %v2667
        %v2879 = vpop.f32.mrb[0].mxu0
        %v2880 = vadd.f32 0.0, %v2879
        %v2881 = vpop.f32.mrb[0].mxu0
        %2882 = vmatprep.mubr.f32.mxu0 0.0
        %2883 = vmatmul.mubr.f32.gmra.mrb[0].mxu0 %v2670
        %v2884 = vpop.f32.mrb[0].mxu0
        %v2885 = vadd.f32 0.0, %v2884
        %v2886 = vpop.f32.mrb[0].mxu0
        %2887 = vmatprep.mubr.f32.mxu0 0.0
        %2888 = vmatmul.mubr.f32.gmra.mrb[0].mxu0 %v2673
        %v2889 = vpop.f32.mrb[0].mxu0
        %v2890 = vadd.f32 0.0, %v2889
        %v2891 = vpop.f32.mrb[0].mxu0
        %2892 = vmatprep.mubr.f32.mxu0 0.0
        %2893 = vmatmul.mubr.f32.gmra.mrb[0].mxu0 %v2676
        %v2894 = vpop.f32.mrb[0].mxu0
        %v2895 = vadd.f32 0.0, %v2894
        %v2896 = vpop.f32.mrb[0].mxu0
        %2897 = vmatprep.mubr.f32.mxu0 0.0
        %2898 = vmatmul.mubr.f32.gmra.mrb[0].mxu0 %v2679
        %v2899 = vpop.f32.mrb[0].mxu0
        %v2900 = vadd.f32 0.0, %v2899
        %v2901 = vpop.f32.mrb[0].mxu0
        %2902 = vmatprep.mubr.f32.mxu0 0.0
        %2903 = vmatmul.mubr.f32.gmra.mrb[0].mxu0 %v2682
        %v2904 = vpop.f32.mrb[0].mxu0
        %v2905 = vadd.f32 0.0, %v2904
        %v2906 = vpop.f32.mrb[0].mxu0
        %2907 = vmatprep.mubr.f32.mxu0 0.0
        %2908 = vmatmul.mubr.f32.gmra.mrb[0].mxu0 %v2685
        %v2909 = vpop.f32.mrb[0].mxu0
        %v2910 = vadd.f32 0.0, %v2909
        %v2911 = vpop.f32.mrb[0].mxu0
        %2912 = vmatprep.mubr.f32.mxu0 0.0
        %2913 = vmatmul.mubr.f32.gmra.mrb[0].mxu0 %v2688
        %v2914 = vpop.f32.mrb[0].mxu0
        %v2915 = vadd.f32 0.0, %v2914
        %v2916 = vpop.f32.mrb[0].mxu0
        %2917 = vdwg.mxu0
        %v2919 = vsel %vm441, %v1217, 0
        %2921 = vmatprep.subr.mxu0 0.0
        %2922 = vmatpush1.msra.mxu0 %v2919
        %2923 = vmatprep.subr.mxu0 0.0
        %2924 = vmatpush1.msra.mxu0 0.0
        %2925 = vmatprep.subr.mxu0 0.0
        %2926 = vmatpush1.msra.mxu0 0.0
        %2927 = vmatprep.subr.mxu0 0.0
        %2928 = vmatpush1.msra.mxu0 0.0
        %2929 = vmatprep.subr.mxu0 0.0
        %2930 = vmatpush1.msra.mxu0 0.0
        %2931 = vmatprep.subr.mxu0 0.0
        %2932 = vmatpush1.msra.mxu0 0.0
        %2933 = vmatprep.subr.mxu0 0.0
        %2934 = vmatpush1.msra.mxu0 0.0
        %2935 = vmatprep.subr.mxu0 0.0
        %2936 = vmatpush1.msra.mxu0 0.0
        %2937 = vmatprep.subr.mxu0 0.0
        %2938 = vmatpush1.msra.mxu0 0.0
        %2939 = vmatprep.subr.mxu0 0.0
        %2940 = vmatpush1.msra.mxu0 0.0
        %2941 = vmatprep.subr.mxu0 0.0
        %2942 = vmatpush1.msra.mxu0 0.0
        %2943 = vmatprep.subr.mxu0 0.0
        %2944 = vmatpush1.msra.mxu0 0.0
        %2945 = vmatprep.subr.mxu0 0.0
        %2946 = vmatpush1.msra.mxu0 0.0
        %2947 = vmatprep.subr.mxu0 0.0
        %2948 = vmatpush1.msra.mxu0 0.0
        %2949 = vmatprep.subr.mxu0 0.0
        %2950 = vmatpush1.msra.mxu0 0.0
        %2951 = vmatprep.subr.mxu0 0.0
        %2952 = vmatpush1.msra.mxu0 0.0
        %2953 = vmatprep.subr.mxu0 0.0
        %2954 = vmatpush1.msra.mxu0 0.0
        %2955 = vmatprep.subr.mxu0 0.0
        %2956 = vmatpush1.msra.mxu0 0.0
        %2957 = vmatprep.subr.mxu0 0.0
        %2958 = vmatpush1.msra.mxu0 0.0
        %2959 = vmatprep.subr.mxu0 0.0
        %2960 = vmatpush1.msra.mxu0 0.0
        %2961 = vmatprep.subr.mxu0 0.0
        %2962 = vmatpush1.msra.mxu0 0.0
        %2963 = vmatprep.subr.mxu0 0.0
        %2964 = vmatpush1.msra.mxu0 0.0
        %2965 = vmatprep.subr.mxu0 0.0
        %2966 = vmatpush1.msra.mxu0 0.0
        %2967 = vmatprep.subr.mxu0 0.0
        %2968 = vmatpush1.msra.mxu0 0.0
        %2969 = vmatprep.subr.mxu0 0.0
        %2970 = vmatpush1.msra.mxu0 0.0
        %2971 = vmatprep.subr.mxu0 0.0
        %2972 = vmatpush1.msra.mxu0 0.0
        %2973 = vmatprep.subr.mxu0 0.0
        %2974 = vmatpush1.msra.mxu0 0.0
        %2975 = vmatprep.subr.mxu0 0.0
        %2976 = vmatpush1.msra.mxu0 0.0
        %2977 = vmatprep.subr.mxu0 0.0
        %2978 = vmatpush1.msra.mxu0 0.0
        %2979 = vmatprep.subr.mxu0 0.0
        %2980 = vmatpush1.msra.mxu0 0.0
        %2981 = vmatprep.subr.mxu0 0.0
        %2982 = vmatpush1.msra.mxu0 0.0
        %2983 = vmatprep.subr.mxu0 0.0
        %2984 = vmatpush1.msra.mxu0 0.0
        %2985 = vmatprep.mubr.f32.mxu0 0.0
        %2986 = vmatmul.mubr.f32.gmra.mrb[0].mxu0 %v346
        %v2987 = vpop.f32.mrb[0].mxu0
        %v2988 = vadd.f32 %v2760, %v2987
        %v2989 = vpop.f32.mrb[0].mxu0
        %2990 = vmatprep.mubr.f32.mxu0 0.0
        %2991 = vmatmul.mubr.f32.gmra.mrb[0].mxu0 %v349
        %v2992 = vpop.f32.mrb[0].mxu0
        %v2993 = vadd.f32 %v2765, %v2992
        %v2994 = vpop.f32.mrb[0].mxu0
        %2995 = vmatprep.mubr.f32.mxu0 0.0
        %2996 = vmatmul.mubr.f32.gmra.mrb[0].mxu0 %v352
        %v2997 = vpop.f32.mrb[0].mxu0
        %v2998 = vadd.f32 %v2770, %v2997
        %v2999 = vpop.f32.mrb[0].mxu0
        %3000 = vmatprep.mubr.f32.mxu0 0.0
        %3001 = vmatmul.mubr.f32.gmra.mrb[0].mxu0 %v355
        %v3002 = vpop.f32.mrb[0].mxu0
        %v3003 = vadd.f32 %v2775, %v3002
        %v3004 = vpop.f32.mrb[0].mxu0
        %3005 = vmatprep.mubr.f32.mxu0 0.0
        %3006 = vmatmul.mubr.f32.gmra.mrb[0].mxu0 %v358
        %v3007 = vpop.f32.mrb[0].mxu0
        %v3008 = vadd.f32 %v2780, %v3007
        %v3009 = vpop.f32.mrb[0].mxu0
        %3010 = vmatprep.mubr.f32.mxu0 0.0
        %3011 = vmatmul.mubr.f32.gmra.mrb[0].mxu0 %v361
        %v3012 = vpop.f32.mrb[0].mxu0
        %v3013 = vadd.f32 %v2785, %v3012
        %v3014 = vpop.f32.mrb[0].mxu0
        %3015 = vmatprep.mubr.f32.mxu0 0.0
        %3016 = vmatmul.mubr.f32.gmra.mrb[0].mxu0 %v364
        %v3017 = vpop.f32.mrb[0].mxu0
        %v3018 = vadd.f32 %v2790, %v3017
        %v3019 = vpop.f32.mrb[0].mxu0
        %3020 = vmatprep.mubr.f32.mxu0 0.0
        %3021 = vmatmul.mubr.f32.gmra.mrb[0].mxu0 %v367
        %v3022 = vpop.f32.mrb[0].mxu0
        %v3023 = vadd.f32 %v2795, %v3022
        %v3024 = vpop.f32.mrb[0].mxu0
        %3025 = vmatprep.mubr.f32.mxu0 0.0
        %3026 = vmatmul.mubr.f32.gmra.mrb[0].mxu0 %v370
        %v3027 = vpop.f32.mrb[0].mxu0
        %v3028 = vadd.f32 %v2800, %v3027
        %v3029 = vpop.f32.mrb[0].mxu0
        %3030 = vmatprep.mubr.f32.mxu0 0.0
        %3031 = vmatmul.mubr.f32.gmra.mrb[0].mxu0 %v373
        %v3032 = vpop.f32.mrb[0].mxu0
        %v3033 = vadd.f32 %v2805, %v3032
        %v3034 = vpop.f32.mrb[0].mxu0
        %3035 = vmatprep.mubr.f32.mxu0 0.0
        %3036 = vmatmul.mubr.f32.gmra.mrb[0].mxu0 %v376
        %v3037 = vpop.f32.mrb[0].mxu0
        %v3038 = vadd.f32 %v2810, %v3037
        %v3039 = vpop.f32.mrb[0].mxu0
        %3040 = vmatprep.mubr.f32.mxu0 0.0
        %3041 = vmatmul.mubr.f32.gmra.mrb[0].mxu0 %v379
        %v3042 = vpop.f32.mrb[0].mxu0
        %v3043 = vadd.f32 %v2815, %v3042
        %v3044 = vpop.f32.mrb[0].mxu0
        %3045 = vmatprep.mubr.f32.mxu0 0.0
        %3046 = vmatmul.mubr.f32.gmra.mrb[0].mxu0 %v382
        %v3047 = vpop.f32.mrb[0].mxu0
        %v3048 = vadd.f32 %v2820, %v3047
        %v3049 = vpop.f32.mrb[0].mxu0
        %3050 = vmatprep.mubr.f32.mxu0 0.0
        %3051 = vmatmul.mubr.f32.gmra.mrb[0].mxu0 %v385
        %v3052 = vpop.f32.mrb[0].mxu0
        %v3053 = vadd.f32 %v2825, %v3052
        %v3054 = vpop.f32.mrb[0].mxu0
        %3055 = vmatprep.mubr.f32.mxu0 0.0
        %3056 = vmatmul.mubr.f32.gmra.mrb[0].mxu0 %v388
        %v3057 = vpop.f32.mrb[0].mxu0
        %v3058 = vadd.f32 %v2830, %v3057
        %v3059 = vpop.f32.mrb[0].mxu0
        %3060 = vmatprep.mubr.f32.mxu0 0.0
        %3061 = vmatmul.mubr.f32.gmra.mrb[0].mxu0 %v391
        %v3062 = vpop.f32.mrb[0].mxu0
        %v3063 = vadd.f32 %v2835, %v3062
        %v3064 = vpop.f32.mrb[0].mxu0
        %3065 = vmatprep.mubr.f32.mxu0 0.0
        %3066 = vmatmul.mubr.f32.gmra.mrb[0].mxu0 %v394
        %v3067 = vpop.f32.mrb[0].mxu0
        %v3068 = vadd.f32 %v2840, %v3067
        %v3069 = vpop.f32.mrb[0].mxu0
        %3070 = vmatprep.mubr.f32.mxu0 0.0
        %3071 = vmatmul.mubr.f32.gmra.mrb[0].mxu0 %v397
        %v3072 = vpop.f32.mrb[0].mxu0
        %v3073 = vadd.f32 %v2845, %v3072
        %v3074 = vpop.f32.mrb[0].mxu0
        %3075 = vmatprep.mubr.f32.mxu0 0.0
        %3076 = vmatmul.mubr.f32.gmra.mrb[0].mxu0 %v400
        %v3077 = vpop.f32.mrb[0].mxu0
        %v3078 = vadd.f32 %v2850, %v3077
        %v3079 = vpop.f32.mrb[0].mxu0
        %3080 = vmatprep.mubr.f32.mxu0 0.0
        %3081 = vmatmul.mubr.f32.gmra.mrb[0].mxu0 %v403
        %v3082 = vpop.f32.mrb[0].mxu0
        %v3083 = vadd.f32 %v2855, %v3082
        %v3084 = vpop.f32.mrb[0].mxu0
        %3085 = vmatprep.mubr.f32.mxu0 0.0
        %3086 = vmatmul.mubr.f32.gmra.mrb[0].mxu0 %v406
        %v3087 = vpop.f32.mrb[0].mxu0
        %v3088 = vadd.f32 %v2860, %v3087
        %v3089 = vpop.f32.mrb[0].mxu0
        %3090 = vmatprep.mubr.f32.mxu0 0.0
        %3091 = vmatmul.mubr.f32.gmra.mrb[0].mxu0 %v409
        %v3092 = vpop.f32.mrb[0].mxu0
        %v3093 = vadd.f32 %v2865, %v3092
        %v3094 = vpop.f32.mrb[0].mxu0
        %3095 = vmatprep.mubr.f32.mxu0 0.0
        %3096 = vmatmul.mubr.f32.gmra.mrb[0].mxu0 %v412
        %v3097 = vpop.f32.mrb[0].mxu0
        %v3098 = vadd.f32 %v2870, %v3097
        %v3099 = vpop.f32.mrb[0].mxu0
        %3100 = vmatprep.mubr.f32.mxu0 0.0
        %3101 = vmatmul.mubr.f32.gmra.mrb[0].mxu0 %v415
        %v3102 = vpop.f32.mrb[0].mxu0
        %v3103 = vadd.f32 %v2875, %v3102
        %v3104 = vpop.f32.mrb[0].mxu0
        %3105 = vmatprep.mubr.f32.mxu0 0.0
        %3106 = vmatmul.mubr.f32.gmra.mrb[0].mxu0 %v418
        %v3107 = vpop.f32.mrb[0].mxu0
        %v3108 = vadd.f32 %v2880, %v3107
        %v3109 = vpop.f32.mrb[0].mxu0
        %3110 = vmatprep.mubr.f32.mxu0 0.0
        %3111 = vmatmul.mubr.f32.gmra.mrb[0].mxu0 %v421
        %v3112 = vpop.f32.mrb[0].mxu0
        %v3113 = vadd.f32 %v2885, %v3112
        %v3114 = vpop.f32.mrb[0].mxu0
        %3115 = vmatprep.mubr.f32.mxu0 0.0
        %3116 = vmatmul.mubr.f32.gmra.mrb[0].mxu0 %v424
        %v3117 = vpop.f32.mrb[0].mxu0
        %v3118 = vadd.f32 %v2890, %v3117
        %v3119 = vpop.f32.mrb[0].mxu0
        %3120 = vmatprep.mubr.f32.mxu0 0.0
        %3121 = vmatmul.mubr.f32.gmra.mrb[0].mxu0 %v427
        %v3122 = vpop.f32.mrb[0].mxu0
        %v3123 = vadd.f32 %v2895, %v3122
        %v3124 = vpop.f32.mrb[0].mxu0
        %3125 = vmatprep.mubr.f32.mxu0 0.0
        %3126 = vmatmul.mubr.f32.gmra.mrb[0].mxu0 %v430
        %v3127 = vpop.f32.mrb[0].mxu0
        %v3128 = vadd.f32 %v2900, %v3127
        %v3129 = vpop.f32.mrb[0].mxu0
        %3130 = vmatprep.mubr.f32.mxu0 0.0
        %3131 = vmatmul.mubr.f32.gmra.mrb[0].mxu0 %v433
        %v3132 = vpop.f32.mrb[0].mxu0
        %v3133 = vadd.f32 %v2905, %v3132
        %v3134 = vpop.f32.mrb[0].mxu0
        %3135 = vmatprep.mubr.f32.mxu0 0.0
        %3136 = vmatmul.mubr.f32.gmra.mrb[0].mxu0 %v436
        %v3137 = vpop.f32.mrb[0].mxu0
        %v3138 = vadd.f32 %v2910, %v3137
        %v3139 = vpop.f32.mrb[0].mxu0
        %3140 = vmatprep.mubr.f32.mxu0 0.0
        %3141 = vmatmul.mubr.f32.gmra.mrb[0].mxu0 %v439
        %v3142 = vpop.f32.mrb[0].mxu0
        %v3143 = vadd.f32 %v2915, %v3142
        %v3144 = vpop.f32.mrb[0].mxu0
        %3145 = vdwg.mxu0
        %vm3146 = vcmask 1041408
        %v3147 = vrot.slane %v670, 6
        %v3148 = vrot.slane %v671, 6
        %v3149 = vsel %vm3146, %v3147, %v3148
        %v3150 = vrot.slane %v672, 6
        %v3151 = vrot.slane %v673, 6
        %v3152 = vsel %vm3146, %v3150, %v3151
        %v3153 = vrot.slane %v674, 6
        %v3154 = vrot.slane %v675, 6
        %v3155 = vsel %vm3146, %v3153, %v3154
        %v3156 = vrot.slane %v676, 6
        %v3157 = vrot.slane %v677, 6
        %v3158 = vsel %vm3146, %v3156, %v3157
        %v3159 = vrot.slane %v678, 6
        %v3160 = vrot.slane %v679, 6
        %v3161 = vsel %vm3146, %v3159, %v3160
        %v3162 = vrot.slane %v680, 6
        %v3163 = vrot.slane %v681, 6
        %v3164 = vsel %vm3146, %v3162, %v3163
        %v3165 = vrot.slane %v682, 6
        %v3166 = vrot.slane %v683, 6
        %v3167 = vsel %vm3146, %v3165, %v3166
        %v3168 = vrot.slane %v684, 6
        %v3169 = vrot.slane %v685, 6
        %v3170 = vsel %vm3146, %v3168, %v3169
        %v3171 = vrot.slane %v686, 6
        %v3172 = vrot.slane %v687, 6
        %v3173 = vsel %vm3146, %v3171, %v3172
        %v3174 = vrot.slane %v688, 6
        %v3175 = vrot.slane %v689, 6
        %v3176 = vsel %vm3146, %v3174, %v3175
        %v3177 = vrot.slane %v690, 6
        %v3178 = vrot.slane %v691, 6
        %v3179 = vsel %vm3146, %v3177, %v3178
        %v3180 = vrot.slane %v692, 6
        %v3181 = vrot.slane %v693, 6
        %v3182 = vsel %vm3146, %v3180, %v3181
        %v3183 = vrot.slane %v694, 6
        %v3184 = vrot.slane %v695, 6
        %v3185 = vsel %vm3146, %v3183, %v3184
        %v3186 = vrot.slane %v696, 6
        %v3187 = vrot.slane %v697, 6
        %v3188 = vsel %vm3146, %v3186, %v3187
        %v3189 = vrot.slane %v698, 6
        %v3190 = vrot.slane %v699, 6
        %v3191 = vsel %vm3146, %v3189, %v3190
        %v3192 = vrot.slane %v700, 6
        %v3193 = vrot.slane %v701, 6
        %v3194 = vsel %vm3146, %v3192, %v3193
        %3195 = vrot.lane.b32.xlu0 %v3147, 124
        %v3196 = vpop.permute.xlu0 %3195
        %3197 = vrot.lane.b32.xlu0 %v3149, 124
        %v3198 = vpop.permute.xlu0 %3197
        %3199 = vrot.lane.b32.xlu0 %v3148, 124
        %v3200 = vpop.permute.xlu0 %3199
        %3201 = vrot.lane.b32.xlu0 %v3150, 124
        %v3202 = vpop.permute.xlu0 %3201
        %3203 = vrot.lane.b32.xlu0 %v3152, 124
        %v3204 = vpop.permute.xlu0 %3203
        %3205 = vrot.lane.b32.xlu0 %v3151, 124
        %v3206 = vpop.permute.xlu0 %3205
        %3207 = vrot.lane.b32.xlu0 %v3153, 124
        %v3208 = vpop.permute.xlu0 %3207
        %3209 = vrot.lane.b32.xlu0 %v3155, 124
        %v3210 = vpop.permute.xlu0 %3209
        %3211 = vrot.lane.b32.xlu0 %v3154, 124
        %v3212 = vpop.permute.xlu0 %3211
        %3213 = vrot.lane.b32.xlu0 %v3156, 124
        %v3214 = vpop.permute.xlu0 %3213
        %3215 = vrot.lane.b32.xlu0 %v3158, 124
        %v3216 = vpop.permute.xlu0 %3215
        %3217 = vrot.lane.b32.xlu0 %v3157, 124
        %v3218 = vpop.permute.xlu0 %3217
        %3219 = vrot.lane.b32.xlu0 %v3159, 124
        %v3220 = vpop.permute.xlu0 %3219
        %3221 = vrot.lane.b32.xlu0 %v3161, 124
        %v3222 = vpop.permute.xlu0 %3221
        %3223 = vrot.lane.b32.xlu0 %v3160, 124
        %v3224 = vpop.permute.xlu0 %3223
        %3225 = vrot.lane.b32.xlu0 %v3162, 124
        %v3226 = vpop.permute.xlu0 %3225
        %3227 = vrot.lane.b32.xlu0 %v3164, 124
        %v3228 = vpop.permute.xlu0 %3227
        %3229 = vrot.lane.b32.xlu0 %v3163, 124
        %v3230 = vpop.permute.xlu0 %3229
        %3231 = vrot.lane.b32.xlu0 %v3165, 124
        %v3232 = vpop.permute.xlu0 %3231
        %3233 = vrot.lane.b32.xlu0 %v3167, 124
        %v3234 = vpop.permute.xlu0 %3233
        %3235 = vrot.lane.b32.xlu0 %v3166, 124
        %v3236 = vpop.permute.xlu0 %3235
        %3237 = vrot.lane.b32.xlu0 %v3168, 124
        %v3238 = vpop.permute.xlu0 %3237
        %3239 = vrot.lane.b32.xlu0 %v3170, 124
        %v3240 = vpop.permute.xlu0 %3239
        %3241 = vrot.lane.b32.xlu0 %v3169, 124
        %v3242 = vpop.permute.xlu0 %3241
        %3243 = vrot.lane.b32.xlu0 %v3171, 124
        %v3244 = vpop.permute.xlu0 %3243
        %3245 = vrot.lane.b32.xlu0 %v3173, 124
        %v3246 = vpop.permute.xlu0 %3245
        %3247 = vrot.lane.b32.xlu0 %v3172, 124
        %v3248 = vpop.permute.xlu0 %3247
        %3249 = vrot.lane.b32.xlu0 %v3174, 124
        %v3250 = vpop.permute.xlu0 %3249
        %3251 = vrot.lane.b32.xlu0 %v3176, 124
        %v3252 = vpop.permute.xlu0 %3251
        %3253 = vrot.lane.b32.xlu0 %v3175, 124
        %v3254 = vpop.permute.xlu0 %3253
        %3255 = vrot.lane.b32.xlu0 %v3177, 124
        %v3256 = vpop.permute.xlu0 %3255
        %3257 = vrot.lane.b32.xlu0 %v3179, 124
        %v3258 = vpop.permute.xlu0 %3257
        %3259 = vrot.lane.b32.xlu0 %v3178, 124
        %v3260 = vpop.permute.xlu0 %3259
        %3261 = vrot.lane.b32.xlu0 %v3180, 124
        %v3262 = vpop.permute.xlu0 %3261
        %3263 = vrot.lane.b32.xlu0 %v3182, 124
        %v3264 = vpop.permute.xlu0 %3263
        %3265 = vrot.lane.b32.xlu0 %v3181, 124
        %v3266 = vpop.permute.xlu0 %3265
        %3267 = vrot.lane.b32.xlu0 %v3183, 124
        %v3268 = vpop.permute.xlu0 %3267
        %3269 = vrot.lane.b32.xlu0 %v3185, 124
        %v3270 = vpop.permute.xlu0 %3269
        %3271 = vrot.lane.b32.xlu0 %v3184, 124
        %v3272 = vpop.permute.xlu0 %3271
        %3273 = vrot.lane.b32.xlu0 %v3186, 124
        %v3274 = vpop.permute.xlu0 %3273
        %3275 = vrot.lane.b32.xlu0 %v3188, 124
        %v3276 = vpop.permute.xlu0 %3275
        %3277 = vrot.lane.b32.xlu0 %v3187, 124
        %v3278 = vpop.permute.xlu0 %3277
        %3279 = vrot.lane.b32.xlu0 %v3189, 124
        %v3280 = vpop.permute.xlu0 %3279
        %3281 = vrot.lane.b32.xlu0 %v3191, 124
        %v3282 = vpop.permute.xlu0 %3281
        %3283 = vrot.lane.b32.xlu0 %v3190, 124
        %v3284 = vpop.permute.xlu0 %3283
        %3285 = vrot.lane.b32.xlu0 %v3192, 124
        %v3286 = vpop.permute.xlu0 %3285
        %3287 = vrot.lane.b32.xlu0 %v3194, 124
        %v3288 = vpop.permute.xlu0 %3287
        %3289 = vrot.lane.b32.xlu0 %v3193, 124
        %v3290 = vpop.permute.xlu0 %3289
        %v3339 = vsel %vm3146, 0.0, %v3196
        %v3340 = vsel %vm3146, 0.0, %v3202
        %v3341 = vsel %vm3146, 0.0, %v3208
        %v3342 = vsel %vm3146, 0.0, %v3214
        %v3343 = vsel %vm3146, 0.0, %v3220
        %v3344 = vsel %vm3146, 0.0, %v3226
        %v3345 = vsel %vm3146, 0.0, %v3232
        %v3346 = vsel %vm3146, 0.0, %v3238
        %v3347 = vsel %vm3146, 0.0, %v3244
        %v3348 = vsel %vm3146, 0.0, %v3250
        %v3349 = vsel %vm3146, 0.0, %v3256
        %v3350 = vsel %vm3146, 0.0, %v3262
        %v3351 = vsel %vm3146, 0.0, %v3268
        %v3352 = vsel %vm3146, 0.0, %v3274
        %v3353 = vsel %vm3146, 0.0, %v3280
        %v3354 = vsel %vm3146, 0.0, %v3286
        %v3355 = vsel %vm3146, %v3200, 0.0
        %v3356 = vsel %vm3146, %v3206, 0.0
        %v3357 = vsel %vm3146, %v3212, 0.0
        %v3358 = vsel %vm3146, %v3218, 0.0
        %v3359 = vsel %vm3146, %v3224, 0.0
        %v3360 = vsel %vm3146, %v3230, 0.0
        %v3361 = vsel %vm3146, %v3236, 0.0
        %v3362 = vsel %vm3146, %v3242, 0.0
        %v3363 = vsel %vm3146, %v3248, 0.0
        %v3364 = vsel %vm3146, %v3254, 0.0
        %v3365 = vsel %vm3146, %v3260, 0.0
        %v3366 = vsel %vm3146, %v3266, 0.0
        %v3367 = vsel %vm3146, %v3272, 0.0
        %v3368 = vsel %vm3146, %v3278, 0.0
        %v3369 = vsel %vm3146, %v3284, 0.0
        %v3370 = vsel %vm3146, %v3290, 0.0
        %v3399 = vrot.slane %v3339, 1
        %v3400 = vrot.slane %v3198, 1
        %v3401 = vsel %vm863, %v3399, %v3400
        %v3402 = vrot.slane %v3355, 1
        %v3403 = vsel %vm863, %v3400, %v3402
        %v3404 = vrot.slane %v3340, 1
        %v3405 = vrot.slane %v3204, 1
        %v3406 = vsel %vm863, %v3404, %v3405
        %v3407 = vrot.slane %v3356, 1
        %v3408 = vsel %vm863, %v3405, %v3407
        %v3409 = vrot.slane %v3341, 1
        %v3410 = vrot.slane %v3210, 1
        %v3411 = vsel %vm863, %v3409, %v3410
        %v3412 = vrot.slane %v3357, 1
        %v3413 = vsel %vm863, %v3410, %v3412
        %v3414 = vrot.slane %v3342, 1
        %v3415 = vrot.slane %v3216, 1
        %v3416 = vsel %vm863, %v3414, %v3415
        %v3417 = vrot.slane %v3358, 1
        %v3418 = vsel %vm863, %v3415, %v3417
        %v3419 = vrot.slane %v3343, 1
        %v3420 = vrot.slane %v3222, 1
        %v3421 = vsel %vm863, %v3419, %v3420
        %v3422 = vrot.slane %v3359, 1
        %v3423 = vsel %vm863, %v3420, %v3422
        %v3424 = vrot.slane %v3344, 1
        %v3425 = vrot.slane %v3228, 1
        %v3426 = vsel %vm863, %v3424, %v3425
        %v3427 = vrot.slane %v3360, 1
        %v3428 = vsel %vm863, %v3425, %v3427
        %v3429 = vrot.slane %v3345, 1
        %v3430 = vrot.slane %v3234, 1
        %v3431 = vsel %vm863, %v3429, %v3430
        %v3432 = vrot.slane %v3361, 1
        %v3433 = vsel %vm863, %v3430, %v3432
        %v3434 = vrot.slane %v3346, 1
        %v3435 = vrot.slane %v3240, 1
        %v3436 = vsel %vm863, %v3434, %v3435
        %v3437 = vrot.slane %v3362, 1
        %v3438 = vsel %vm863, %v3435, %v3437
        %v3439 = vrot.slane %v3347, 1
        %v3440 = vrot.slane %v3246, 1
        %v3441 = vsel %vm863, %v3439, %v3440
        %v3442 = vrot.slane %v3363, 1
        %v3443 = vsel %vm863, %v3440, %v3442
        %v3444 = vrot.slane %v3348, 1
        %v3445 = vrot.slane %v3252, 1
        %v3446 = vsel %vm863, %v3444, %v3445
        %v3447 = vrot.slane %v3364, 1
        %v3448 = vsel %vm863, %v3445, %v3447
        %v3449 = vrot.slane %v3349, 1
        %v3450 = vrot.slane %v3258, 1
        %v3451 = vsel %vm863, %v3449, %v3450
        %v3452 = vrot.slane %v3365, 1
        %v3453 = vsel %vm863, %v3450, %v3452
        %v3454 = vrot.slane %v3350, 1
        %v3455 = vrot.slane %v3264, 1
        %v3456 = vsel %vm863, %v3454, %v3455
        %v3457 = vrot.slane %v3366, 1
        %v3458 = vsel %vm863, %v3455, %v3457
        %v3459 = vrot.slane %v3351, 1
        %v3460 = vrot.slane %v3270, 1
        %v3461 = vsel %vm863, %v3459, %v3460
        %v3462 = vrot.slane %v3367, 1
        %v3463 = vsel %vm863, %v3460, %v3462
        %v3464 = vrot.slane %v3352, 1
        %v3465 = vrot.slane %v3276, 1
        %v3466 = vsel %vm863, %v3464, %v3465
        %v3467 = vrot.slane %v3368, 1
        %v3468 = vsel %vm863, %v3465, %v3467
        %3469 = vrot.lane.b32.xlu0 %v1409, 2
        %v3470 = vpop.permute.xlu0 %3469
        %3471 = vrot.lane.b32.xlu0 %v3401, 2
        %v3472 = vpop.permute.xlu0 %3471
        %3473 = vrot.lane.b32.xlu0 %v3403, 2
        %v3474 = vpop.permute.xlu0 %3473
        %3475 = vrot.lane.b32.xlu0 %v3406, 2
        %v3476 = vpop.permute.xlu0 %3475
        %3477 = vrot.lane.b32.xlu0 %v3408, 2
        %v3478 = vpop.permute.xlu0 %3477
        %3479 = vrot.lane.b32.xlu0 %v3411, 2
        %v3480 = vpop.permute.xlu0 %3479
        %3481 = vrot.lane.b32.xlu0 %v3413, 2
        %v3482 = vpop.permute.xlu0 %3481
        %3483 = vrot.lane.b32.xlu0 %v3416, 2
        %v3484 = vpop.permute.xlu0 %3483
        %3485 = vrot.lane.b32.xlu0 %v3418, 2
        %v3486 = vpop.permute.xlu0 %3485
        %3487 = vrot.lane.b32.xlu0 %v3421, 2
        %v3488 = vpop.permute.xlu0 %3487
        %3489 = vrot.lane.b32.xlu0 %v3423, 2
        %v3490 = vpop.permute.xlu0 %3489
        %3491 = vrot.lane.b32.xlu0 %v3426, 2
        %v3492 = vpop.permute.xlu0 %3491
        %3493 = vrot.lane.b32.xlu0 %v3428, 2
        %v3494 = vpop.permute.xlu0 %3493
        %3495 = vrot.lane.b32.xlu0 %v3431, 2
        %v3496 = vpop.permute.xlu0 %3495
        %3497 = vrot.lane.b32.xlu0 %v3433, 2
        %v3498 = vpop.permute.xlu0 %3497
        %3499 = vrot.lane.b32.xlu0 %v3436, 2
        %v3500 = vpop.permute.xlu0 %3499
        %3501 = vrot.lane.b32.xlu0 %v3438, 2
        %v3502 = vpop.permute.xlu0 %3501
        %3503 = vrot.lane.b32.xlu0 %v3441, 2
        %v3504 = vpop.permute.xlu0 %3503
        %3505 = vrot.lane.b32.xlu0 %v3443, 2
        %v3506 = vpop.permute.xlu0 %3505
        %3507 = vrot.lane.b32.xlu0 %v3446, 2
        %v3508 = vpop.permute.xlu0 %3507
        %3509 = vrot.lane.b32.xlu0 %v3448, 2
        %v3510 = vpop.permute.xlu0 %3509
        %3511 = vrot.lane.b32.xlu0 %v3451, 2
        %v3512 = vpop.permute.xlu0 %3511
        %3513 = vrot.lane.b32.xlu0 %v3453, 2
        %v3514 = vpop.permute.xlu0 %3513
        %3515 = vrot.lane.b32.xlu0 %v3456, 2
        %v3516 = vpop.permute.xlu0 %3515
        %3517 = vrot.lane.b32.xlu0 %v3458, 2
        %v3518 = vpop.permute.xlu0 %3517
        %3519 = vrot.lane.b32.xlu0 %v3461, 2
        %v3520 = vpop.permute.xlu0 %3519
        %3521 = vrot.lane.b32.xlu0 %v3463, 2
        %v3522 = vpop.permute.xlu0 %3521
        %3523 = vrot.lane.b32.xlu0 %v3466, 2
        %v3524 = vpop.permute.xlu0 %3523
        %3525 = vrot.lane.b32.xlu0 %v3468, 2
        %v3526 = vpop.permute.xlu0 %3525
        %v3556 = vrot.slane %v3339, 2
        %v3557 = vrot.slane %v3198, 2
        %v3558 = vsel %vm1008, %v3556, %v3557
        %v3559 = vrot.slane %v3355, 2
        %v3560 = vsel %vm1008, %v3557, %v3559
        %v3561 = vrot.slane %v3340, 2
        %v3562 = vrot.slane %v3204, 2
        %v3563 = vsel %vm1008, %v3561, %v3562
        %v3564 = vrot.slane %v3356, 2
        %v3565 = vsel %vm1008, %v3562, %v3564
        %v3566 = vrot.slane %v3341, 2
        %v3567 = vrot.slane %v3210, 2
        %v3568 = vsel %vm1008, %v3566, %v3567
        %v3569 = vrot.slane %v3357, 2
        %v3570 = vsel %vm1008, %v3567, %v3569
        %v3571 = vrot.slane %v3342, 2
        %v3572 = vrot.slane %v3216, 2
        %v3573 = vsel %vm1008, %v3571, %v3572
        %v3574 = vrot.slane %v3358, 2
        %v3575 = vsel %vm1008, %v3572, %v3574
        %v3576 = vrot.slane %v3343, 2
        %v3577 = vrot.slane %v3222, 2
        %v3578 = vsel %vm1008, %v3576, %v3577
        %v3579 = vrot.slane %v3359, 2
        %v3580 = vsel %vm1008, %v3577, %v3579
        %v3581 = vrot.slane %v3344, 2
        %v3582 = vrot.slane %v3228, 2
        %v3583 = vsel %vm1008, %v3581, %v3582
        %v3584 = vrot.slane %v3360, 2
        %v3585 = vsel %vm1008, %v3582, %v3584
        %v3586 = vrot.slane %v3345, 2
        %v3587 = vrot.slane %v3234, 2
        %v3588 = vsel %vm1008, %v3586, %v3587
        %v3589 = vrot.slane %v3361, 2
        %v3590 = vsel %vm1008, %v3587, %v3589
        %v3591 = vrot.slane %v3346, 2
        %v3592 = vrot.slane %v3240, 2
        %v3593 = vsel %vm1008, %v3591, %v3592
        %v3594 = vrot.slane %v3362, 2
        %v3595 = vsel %vm1008, %v3592, %v3594
        %v3596 = vrot.slane %v3347, 2
        %v3597 = vrot.slane %v3246, 2
        %v3598 = vsel %vm1008, %v3596, %v3597
        %v3599 = vrot.slane %v3363, 2
        %v3600 = vsel %vm1008, %v3597, %v3599
        %v3601 = vrot.slane %v3348, 2
        %v3602 = vrot.slane %v3252, 2
        %v3603 = vsel %vm1008, %v3601, %v3602
        %v3604 = vrot.slane %v3364, 2
        %v3605 = vsel %vm1008, %v3602, %v3604
        %v3606 = vrot.slane %v3349, 2
        %v3607 = vrot.slane %v3258, 2
        %v3608 = vsel %vm1008, %v3606, %v3607
        %v3609 = vrot.slane %v3365, 2
        %v3610 = vsel %vm1008, %v3607, %v3609
        %v3611 = vrot.slane %v3350, 2
        %v3612 = vrot.slane %v3264, 2
        %v3613 = vsel %vm1008, %v3611, %v3612
        %v3614 = vrot.slane %v3366, 2
        %v3615 = vsel %vm1008, %v3612, %v3614
        %v3616 = vrot.slane %v3351, 2
        %v3617 = vrot.slane %v3270, 2
        %v3618 = vsel %vm1008, %v3616, %v3617
        %v3619 = vrot.slane %v3367, 2
        %v3620 = vsel %vm1008, %v3617, %v3619
        %v3621 = vrot.slane %v3352, 2
        %v3622 = vrot.slane %v3276, 2
        %v3623 = vsel %vm1008, %v3621, %v3622
        %v3624 = vrot.slane %v3368, 2
        %v3625 = vsel %vm1008, %v3622, %v3624
        %3626 = vrot.lane.b32.xlu0 %v1579, 4
        %v3627 = vpop.permute.xlu0 %3626
        %3628 = vrot.lane.b32.xlu0 %v3558, 4
        %v3629 = vpop.permute.xlu0 %3628
        %3630 = vrot.lane.b32.xlu0 %v3560, 4
        %v3631 = vpop.permute.xlu0 %3630
        %3632 = vrot.lane.b32.xlu0 %v3563, 4
        %v3633 = vpop.permute.xlu0 %3632
        %3634 = vrot.lane.b32.xlu0 %v3565, 4
        %v3635 = vpop.permute.xlu0 %3634
        %3636 = vrot.lane.b32.xlu0 %v3568, 4
        %v3637 = vpop.permute.xlu0 %3636
        %3638 = vrot.lane.b32.xlu0 %v3570, 4
        %v3639 = vpop.permute.xlu0 %3638
        %3640 = vrot.lane.b32.xlu0 %v3573, 4
        %v3641 = vpop.permute.xlu0 %3640
        %3642 = vrot.lane.b32.xlu0 %v3575, 4
        %v3643 = vpop.permute.xlu0 %3642
        %3644 = vrot.lane.b32.xlu0 %v3578, 4
        %v3645 = vpop.permute.xlu0 %3644
        %3646 = vrot.lane.b32.xlu0 %v3580, 4
        %v3647 = vpop.permute.xlu0 %3646
        %3648 = vrot.lane.b32.xlu0 %v3583, 4
        %v3649 = vpop.permute.xlu0 %3648
        %3650 = vrot.lane.b32.xlu0 %v3585, 4
        %v3651 = vpop.permute.xlu0 %3650
        %3652 = vrot.lane.b32.xlu0 %v3588, 4
        %v3653 = vpop.permute.xlu0 %3652
        %3654 = vrot.lane.b32.xlu0 %v3590, 4
        %v3655 = vpop.permute.xlu0 %3654
        %3656 = vrot.lane.b32.xlu0 %v3593, 4
        %v3657 = vpop.permute.xlu0 %3656
        %3658 = vrot.lane.b32.xlu0 %v3595, 4
        %v3659 = vpop.permute.xlu0 %3658
        %3660 = vrot.lane.b32.xlu0 %v3598, 4
        %v3661 = vpop.permute.xlu0 %3660
        %3662 = vrot.lane.b32.xlu0 %v3600, 4
        %v3663 = vpop.permute.xlu0 %3662
        %3664 = vrot.lane.b32.xlu0 %v3603, 4
        %v3665 = vpop.permute.xlu0 %3664
        %3666 = vrot.lane.b32.xlu0 %v3605, 4
        %v3667 = vpop.permute.xlu0 %3666
        %3668 = vrot.lane.b32.xlu0 %v3608, 4
        %v3669 = vpop.permute.xlu0 %3668
        %3670 = vrot.lane.b32.xlu0 %v3610, 4
        %v3671 = vpop.permute.xlu0 %3670
        %3672 = vrot.lane.b32.xlu0 %v3613, 4
        %v3673 = vpop.permute.xlu0 %3672
        %3674 = vrot.lane.b32.xlu0 %v3615, 4
        %v3675 = vpop.permute.xlu0 %3674
        %3676 = vrot.lane.b32.xlu0 %v3618, 4
        %v3677 = vpop.permute.xlu0 %3676
        %3678 = vrot.lane.b32.xlu0 %v3620, 4
        %v3679 = vpop.permute.xlu0 %3678
        %3680 = vrot.lane.b32.xlu0 %v3623, 4
        %v3681 = vpop.permute.xlu0 %3680
        %3682 = vrot.lane.b32.xlu0 %v3625, 4
        %v3683 = vpop.permute.xlu0 %3682
        %vm3713 = vcmask 1044480
        %v3714 = vrot.slane 0.0, 3
        %v3715 = vsel %vm3713, %v3714, %v3714
        %v3716 = vrot.slane %v3339, 3
        %v3717 = vrot.slane %v3198, 3
        %v3718 = vsel %vm3713, %v3716, %v3717
        %v3719 = vrot.slane %v3355, 3
        %v3720 = vsel %vm3713, %v3717, %v3719
        %v3721 = vrot.slane %v3340, 3
        %v3722 = vrot.slane %v3204, 3
        %v3723 = vsel %vm3713, %v3721, %v3722
        %v3724 = vrot.slane %v3356, 3
        %v3725 = vsel %vm3713, %v3722, %v3724
        %v3726 = vrot.slane %v3341, 3
        %v3727 = vrot.slane %v3210, 3
        %v3728 = vsel %vm3713, %v3726, %v3727
        %v3729 = vrot.slane %v3357, 3
        %v3730 = vsel %vm3713, %v3727, %v3729
        %v3731 = vrot.slane %v3342, 3
        %v3732 = vrot.slane %v3216, 3
        %v3733 = vsel %vm3713, %v3731, %v3732
        %v3734 = vrot.slane %v3358, 3
        %v3735 = vsel %vm3713, %v3732, %v3734
        %v3736 = vrot.slane %v3343, 3
        %v3737 = vrot.slane %v3222, 3
        %v3738 = vsel %vm3713, %v3736, %v3737
        %v3739 = vrot.slane %v3359, 3
        %v3740 = vsel %vm3713, %v3737, %v3739
        %v3741 = vrot.slane %v3344, 3
        %v3742 = vrot.slane %v3228, 3
        %v3743 = vsel %vm3713, %v3741, %v3742
        %v3744 = vrot.slane %v3360, 3
        %v3745 = vsel %vm3713, %v3742, %v3744
        %v3746 = vrot.slane %v3345, 3
        %v3747 = vrot.slane %v3234, 3
        %v3748 = vsel %vm3713, %v3746, %v3747
        %v3749 = vrot.slane %v3361, 3
        %v3750 = vsel %vm3713, %v3747, %v3749
        %v3751 = vrot.slane %v3346, 3
        %v3752 = vrot.slane %v3240, 3
        %v3753 = vsel %vm3713, %v3751, %v3752
        %v3754 = vrot.slane %v3362, 3
        %v3755 = vsel %vm3713, %v3752, %v3754
        %v3756 = vrot.slane %v3347, 3
        %v3757 = vrot.slane %v3246, 3
        %v3758 = vsel %vm3713, %v3756, %v3757
        %v3759 = vrot.slane %v3363, 3
        %v3760 = vsel %vm3713, %v3757, %v3759
        %v3761 = vrot.slane %v3348, 3
        %v3762 = vrot.slane %v3252, 3
        %v3763 = vsel %vm3713, %v3761, %v3762
        %v3764 = vrot.slane %v3364, 3
        %v3765 = vsel %vm3713, %v3762, %v3764
        %v3766 = vrot.slane %v3349, 3
        %v3767 = vrot.slane %v3258, 3
        %v3768 = vsel %vm3713, %v3766, %v3767
        %v3769 = vrot.slane %v3365, 3
        %v3770 = vsel %vm3713, %v3767, %v3769
        %v3771 = vrot.slane %v3350, 3
        %v3772 = vrot.slane %v3264, 3
        %v3773 = vsel %vm3713, %v3771, %v3772
        %v3774 = vrot.slane %v3366, 3
        %v3775 = vsel %vm3713, %v3772, %v3774
        %v3776 = vrot.slane %v3351, 3
        %v3777 = vrot.slane %v3270, 3
        %v3778 = vsel %vm3713, %v3776, %v3777
        %v3779 = vrot.slane %v3367, 3
        %v3780 = vsel %vm3713, %v3777, %v3779
        %v3781 = vrot.slane %v3352, 3
        %v3782 = vrot.slane %v3276, 3
        %v3783 = vsel %vm3713, %v3781, %v3782
        %v3784 = vrot.slane %v3368, 3
        %v3785 = vsel %vm3713, %v3782, %v3784
        %3786 = vrot.lane.b32.xlu0 %v3715, 6
        %v3787 = vpop.permute.xlu0 %3786
        %3788 = vrot.lane.b32.xlu0 %v3718, 6
        %v3789 = vpop.permute.xlu0 %3788
        %3790 = vrot.lane.b32.xlu0 %v3720, 6
        %v3791 = vpop.permute.xlu0 %3790
        %3792 = vrot.lane.b32.xlu0 %v3723, 6
        %v3793 = vpop.permute.xlu0 %3792
        %3794 = vrot.lane.b32.xlu0 %v3725, 6
        %v3795 = vpop.permute.xlu0 %3794
        %3796 = vrot.lane.b32.xlu0 %v3728, 6
        %v3797 = vpop.permute.xlu0 %3796
        %3798 = vrot.lane.b32.xlu0 %v3730, 6
        %v3799 = vpop.permute.xlu0 %3798
        %3800 = vrot.lane.b32.xlu0 %v3733, 6
        %v3801 = vpop.permute.xlu0 %3800
        %3802 = vrot.lane.b32.xlu0 %v3735, 6
        %v3803 = vpop.permute.xlu0 %3802
        %3804 = vrot.lane.b32.xlu0 %v3738, 6
        %v3805 = vpop.permute.xlu0 %3804
        %3806 = vrot.lane.b32.xlu0 %v3740, 6
        %v3807 = vpop.permute.xlu0 %3806
        %3808 = vrot.lane.b32.xlu0 %v3743, 6
        %v3809 = vpop.permute.xlu0 %3808
        %3810 = vrot.lane.b32.xlu0 %v3745, 6
        %v3811 = vpop.permute.xlu0 %3810
        %3812 = vrot.lane.b32.xlu0 %v3748, 6
        %v3813 = vpop.permute.xlu0 %3812
        %3814 = vrot.lane.b32.xlu0 %v3750, 6
        %v3815 = vpop.permute.xlu0 %3814
        %3816 = vrot.lane.b32.xlu0 %v3753, 6
        %v3817 = vpop.permute.xlu0 %3816
        %3818 = vrot.lane.b32.xlu0 %v3755, 6
        %v3819 = vpop.permute.xlu0 %3818
        %3820 = vrot.lane.b32.xlu0 %v3758, 6
        %v3821 = vpop.permute.xlu0 %3820
        %3822 = vrot.lane.b32.xlu0 %v3760, 6
        %v3823 = vpop.permute.xlu0 %3822
        %3824 = vrot.lane.b32.xlu0 %v3763, 6
        %v3825 = vpop.permute.xlu0 %3824
        %3826 = vrot.lane.b32.xlu0 %v3765, 6
        %v3827 = vpop.permute.xlu0 %3826
        %3828 = vrot.lane.b32.xlu0 %v3768, 6
        %v3829 = vpop.permute.xlu0 %3828
        %3830 = vrot.lane.b32.xlu0 %v3770, 6
        %v3831 = vpop.permute.xlu0 %3830
        %3832 = vrot.lane.b32.xlu0 %v3773, 6
        %v3833 = vpop.permute.xlu0 %3832
        %3834 = vrot.lane.b32.xlu0 %v3775, 6
        %v3835 = vpop.permute.xlu0 %3834
        %3836 = vrot.lane.b32.xlu0 %v3778, 6
        %v3837 = vpop.permute.xlu0 %3836
        %3838 = vrot.lane.b32.xlu0 %v3780, 6
        %v3839 = vpop.permute.xlu0 %3838
        %3840 = vrot.lane.b32.xlu0 %v3783, 6
        %v3841 = vpop.permute.xlu0 %3840
        %3842 = vrot.lane.b32.xlu0 %v3785, 6
        %v3843 = vpop.permute.xlu0 %3842
        %v3873 = vrot.slane 0.0, 4
        %v3874 = vsel %vm441, %v3873, %v3873
        %v3875 = vrot.slane %v3339, 4
        %v3876 = vrot.slane %v3198, 4
        %v3877 = vsel %vm441, %v3875, %v3876
        %v3878 = vrot.slane %v3355, 4
        %v3879 = vsel %vm441, %v3876, %v3878
        %v3880 = vrot.slane %v3340, 4
        %v3881 = vrot.slane %v3204, 4
        %v3882 = vsel %vm441, %v3880, %v3881
        %v3883 = vrot.slane %v3356, 4
        %v3884 = vsel %vm441, %v3881, %v3883
        %v3885 = vrot.slane %v3341, 4
        %v3886 = vrot.slane %v3210, 4
        %v3887 = vsel %vm441, %v3885, %v3886
        %v3888 = vrot.slane %v3357, 4
        %v3889 = vsel %vm441, %v3886, %v3888
        %v3890 = vrot.slane %v3342, 4
        %v3891 = vrot.slane %v3216, 4
        %v3892 = vsel %vm441, %v3890, %v3891
        %v3893 = vrot.slane %v3358, 4
        %v3894 = vsel %vm441, %v3891, %v3893
        %v3895 = vrot.slane %v3343, 4
        %v3896 = vrot.slane %v3222, 4
        %v3897 = vsel %vm441, %v3895, %v3896
        %v3898 = vrot.slane %v3359, 4
        %v3899 = vsel %vm441, %v3896, %v3898
        %v3900 = vrot.slane %v3344, 4
        %v3901 = vrot.slane %v3228, 4
        %v3902 = vsel %vm441, %v3900, %v3901
        %v3903 = vrot.slane %v3360, 4
        %v3904 = vsel %vm441, %v3901, %v3903
        %v3905 = vrot.slane %v3345, 4
        %v3906 = vrot.slane %v3234, 4
        %v3907 = vsel %vm441, %v3905, %v3906
        %v3908 = vrot.slane %v3361, 4
        %v3909 = vsel %vm441, %v3906, %v3908
        %v3910 = vrot.slane %v3346, 4
        %v3911 = vrot.slane %v3240, 4
        %v3912 = vsel %vm441, %v3910, %v3911
        %v3913 = vrot.slane %v3362, 4
        %v3914 = vsel %vm441, %v3911, %v3913
        %v3915 = vrot.slane %v3347, 4
        %v3916 = vrot.slane %v3246, 4
        %v3917 = vsel %vm441, %v3915, %v3916
        %v3918 = vrot.slane %v3363, 4
        %v3919 = vsel %vm441, %v3916, %v3918
        %v3920 = vrot.slane %v3348, 4
        %v3921 = vrot.slane %v3252, 4
        %v3922 = vsel %vm441, %v3920, %v3921
        %v3923 = vrot.slane %v3364, 4
        %v3924 = vsel %vm441, %v3921, %v3923
        %v3925 = vrot.slane %v3349, 4
        %v3926 = vrot.slane %v3258, 4
        %v3927 = vsel %vm441, %v3925, %v3926
        %v3928 = vrot.slane %v3365, 4
        %v3929 = vsel %vm441, %v3926, %v3928
        %v3930 = vrot.slane %v3350, 4
        %v3931 = vrot.slane %v3264, 4
        %v3932 = vsel %vm441, %v3930, %v3931
        %v3933 = vrot.slane %v3366, 4
        %v3934 = vsel %vm441, %v3931, %v3933
        %v3935 = vrot.slane %v3351, 4
        %v3936 = vrot.slane %v3270, 4
        %v3937 = vsel %vm441, %v3935, %v3936
        %v3938 = vrot.slane %v3367, 4
        %v3939 = vsel %vm441, %v3936, %v3938
        %v3940 = vrot.slane %v3352, 4
        %v3941 = vrot.slane %v3276, 4
        %v3942 = vsel %vm441, %v3940, %v3941
        %v3943 = vrot.slane %v3368, 4
        %v3944 = vsel %vm441, %v3941, %v3943
        %3945 = vrot.lane.b32.xlu0 %v3874, 8
        %v3946 = vpop.permute.xlu0 %3945
        %3947 = vrot.lane.b32.xlu0 %v3877, 8
        %v3948 = vpop.permute.xlu0 %3947
        %3949 = vrot.lane.b32.xlu0 %v3879, 8
        %v3950 = vpop.permute.xlu0 %3949
        %3951 = vrot.lane.b32.xlu0 %v3882, 8
        %v3952 = vpop.permute.xlu0 %3951
        %3953 = vrot.lane.b32.xlu0 %v3884, 8
        %v3954 = vpop.permute.xlu0 %3953
        %3955 = vrot.lane.b32.xlu0 %v3887, 8
        %v3956 = vpop.permute.xlu0 %3955
        %3957 = vrot.lane.b32.xlu0 %v3889, 8
        %v3958 = vpop.permute.xlu0 %3957
        %3959 = vrot.lane.b32.xlu0 %v3892, 8
        %v3960 = vpop.permute.xlu0 %3959
        %3961 = vrot.lane.b32.xlu0 %v3894, 8
        %v3962 = vpop.permute.xlu0 %3961
        %3963 = vrot.lane.b32.xlu0 %v3897, 8
        %v3964 = vpop.permute.xlu0 %3963
        %3965 = vrot.lane.b32.xlu0 %v3899, 8
        %v3966 = vpop.permute.xlu0 %3965
        %3967 = vrot.lane.b32.xlu0 %v3902, 8
        %v3968 = vpop.permute.xlu0 %3967
        %3969 = vrot.lane.b32.xlu0 %v3904, 8
        %v3970 = vpop.permute.xlu0 %3969
        %3971 = vrot.lane.b32.xlu0 %v3907, 8
        %v3972 = vpop.permute.xlu0 %3971
        %3973 = vrot.lane.b32.xlu0 %v3909, 8
        %v3974 = vpop.permute.xlu0 %3973
        %3975 = vrot.lane.b32.xlu0 %v3912, 8
        %v3976 = vpop.permute.xlu0 %3975
        %3977 = vrot.lane.b32.xlu0 %v3914, 8
        %v3978 = vpop.permute.xlu0 %3977
        %3979 = vrot.lane.b32.xlu0 %v3917, 8
        %v3980 = vpop.permute.xlu0 %3979
        %3981 = vrot.lane.b32.xlu0 %v3919, 8
        %v3982 = vpop.permute.xlu0 %3981
        %3983 = vrot.lane.b32.xlu0 %v3922, 8
        %v3984 = vpop.permute.xlu0 %3983
        %3985 = vrot.lane.b32.xlu0 %v3924, 8
        %v3986 = vpop.permute.xlu0 %3985
        %3987 = vrot.lane.b32.xlu0 %v3927, 8
        %v3988 = vpop.permute.xlu0 %3987
        %3989 = vrot.lane.b32.xlu0 %v3929, 8
        %v3990 = vpop.permute.xlu0 %3989
        %3991 = vrot.lane.b32.xlu0 %v3932, 8
        %v3992 = vpop.permute.xlu0 %3991
        %3993 = vrot.lane.b32.xlu0 %v3934, 8
        %v3994 = vpop.permute.xlu0 %3993
        %3995 = vrot.lane.b32.xlu0 %v3937, 8
        %v3996 = vpop.permute.xlu0 %3995
        %3997 = vrot.lane.b32.xlu0 %v3939, 8
        %v3998 = vpop.permute.xlu0 %3997
        %3999 = vrot.lane.b32.xlu0 %v3942, 8
        %v4000 = vpop.permute.xlu0 %3999
        %4001 = vrot.lane.b32.xlu0 %v3944, 8
        %v4002 = vpop.permute.xlu0 %4001
        %4033 = vrot.lane.b32.xlu0 0.0, 10
        %v4034 = vpop.permute.xlu0 %4033
        %4035 = vrot.lane.b32.xlu0 %v3339, 10
        %v4036 = vpop.permute.xlu0 %4035
        %4037 = vrot.lane.b32.xlu0 %v3198, 10
        %v4038 = vpop.permute.xlu0 %4037
        %4039 = vrot.lane.b32.xlu0 %v3340, 10
        %v4040 = vpop.permute.xlu0 %4039
        %4041 = vrot.lane.b32.xlu0 %v3204, 10
        %v4042 = vpop.permute.xlu0 %4041
        %4043 = vrot.lane.b32.xlu0 %v3341, 10
        %v4044 = vpop.permute.xlu0 %4043
        %4045 = vrot.lane.b32.xlu0 %v3210, 10
        %v4046 = vpop.permute.xlu0 %4045
        %4047 = vrot.lane.b32.xlu0 %v3342, 10
        %v4048 = vpop.permute.xlu0 %4047
        %4049 = vrot.lane.b32.xlu0 %v3216, 10
        %v4050 = vpop.permute.xlu0 %4049
        %4051 = vrot.lane.b32.xlu0 %v3343, 10
        %v4052 = vpop.permute.xlu0 %4051
        %4053 = vrot.lane.b32.xlu0 %v3222, 10
        %v4054 = vpop.permute.xlu0 %4053
        %4055 = vrot.lane.b32.xlu0 %v3344, 10
        %v4056 = vpop.permute.xlu0 %4055
        %4057 = vrot.lane.b32.xlu0 %v3228, 10
        %v4058 = vpop.permute.xlu0 %4057
        %4059 = vrot.lane.b32.xlu0 %v3345, 10
        %v4060 = vpop.permute.xlu0 %4059
        %4061 = vrot.lane.b32.xlu0 %v3234, 10
        %v4062 = vpop.permute.xlu0 %4061
        %4063 = vrot.lane.b32.xlu0 %v3346, 10
        %v4064 = vpop.permute.xlu0 %4063
        %4065 = vrot.lane.b32.xlu0 %v3240, 10
        %v4066 = vpop.permute.xlu0 %4065
        %4067 = vrot.lane.b32.xlu0 %v3347, 10
        %v4068 = vpop.permute.xlu0 %4067
        %4069 = vrot.lane.b32.xlu0 %v3246, 10
        %v4070 = vpop.permute.xlu0 %4069
        %4071 = vrot.lane.b32.xlu0 %v3348, 10
        %v4072 = vpop.permute.xlu0 %4071
        %4073 = vrot.lane.b32.xlu0 %v3252, 10
        %v4074 = vpop.permute.xlu0 %4073
        %4075 = vrot.lane.b32.xlu0 %v3349, 10
        %v4076 = vpop.permute.xlu0 %4075
        %4077 = vrot.lane.b32.xlu0 %v3258, 10
        %v4078 = vpop.permute.xlu0 %4077
        %4079 = vrot.lane.b32.xlu0 %v3350, 10
        %v4080 = vpop.permute.xlu0 %4079
        %4081 = vrot.lane.b32.xlu0 %v3264, 10
        %v4082 = vpop.permute.xlu0 %4081
        %4083 = vrot.lane.b32.xlu0 %v3351, 10
        %v4084 = vpop.permute.xlu0 %4083
        %4085 = vrot.lane.b32.xlu0 %v3270, 10
        %v4086 = vpop.permute.xlu0 %4085
        %4087 = vrot.lane.b32.xlu0 %v3352, 10
        %v4088 = vpop.permute.xlu0 %4087
        %4089 = vrot.lane.b32.xlu0 %v3276, 10
        %v4090 = vpop.permute.xlu0 %4089
        %4091 = vrot.lane.b32.xlu0 %v3353, 10
        %v4092 = vpop.permute.xlu0 %4091
        %4093 = vrot.lane.b32.xlu0 %v3282, 10
        %v4094 = vpop.permute.xlu0 %4093
        %v4127 = vrot.slane %v3353, 1
        %v4128 = vrot.slane %v3282, 1
        %v4129 = vsel %vm863, %v4127, %v4128
        %v4130 = vrot.slane %v3369, 1
        %v4131 = vsel %vm863, %v4128, %v4130
        %4132 = vrot.lane.b32.xlu0 %v1409, 12
        %v4133 = vpop.permute.xlu0 %4132
        %4134 = vrot.lane.b32.xlu0 %v3401, 12
        %v4135 = vpop.permute.xlu0 %4134
        %4136 = vrot.lane.b32.xlu0 %v3403, 12
        %v4137 = vpop.permute.xlu0 %4136
        %4138 = vrot.lane.b32.xlu0 %v3406, 12
        %v4139 = vpop.permute.xlu0 %4138
        %4140 = vrot.lane.b32.xlu0 %v3408, 12
        %v4141 = vpop.permute.xlu0 %4140
        %4142 = vrot.lane.b32.xlu0 %v3411, 12
        %v4143 = vpop.permute.xlu0 %4142
        %4144 = vrot.lane.b32.xlu0 %v3413, 12
        %v4145 = vpop.permute.xlu0 %4144
        %4146 = vrot.lane.b32.xlu0 %v3416, 12
        %v4147 = vpop.permute.xlu0 %4146
        %4148 = vrot.lane.b32.xlu0 %v3418, 12
        %v4149 = vpop.permute.xlu0 %4148
        %4150 = vrot.lane.b32.xlu0 %v3421, 12
        %v4151 = vpop.permute.xlu0 %4150
        %4152 = vrot.lane.b32.xlu0 %v3423, 12
        %v4153 = vpop.permute.xlu0 %4152
        %4154 = vrot.lane.b32.xlu0 %v3426, 12
        %v4155 = vpop.permute.xlu0 %4154
        %4156 = vrot.lane.b32.xlu0 %v3428, 12
        %v4157 = vpop.permute.xlu0 %4156
        %4158 = vrot.lane.b32.xlu0 %v3431, 12
        %v4159 = vpop.permute.xlu0 %4158
        %4160 = vrot.lane.b32.xlu0 %v3433, 12
        %v4161 = vpop.permute.xlu0 %4160
        %4162 = vrot.lane.b32.xlu0 %v3436, 12
        %v4163 = vpop.permute.xlu0 %4162
        %4164 = vrot.lane.b32.xlu0 %v3438, 12
        %v4165 = vpop.permute.xlu0 %4164
        %4166 = vrot.lane.b32.xlu0 %v3441, 12
        %v4167 = vpop.permute.xlu0 %4166
        %4168 = vrot.lane.b32.xlu0 %v3443, 12
        %v4169 = vpop.permute.xlu0 %4168
        %4170 = vrot.lane.b32.xlu0 %v3446, 12
        %v4171 = vpop.permute.xlu0 %4170
        %4172 = vrot.lane.b32.xlu0 %v3448, 12
        %v4173 = vpop.permute.xlu0 %4172
        %4174 = vrot.lane.b32.xlu0 %v3451, 12
        %v4175 = vpop.permute.xlu0 %4174
        %4176 = vrot.lane.b32.xlu0 %v3453, 12
        %v4177 = vpop.permute.xlu0 %4176
        %4178 = vrot.lane.b32.xlu0 %v3456, 12
        %v4179 = vpop.permute.xlu0 %4178
        %4180 = vrot.lane.b32.xlu0 %v3458, 12
        %v4181 = vpop.permute.xlu0 %4180
        %4182 = vrot.lane.b32.xlu0 %v3461, 12
        %v4183 = vpop.permute.xlu0 %4182
        %4184 = vrot.lane.b32.xlu0 %v3463, 12
        %v4185 = vpop.permute.xlu0 %4184
        %4186 = vrot.lane.b32.xlu0 %v3466, 12
        %v4187 = vpop.permute.xlu0 %4186
        %4188 = vrot.lane.b32.xlu0 %v3468, 12
        %v4189 = vpop.permute.xlu0 %4188
        %4190 = vrot.lane.b32.xlu0 %v4129, 12
        %v4191 = vpop.permute.xlu0 %4190
        %4192 = vrot.lane.b32.xlu0 %v4131, 12
        %v4193 = vpop.permute.xlu0 %4192
        %v4225 = vrot.slane %v3353, 2
        %v4226 = vrot.slane %v3282, 2
        %v4227 = vsel %vm1008, %v4225, %v4226
        %v4228 = vrot.slane %v3369, 2
        %v4229 = vsel %vm1008, %v4226, %v4228
        %4230 = vrot.lane.b32.xlu0 %v1579, 14
        %v4231 = vpop.permute.xlu0 %4230
        %4232 = vrot.lane.b32.xlu0 %v3558, 14
        %v4233 = vpop.permute.xlu0 %4232
        %4234 = vrot.lane.b32.xlu0 %v3560, 14
        %v4235 = vpop.permute.xlu0 %4234
        %4236 = vrot.lane.b32.xlu0 %v3563, 14
        %v4237 = vpop.permute.xlu0 %4236
        %4238 = vrot.lane.b32.xlu0 %v3565, 14
        %v4239 = vpop.permute.xlu0 %4238
        %4240 = vrot.lane.b32.xlu0 %v3568, 14
        %v4241 = vpop.permute.xlu0 %4240
        %4242 = vrot.lane.b32.xlu0 %v3570, 14
        %v4243 = vpop.permute.xlu0 %4242
        %4244 = vrot.lane.b32.xlu0 %v3573, 14
        %v4245 = vpop.permute.xlu0 %4244
        %4246 = vrot.lane.b32.xlu0 %v3575, 14
        %v4247 = vpop.permute.xlu0 %4246
        %4248 = vrot.lane.b32.xlu0 %v3578, 14
        %v4249 = vpop.permute.xlu0 %4248
        %4250 = vrot.lane.b32.xlu0 %v3580, 14
        %v4251 = vpop.permute.xlu0 %4250
        %4252 = vrot.lane.b32.xlu0 %v3583, 14
        %v4253 = vpop.permute.xlu0 %4252
        %4254 = vrot.lane.b32.xlu0 %v3585, 14
        %v4255 = vpop.permute.xlu0 %4254
        %4256 = vrot.lane.b32.xlu0 %v3588, 14
        %v4257 = vpop.permute.xlu0 %4256
        %4258 = vrot.lane.b32.xlu0 %v3590, 14
        %v4259 = vpop.permute.xlu0 %4258
        %4260 = vrot.lane.b32.xlu0 %v3593, 14
        %v4261 = vpop.permute.xlu0 %4260
        %4262 = vrot.lane.b32.xlu0 %v3595, 14
        %v4263 = vpop.permute.xlu0 %4262
        %4264 = vrot.lane.b32.xlu0 %v3598, 14
        %v4265 = vpop.permute.xlu0 %4264
        %4266 = vrot.lane.b32.xlu0 %v3600, 14
        %v4267 = vpop.permute.xlu0 %4266
        %4268 = vrot.lane.b32.xlu0 %v3603, 14
        %v4269 = vpop.permute.xlu0 %4268
        %4270 = vrot.lane.b32.xlu0 %v3605, 14
        %v4271 = vpop.permute.xlu0 %4270
        %4272 = vrot.lane.b32.xlu0 %v3608, 14
        %v4273 = vpop.permute.xlu0 %4272
        %4274 = vrot.lane.b32.xlu0 %v3610, 14
        %v4275 = vpop.permute.xlu0 %4274
        %4276 = vrot.lane.b32.xlu0 %v3613, 14
        %v4277 = vpop.permute.xlu0 %4276
        %4278 = vrot.lane.b32.xlu0 %v3615, 14
        %v4279 = vpop.permute.xlu0 %4278
        %4280 = vrot.lane.b32.xlu0 %v3618, 14
        %v4281 = vpop.permute.xlu0 %4280
        %4282 = vrot.lane.b32.xlu0 %v3620, 14
        %v4283 = vpop.permute.xlu0 %4282
        %4284 = vrot.lane.b32.xlu0 %v3623, 14
        %v4285 = vpop.permute.xlu0 %4284
        %4286 = vrot.lane.b32.xlu0 %v3625, 14
        %v4287 = vpop.permute.xlu0 %4286
        %4288 = vrot.lane.b32.xlu0 %v4227, 14
        %v4289 = vpop.permute.xlu0 %4288
        %4290 = vrot.lane.b32.xlu0 %v4229, 14
        %v4291 = vpop.permute.xlu0 %4290
        %v4323 = vrot.slane %v3353, 3
        %v4324 = vrot.slane %v3282, 3
        %v4325 = vsel %vm3713, %v4323, %v4324
        %v4326 = vrot.slane %v3369, 3
        %v4327 = vsel %vm3713, %v4324, %v4326
        %4328 = vrot.lane.b32.xlu0 %v3715, 16
        %v4329 = vpop.permute.xlu0 %4328
        %4330 = vrot.lane.b32.xlu0 %v3718, 16
        %v4331 = vpop.permute.xlu0 %4330
        %4332 = vrot.lane.b32.xlu0 %v3720, 16
        %v4333 = vpop.permute.xlu0 %4332
        %4334 = vrot.lane.b32.xlu0 %v3723, 16
        %v4335 = vpop.permute.xlu0 %4334
        %4336 = vrot.lane.b32.xlu0 %v3725, 16
        %v4337 = vpop.permute.xlu0 %4336
        %4338 = vrot.lane.b32.xlu0 %v3728, 16
        %v4339 = vpop.permute.xlu0 %4338
        %4340 = vrot.lane.b32.xlu0 %v3730, 16
        %v4341 = vpop.permute.xlu0 %4340
        %4342 = vrot.lane.b32.xlu0 %v3733, 16
        %v4343 = vpop.permute.xlu0 %4342
        %4344 = vrot.lane.b32.xlu0 %v3735, 16
        %v4345 = vpop.permute.xlu0 %4344
        %4346 = vrot.lane.b32.xlu0 %v3738, 16
        %v4347 = vpop.permute.xlu0 %4346
        %4348 = vrot.lane.b32.xlu0 %v3740, 16
        %v4349 = vpop.permute.xlu0 %4348
        %4350 = vrot.lane.b32.xlu0 %v3743, 16
        %v4351 = vpop.permute.xlu0 %4350
        %4352 = vrot.lane.b32.xlu0 %v3745, 16
        %v4353 = vpop.permute.xlu0 %4352
        %4354 = vrot.lane.b32.xlu0 %v3748, 16
        %v4355 = vpop.permute.xlu0 %4354
        %4356 = vrot.lane.b32.xlu0 %v3750, 16
        %v4357 = vpop.permute.xlu0 %4356
        %4358 = vrot.lane.b32.xlu0 %v3753, 16
        %v4359 = vpop.permute.xlu0 %4358
        %4360 = vrot.lane.b32.xlu0 %v3755, 16
        %v4361 = vpop.permute.xlu0 %4360
        %4362 = vrot.lane.b32.xlu0 %v3758, 16
        %v4363 = vpop.permute.xlu0 %4362
        %4364 = vrot.lane.b32.xlu0 %v3760, 16
        %v4365 = vpop.permute.xlu0 %4364
        %4366 = vrot.lane.b32.xlu0 %v3763, 16
        %v4367 = vpop.permute.xlu0 %4366
        %4368 = vrot.lane.b32.xlu0 %v3765, 16
        %v4369 = vpop.permute.xlu0 %4368
        %4370 = vrot.lane.b32.xlu0 %v3768, 16
        %v4371 = vpop.permute.xlu0 %4370
        %4372 = vrot.lane.b32.xlu0 %v3770, 16
        %v4373 = vpop.permute.xlu0 %4372
        %4374 = vrot.lane.b32.xlu0 %v3773, 16
        %v4375 = vpop.permute.xlu0 %4374
        %4376 = vrot.lane.b32.xlu0 %v3775, 16
        %v4377 = vpop.permute.xlu0 %4376
        %4378 = vrot.lane.b32.xlu0 %v3778, 16
        %v4379 = vpop.permute.xlu0 %4378
        %4380 = vrot.lane.b32.xlu0 %v3780, 16
        %v4381 = vpop.permute.xlu0 %4380
        %4382 = vrot.lane.b32.xlu0 %v3783, 16
        %v4383 = vpop.permute.xlu0 %4382
        %4384 = vrot.lane.b32.xlu0 %v3785, 16
        %v4385 = vpop.permute.xlu0 %4384
        %4386 = vrot.lane.b32.xlu0 %v4325, 16
        %v4387 = vpop.permute.xlu0 %4386
        %4388 = vrot.lane.b32.xlu0 %v4327, 16
        %v4389 = vpop.permute.xlu0 %4388
        %v4421 = vrot.slane %v3353, 4
        %v4422 = vrot.slane %v3282, 4
        %v4423 = vsel %vm441, %v4421, %v4422
        %v4424 = vrot.slane %v3369, 4
        %v4425 = vsel %vm441, %v4422, %v4424
        %4426 = vrot.lane.b32.xlu0 %v3874, 18
        %v4427 = vpop.permute.xlu0 %4426
        %4428 = vrot.lane.b32.xlu0 %v3877, 18
        %v4429 = vpop.permute.xlu0 %4428
        %4430 = vrot.lane.b32.xlu0 %v3879, 18
        %v4431 = vpop.permute.xlu0 %4430
        %4432 = vrot.lane.b32.xlu0 %v3882, 18
        %v4433 = vpop.permute.xlu0 %4432
        %4434 = vrot.lane.b32.xlu0 %v3884, 18
        %v4435 = vpop.permute.xlu0 %4434
        %4436 = vrot.lane.b32.xlu0 %v3887, 18
        %v4437 = vpop.permute.xlu0 %4436
        %4438 = vrot.lane.b32.xlu0 %v3889, 18
        %v4439 = vpop.permute.xlu0 %4438
        %4440 = vrot.lane.b32.xlu0 %v3892, 18
        %v4441 = vpop.permute.xlu0 %4440
        %4442 = vrot.lane.b32.xlu0 %v3894, 18
        %v4443 = vpop.permute.xlu0 %4442
        %4444 = vrot.lane.b32.xlu0 %v3897, 18
        %v4445 = vpop.permute.xlu0 %4444
        %4446 = vrot.lane.b32.xlu0 %v3899, 18
        %v4447 = vpop.permute.xlu0 %4446
        %4448 = vrot.lane.b32.xlu0 %v3902, 18
        %v4449 = vpop.permute.xlu0 %4448
        %4450 = vrot.lane.b32.xlu0 %v3904, 18
        %v4451 = vpop.permute.xlu0 %4450
        %4452 = vrot.lane.b32.xlu0 %v3907, 18
        %v4453 = vpop.permute.xlu0 %4452
        %4454 = vrot.lane.b32.xlu0 %v3909, 18
        %v4455 = vpop.permute.xlu0 %4454
        %4456 = vrot.lane.b32.xlu0 %v3912, 18
        %v4457 = vpop.permute.xlu0 %4456
        %4458 = vrot.lane.b32.xlu0 %v3914, 18
        %v4459 = vpop.permute.xlu0 %4458
        %4460 = vrot.lane.b32.xlu0 %v3917, 18
        %v4461 = vpop.permute.xlu0 %4460
        %4462 = vrot.lane.b32.xlu0 %v3919, 18
        %v4463 = vpop.permute.xlu0 %4462
        %4464 = vrot.lane.b32.xlu0 %v3922, 18
        %v4465 = vpop.permute.xlu0 %4464
        %4466 = vrot.lane.b32.xlu0 %v3924, 18
        %v4467 = vpop.permute.xlu0 %4466
        %4468 = vrot.lane.b32.xlu0 %v3927, 18
        %v4469 = vpop.permute.xlu0 %4468
        %4470 = vrot.lane.b32.xlu0 %v3929, 18
        %v4471 = vpop.permute.xlu0 %4470
        %4472 = vrot.lane.b32.xlu0 %v3932, 18
        %v4473 = vpop.permute.xlu0 %4472
        %4474 = vrot.lane.b32.xlu0 %v3934, 18
        %v4475 = vpop.permute.xlu0 %4474
        %4476 = vrot.lane.b32.xlu0 %v3937, 18
        %v4477 = vpop.permute.xlu0 %4476
        %4478 = vrot.lane.b32.xlu0 %v3939, 18
        %v4479 = vpop.permute.xlu0 %4478
        %4480 = vrot.lane.b32.xlu0 %v3942, 18
        %v4481 = vpop.permute.xlu0 %4480
        %4482 = vrot.lane.b32.xlu0 %v3944, 18
        %v4483 = vpop.permute.xlu0 %4482
        %4484 = vrot.lane.b32.xlu0 %v4423, 18
        %v4485 = vpop.permute.xlu0 %4484
        %4486 = vrot.lane.b32.xlu0 %v4425, 18
        %v4487 = vpop.permute.xlu0 %4486
        %4520 = vrot.lane.b32.xlu0 %v3339, 20
        %v4521 = vpop.permute.xlu0 %4520
        %4522 = vrot.lane.b32.xlu0 %v3198, 20
        %v4523 = vpop.permute.xlu0 %4522
        %4524 = vrot.lane.b32.xlu0 %v3340, 20
        %v4525 = vpop.permute.xlu0 %4524
        %4526 = vrot.lane.b32.xlu0 %v3204, 20
        %v4527 = vpop.permute.xlu0 %4526
        %4528 = vrot.lane.b32.xlu0 %v3341, 20
        %v4529 = vpop.permute.xlu0 %4528
        %4530 = vrot.lane.b32.xlu0 %v3210, 20
        %v4531 = vpop.permute.xlu0 %4530
        %4532 = vrot.lane.b32.xlu0 %v3342, 20
        %v4533 = vpop.permute.xlu0 %4532
        %4534 = vrot.lane.b32.xlu0 %v3216, 20
        %v4535 = vpop.permute.xlu0 %4534
        %4536 = vrot.lane.b32.xlu0 %v3343, 20
        %v4537 = vpop.permute.xlu0 %4536
        %4538 = vrot.lane.b32.xlu0 %v3222, 20
        %v4539 = vpop.permute.xlu0 %4538
        %4540 = vrot.lane.b32.xlu0 %v3344, 20
        %v4541 = vpop.permute.xlu0 %4540
        %4542 = vrot.lane.b32.xlu0 %v3228, 20
        %v4543 = vpop.permute.xlu0 %4542
        %4544 = vrot.lane.b32.xlu0 %v3345, 20
        %v4545 = vpop.permute.xlu0 %4544
        %4546 = vrot.lane.b32.xlu0 %v3234, 20
        %v4547 = vpop.permute.xlu0 %4546
        %4548 = vrot.lane.b32.xlu0 %v3346, 20
        %v4549 = vpop.permute.xlu0 %4548
        %4550 = vrot.lane.b32.xlu0 %v3240, 20
        %v4551 = vpop.permute.xlu0 %4550
        %4552 = vrot.lane.b32.xlu0 %v3347, 20
        %v4553 = vpop.permute.xlu0 %4552
        %4554 = vrot.lane.b32.xlu0 %v3246, 20
        %v4555 = vpop.permute.xlu0 %4554
        %4556 = vrot.lane.b32.xlu0 %v3348, 20
        %v4557 = vpop.permute.xlu0 %4556
        %4558 = vrot.lane.b32.xlu0 %v3252, 20
        %v4559 = vpop.permute.xlu0 %4558
        %4560 = vrot.lane.b32.xlu0 %v3349, 20
        %v4561 = vpop.permute.xlu0 %4560
        %4562 = vrot.lane.b32.xlu0 %v3258, 20
        %v4563 = vpop.permute.xlu0 %4562
        %4564 = vrot.lane.b32.xlu0 %v3350, 20
        %v4565 = vpop.permute.xlu0 %4564
        %4566 = vrot.lane.b32.xlu0 %v3264, 20
        %v4567 = vpop.permute.xlu0 %4566
        %4568 = vrot.lane.b32.xlu0 %v3351, 20
        %v4569 = vpop.permute.xlu0 %4568
        %4570 = vrot.lane.b32.xlu0 %v3270, 20
        %v4571 = vpop.permute.xlu0 %4570
        %4572 = vrot.lane.b32.xlu0 %v3352, 20
        %v4573 = vpop.permute.xlu0 %4572
        %4574 = vrot.lane.b32.xlu0 %v3276, 20
        %v4575 = vpop.permute.xlu0 %4574
        %4576 = vrot.lane.b32.xlu0 %v3353, 20
        %v4577 = vpop.permute.xlu0 %4576
        %4578 = vrot.lane.b32.xlu0 %v3282, 20
        %v4579 = vpop.permute.xlu0 %4578
        %4580 = vrot.lane.b32.xlu0 %v3354, 20
        %v4581 = vpop.permute.xlu0 %4580
        %4582 = vrot.lane.b32.xlu0 %v3288, 20
        %v4583 = vpop.permute.xlu0 %4582
        %v4617 = vrot.slane %v3354, 1
        %v4618 = vrot.slane %v3288, 1
        %v4619 = vsel %vm863, %v4617, %v4618
        %v4620 = vrot.slane %v3370, 1
        %v4621 = vsel %vm863, %v4618, %v4620
        %4622 = vrot.lane.b32.xlu0 %v3401, 22
        %v4623 = vpop.permute.xlu0 %4622
        %4624 = vrot.lane.b32.xlu0 %v3403, 22
        %v4625 = vpop.permute.xlu0 %4624
        %4626 = vrot.lane.b32.xlu0 %v3406, 22
        %v4627 = vpop.permute.xlu0 %4626
        %4628 = vrot.lane.b32.xlu0 %v3408, 22
        %v4629 = vpop.permute.xlu0 %4628
        %4630 = vrot.lane.b32.xlu0 %v3411, 22
        %v4631 = vpop.permute.xlu0 %4630
        %4632 = vrot.lane.b32.xlu0 %v3413, 22
        %v4633 = vpop.permute.xlu0 %4632
        %4634 = vrot.lane.b32.xlu0 %v3416, 22
        %v4635 = vpop.permute.xlu0 %4634
        %4636 = vrot.lane.b32.xlu0 %v3418, 22
        %v4637 = vpop.permute.xlu0 %4636
        %4638 = vrot.lane.b32.xlu0 %v3421, 22
        %v4639 = vpop.permute.xlu0 %4638
        %4640 = vrot.lane.b32.xlu0 %v3423, 22
        %v4641 = vpop.permute.xlu0 %4640
        %4642 = vrot.lane.b32.xlu0 %v3426, 22
        %v4643 = vpop.permute.xlu0 %4642
        %4644 = vrot.lane.b32.xlu0 %v3428, 22
        %v4645 = vpop.permute.xlu0 %4644
        %4646 = vrot.lane.b32.xlu0 %v3431, 22
        %v4647 = vpop.permute.xlu0 %4646
        %4648 = vrot.lane.b32.xlu0 %v3433, 22
        %v4649 = vpop.permute.xlu0 %4648
        %4650 = vrot.lane.b32.xlu0 %v3436, 22
        %v4651 = vpop.permute.xlu0 %4650
        %4652 = vrot.lane.b32.xlu0 %v3438, 22
        %v4653 = vpop.permute.xlu0 %4652
        %4654 = vrot.lane.b32.xlu0 %v3441, 22
        %v4655 = vpop.permute.xlu0 %4654
        %4656 = vrot.lane.b32.xlu0 %v3443, 22
        %v4657 = vpop.permute.xlu0 %4656
        %4658 = vrot.lane.b32.xlu0 %v3446, 22
        %v4659 = vpop.permute.xlu0 %4658
        %4660 = vrot.lane.b32.xlu0 %v3448, 22
        %v4661 = vpop.permute.xlu0 %4660
        %4662 = vrot.lane.b32.xlu0 %v3451, 22
        %v4663 = vpop.permute.xlu0 %4662
        %4664 = vrot.lane.b32.xlu0 %v3453, 22
        %v4665 = vpop.permute.xlu0 %4664
        %4666 = vrot.lane.b32.xlu0 %v3456, 22
        %v4667 = vpop.permute.xlu0 %4666
        %4668 = vrot.lane.b32.xlu0 %v3458, 22
        %v4669 = vpop.permute.xlu0 %4668
        %4670 = vrot.lane.b32.xlu0 %v3461, 22
        %v4671 = vpop.permute.xlu0 %4670
        %4672 = vrot.lane.b32.xlu0 %v3463, 22
        %v4673 = vpop.permute.xlu0 %4672
        %4674 = vrot.lane.b32.xlu0 %v3466, 22
        %v4675 = vpop.permute.xlu0 %4674
        %4676 = vrot.lane.b32.xlu0 %v3468, 22
        %v4677 = vpop.permute.xlu0 %4676
        %4678 = vrot.lane.b32.xlu0 %v4129, 22
        %v4679 = vpop.permute.xlu0 %4678
        %4680 = vrot.lane.b32.xlu0 %v4131, 22
        %v4681 = vpop.permute.xlu0 %4680
        %4682 = vrot.lane.b32.xlu0 %v4619, 22
        %v4683 = vpop.permute.xlu0 %4682
        %4684 = vrot.lane.b32.xlu0 %v4621, 22
        %v4685 = vpop.permute.xlu0 %4684
        %v4718 = vrot.slane %v3354, 2
        %v4719 = vrot.slane %v3288, 2
        %v4720 = vsel %vm1008, %v4718, %v4719
        %v4721 = vrot.slane %v3370, 2
        %v4722 = vsel %vm1008, %v4719, %v4721
        %4723 = vrot.lane.b32.xlu0 %v3558, 24
        %v4724 = vpop.permute.xlu0 %4723
        %4725 = vrot.lane.b32.xlu0 %v3560, 24
        %v4726 = vpop.permute.xlu0 %4725
        %4727 = vrot.lane.b32.xlu0 %v3563, 24
        %v4728 = vpop.permute.xlu0 %4727
        %4729 = vrot.lane.b32.xlu0 %v3565, 24
        %v4730 = vpop.permute.xlu0 %4729
        %4731 = vrot.lane.b32.xlu0 %v3568, 24
        %v4732 = vpop.permute.xlu0 %4731
        %4733 = vrot.lane.b32.xlu0 %v3570, 24
        %v4734 = vpop.permute.xlu0 %4733
        %4735 = vrot.lane.b32.xlu0 %v3573, 24
        %v4736 = vpop.permute.xlu0 %4735
        %4737 = vrot.lane.b32.xlu0 %v3575, 24
        %v4738 = vpop.permute.xlu0 %4737
        %4739 = vrot.lane.b32.xlu0 %v3578, 24
        %v4740 = vpop.permute.xlu0 %4739
        %4741 = vrot.lane.b32.xlu0 %v3580, 24
        %v4742 = vpop.permute.xlu0 %4741
        %4743 = vrot.lane.b32.xlu0 %v3583, 24
        %v4744 = vpop.permute.xlu0 %4743
        %4745 = vrot.lane.b32.xlu0 %v3585, 24
        %v4746 = vpop.permute.xlu0 %4745
        %4747 = vrot.lane.b32.xlu0 %v3588, 24
        %v4748 = vpop.permute.xlu0 %4747
        %4749 = vrot.lane.b32.xlu0 %v3590, 24
        %v4750 = vpop.permute.xlu0 %4749
        %4751 = vrot.lane.b32.xlu0 %v3593, 24
        %v4752 = vpop.permute.xlu0 %4751
        %4753 = vrot.lane.b32.xlu0 %v3595, 24
        %v4754 = vpop.permute.xlu0 %4753
        %4755 = vrot.lane.b32.xlu0 %v3598, 24
        %v4756 = vpop.permute.xlu0 %4755
        %4757 = vrot.lane.b32.xlu0 %v3600, 24
        %v4758 = vpop.permute.xlu0 %4757
        %4759 = vrot.lane.b32.xlu0 %v3603, 24
        %v4760 = vpop.permute.xlu0 %4759
        %4761 = vrot.lane.b32.xlu0 %v3605, 24
        %v4762 = vpop.permute.xlu0 %4761
        %4763 = vrot.lane.b32.xlu0 %v3608, 24
        %v4764 = vpop.permute.xlu0 %4763
        %4765 = vrot.lane.b32.xlu0 %v3610, 24
        %v4766 = vpop.permute.xlu0 %4765
        %4767 = vrot.lane.b32.xlu0 %v3613, 24
        %v4768 = vpop.permute.xlu0 %4767
        %4769 = vrot.lane.b32.xlu0 %v3615, 24
        %v4770 = vpop.permute.xlu0 %4769
        %4771 = vrot.lane.b32.xlu0 %v3618, 24
        %v4772 = vpop.permute.xlu0 %4771
        %4773 = vrot.lane.b32.xlu0 %v3620, 24
        %v4774 = vpop.permute.xlu0 %4773
        %4775 = vrot.lane.b32.xlu0 %v3623, 24
        %v4776 = vpop.permute.xlu0 %4775
        %4777 = vrot.lane.b32.xlu0 %v3625, 24
        %v4778 = vpop.permute.xlu0 %4777
        %4779 = vrot.lane.b32.xlu0 %v4227, 24
        %v4780 = vpop.permute.xlu0 %4779
        %4781 = vrot.lane.b32.xlu0 %v4229, 24
        %v4782 = vpop.permute.xlu0 %4781
        %4783 = vrot.lane.b32.xlu0 %v4720, 24
        %v4784 = vpop.permute.xlu0 %4783
        %4785 = vrot.lane.b32.xlu0 %v4722, 24
        %v4786 = vpop.permute.xlu0 %4785
        %v4819 = vrot.slane %v3354, 3
        %v4820 = vrot.slane %v3288, 3
        %v4821 = vsel %vm3713, %v4819, %v4820
        %v4822 = vrot.slane %v3370, 3
        %v4823 = vsel %vm3713, %v4820, %v4822
        %4824 = vrot.lane.b32.xlu0 %v3718, 26
        %v4825 = vpop.permute.xlu0 %4824
        %4826 = vrot.lane.b32.xlu0 %v3720, 26
        %v4827 = vpop.permute.xlu0 %4826
        %4828 = vrot.lane.b32.xlu0 %v3723, 26
        %v4829 = vpop.permute.xlu0 %4828
        %4830 = vrot.lane.b32.xlu0 %v3725, 26
        %v4831 = vpop.permute.xlu0 %4830
        %4832 = vrot.lane.b32.xlu0 %v3728, 26
        %v4833 = vpop.permute.xlu0 %4832
        %4834 = vrot.lane.b32.xlu0 %v3730, 26
        %v4835 = vpop.permute.xlu0 %4834
        %4836 = vrot.lane.b32.xlu0 %v3733, 26
        %v4837 = vpop.permute.xlu0 %4836
        %4838 = vrot.lane.b32.xlu0 %v3735, 26
        %v4839 = vpop.permute.xlu0 %4838
        %4840 = vrot.lane.b32.xlu0 %v3738, 26
        %v4841 = vpop.permute.xlu0 %4840
        %4842 = vrot.lane.b32.xlu0 %v3740, 26
        %v4843 = vpop.permute.xlu0 %4842
        %4844 = vrot.lane.b32.xlu0 %v3743, 26
        %v4845 = vpop.permute.xlu0 %4844
        %4846 = vrot.lane.b32.xlu0 %v3745, 26
        %v4847 = vpop.permute.xlu0 %4846
        %4848 = vrot.lane.b32.xlu0 %v3748, 26
        %v4849 = vpop.permute.xlu0 %4848
        %4850 = vrot.lane.b32.xlu0 %v3750, 26
        %v4851 = vpop.permute.xlu0 %4850
        %4852 = vrot.lane.b32.xlu0 %v3753, 26
        %v4853 = vpop.permute.xlu0 %4852
        %4854 = vrot.lane.b32.xlu0 %v3755, 26
        %v4855 = vpop.permute.xlu0 %4854
        %4856 = vrot.lane.b32.xlu0 %v3758, 26
        %v4857 = vpop.permute.xlu0 %4856
        %4858 = vrot.lane.b32.xlu0 %v3760, 26
        %v4859 = vpop.permute.xlu0 %4858
        %4860 = vrot.lane.b32.xlu0 %v3763, 26
        %v4861 = vpop.permute.xlu0 %4860
        %4862 = vrot.lane.b32.xlu0 %v3765, 26
        %v4863 = vpop.permute.xlu0 %4862
        %4864 = vrot.lane.b32.xlu0 %v3768, 26
        %v4865 = vpop.permute.xlu0 %4864
        %4866 = vrot.lane.b32.xlu0 %v3770, 26
        %v4867 = vpop.permute.xlu0 %4866
        %4868 = vrot.lane.b32.xlu0 %v3773, 26
        %v4869 = vpop.permute.xlu0 %4868
        %4870 = vrot.lane.b32.xlu0 %v3775, 26
        %v4871 = vpop.permute.xlu0 %4870
        %4872 = vrot.lane.b32.xlu0 %v3778, 26
        %v4873 = vpop.permute.xlu0 %4872
        %4874 = vrot.lane.b32.xlu0 %v3780, 26
        %v4875 = vpop.permute.xlu0 %4874
        %4876 = vrot.lane.b32.xlu0 %v3783, 26
        %v4877 = vpop.permute.xlu0 %4876
        %4878 = vrot.lane.b32.xlu0 %v3785, 26
        %v4879 = vpop.permute.xlu0 %4878
        %4880 = vrot.lane.b32.xlu0 %v4325, 26
        %v4881 = vpop.permute.xlu0 %4880
        %4882 = vrot.lane.b32.xlu0 %v4327, 26
        %v4883 = vpop.permute.xlu0 %4882
        %4884 = vrot.lane.b32.xlu0 %v4821, 26
        %v4885 = vpop.permute.xlu0 %4884
        %4886 = vrot.lane.b32.xlu0 %v4823, 26
        %v4887 = vpop.permute.xlu0 %4886
        %v4920 = vrot.slane %v3354, 4
        %v4921 = vrot.slane %v3288, 4
        %v4922 = vsel %vm441, %v4920, %v4921
        %v4923 = vrot.slane %v3370, 4
        %v4924 = vsel %vm441, %v4921, %v4923
        %4925 = vrot.lane.b32.xlu0 %v3877, 28
        %v4926 = vpop.permute.xlu0 %4925
        %4927 = vrot.lane.b32.xlu0 %v3879, 28
        %v4928 = vpop.permute.xlu0 %4927
        %4929 = vrot.lane.b32.xlu0 %v3882, 28
        %v4930 = vpop.permute.xlu0 %4929
        %4931 = vrot.lane.b32.xlu0 %v3884, 28
        %v4932 = vpop.permute.xlu0 %4931
        %4933 = vrot.lane.b32.xlu0 %v3887, 28
        %v4934 = vpop.permute.xlu0 %4933
        %4935 = vrot.lane.b32.xlu0 %v3889, 28
        %v4936 = vpop.permute.xlu0 %4935
        %4937 = vrot.lane.b32.xlu0 %v3892, 28
        %v4938 = vpop.permute.xlu0 %4937
        %4939 = vrot.lane.b32.xlu0 %v3894, 28
        %v4940 = vpop.permute.xlu0 %4939
        %4941 = vrot.lane.b32.xlu0 %v3897, 28
        %v4942 = vpop.permute.xlu0 %4941
        %4943 = vrot.lane.b32.xlu0 %v3899, 28
        %v4944 = vpop.permute.xlu0 %4943
        %4945 = vrot.lane.b32.xlu0 %v3902, 28
        %v4946 = vpop.permute.xlu0 %4945
        %4947 = vrot.lane.b32.xlu0 %v3904, 28
        %v4948 = vpop.permute.xlu0 %4947
        %4949 = vrot.lane.b32.xlu0 %v3907, 28
        %v4950 = vpop.permute.xlu0 %4949
        %4951 = vrot.lane.b32.xlu0 %v3909, 28
        %v4952 = vpop.permute.xlu0 %4951
        %4953 = vrot.lane.b32.xlu0 %v3912, 28
        %v4954 = vpop.permute.xlu0 %4953
        %4955 = vrot.lane.b32.xlu0 %v3914, 28
        %v4956 = vpop.permute.xlu0 %4955
        %4957 = vrot.lane.b32.xlu0 %v3917, 28
        %v4958 = vpop.permute.xlu0 %4957
        %4959 = vrot.lane.b32.xlu0 %v3919, 28
        %v4960 = vpop.permute.xlu0 %4959
        %4961 = vrot.lane.b32.xlu0 %v3922, 28
        %v4962 = vpop.permute.xlu0 %4961
        %4963 = vrot.lane.b32.xlu0 %v3924, 28
        %v4964 = vpop.permute.xlu0 %4963
        %4965 = vrot.lane.b32.xlu0 %v3927, 28
        %v4966 = vpop.permute.xlu0 %4965
        %4967 = vrot.lane.b32.xlu0 %v3929, 28
        %v4968 = vpop.permute.xlu0 %4967
        %4969 = vrot.lane.b32.xlu0 %v3932, 28
        %v4970 = vpop.permute.xlu0 %4969
        %4971 = vrot.lane.b32.xlu0 %v3934, 28
        %v4972 = vpop.permute.xlu0 %4971
        %4973 = vrot.lane.b32.xlu0 %v3937, 28
        %v4974 = vpop.permute.xlu0 %4973
        %4975 = vrot.lane.b32.xlu0 %v3939, 28
        %v4976 = vpop.permute.xlu0 %4975
        %4977 = vrot.lane.b32.xlu0 %v3942, 28
        %v4978 = vpop.permute.xlu0 %4977
        %4979 = vrot.lane.b32.xlu0 %v3944, 28
        %v4980 = vpop.permute.xlu0 %4979
        %4981 = vrot.lane.b32.xlu0 %v4423, 28
        %v4982 = vpop.permute.xlu0 %4981
        %4983 = vrot.lane.b32.xlu0 %v4425, 28
        %v4984 = vpop.permute.xlu0 %4983
        %4985 = vrot.lane.b32.xlu0 %v4922, 28
        %v4986 = vpop.permute.xlu0 %4985
        %4987 = vrot.lane.b32.xlu0 %v4924, 28
        %v4988 = vpop.permute.xlu0 %4987
        %5021 = vrot.lane.b32.xlu0 %v3340, 30
        %v5022 = vpop.permute.xlu0 %5021
        %5023 = vrot.lane.b32.xlu0 %v3204, 30
        %v5024 = vpop.permute.xlu0 %5023
        %5025 = vrot.lane.b32.xlu0 %v3341, 30
        %v5026 = vpop.permute.xlu0 %5025
        %5027 = vrot.lane.b32.xlu0 %v3210, 30
        %v5028 = vpop.permute.xlu0 %5027
        %5029 = vrot.lane.b32.xlu0 %v3342, 30
        %v5030 = vpop.permute.xlu0 %5029
        %5031 = vrot.lane.b32.xlu0 %v3216, 30
        %v5032 = vpop.permute.xlu0 %5031
        %5033 = vrot.lane.b32.xlu0 %v3343, 30
        %v5034 = vpop.permute.xlu0 %5033
        %5035 = vrot.lane.b32.xlu0 %v3222, 30
        %v5036 = vpop.permute.xlu0 %5035
        %5037 = vrot.lane.b32.xlu0 %v3344, 30
        %v5038 = vpop.permute.xlu0 %5037
        %5039 = vrot.lane.b32.xlu0 %v3228, 30
        %v5040 = vpop.permute.xlu0 %5039
        %5041 = vrot.lane.b32.xlu0 %v3345, 30
        %v5042 = vpop.permute.xlu0 %5041
        %5043 = vrot.lane.b32.xlu0 %v3234, 30
        %v5044 = vpop.permute.xlu0 %5043
        %5045 = vrot.lane.b32.xlu0 %v3346, 30
        %v5046 = vpop.permute.xlu0 %5045
        %5047 = vrot.lane.b32.xlu0 %v3240, 30
        %v5048 = vpop.permute.xlu0 %5047
        %5049 = vrot.lane.b32.xlu0 %v3347, 30
        %v5050 = vpop.permute.xlu0 %5049
        %5051 = vrot.lane.b32.xlu0 %v3246, 30
        %v5052 = vpop.permute.xlu0 %5051
        %5053 = vrot.lane.b32.xlu0 %v3348, 30
        %v5054 = vpop.permute.xlu0 %5053
        %5055 = vrot.lane.b32.xlu0 %v3252, 30
        %v5056 = vpop.permute.xlu0 %5055
        %5057 = vrot.lane.b32.xlu0 %v3349, 30
        %v5058 = vpop.permute.xlu0 %5057
        %5059 = vrot.lane.b32.xlu0 %v3258, 30
        %v5060 = vpop.permute.xlu0 %5059
        %5061 = vrot.lane.b32.xlu0 %v3350, 30
        %v5062 = vpop.permute.xlu0 %5061
        %5063 = vrot.lane.b32.xlu0 %v3264, 30
        %v5064 = vpop.permute.xlu0 %5063
        %5065 = vrot.lane.b32.xlu0 %v3351, 30
        %v5066 = vpop.permute.xlu0 %5065
        %5067 = vrot.lane.b32.xlu0 %v3270, 30
        %v5068 = vpop.permute.xlu0 %5067
        %5069 = vrot.lane.b32.xlu0 %v3352, 30
        %v5070 = vpop.permute.xlu0 %5069
        %5071 = vrot.lane.b32.xlu0 %v3276, 30
        %v5072 = vpop.permute.xlu0 %5071
        %5073 = vrot.lane.b32.xlu0 %v3353, 30
        %v5074 = vpop.permute.xlu0 %5073
        %5075 = vrot.lane.b32.xlu0 %v3282, 30
        %v5076 = vpop.permute.xlu0 %5075
        %5077 = vrot.lane.b32.xlu0 %v3354, 30
        %v5078 = vpop.permute.xlu0 %5077
        %5079 = vrot.lane.b32.xlu0 %v3288, 30
        %v5080 = vpop.permute.xlu0 %5079
        %5081 = vrot.lane.b32.xlu0 0.0, 30
        %v5082 = vpop.permute.xlu0 %5081
        %vm5114 = vcmask 15360
        %v5115 = vsel %vm5114, 0.0, %v3470
        %v5116 = vsel %vm5114, %v3339, %v3472
        %v5117 = vsel %vm5114, %v3198, %v3474
        %v5118 = vsel %vm5114, %v3340, %v3476
        %v5119 = vsel %vm5114, %v3204, %v3478
        %v5120 = vsel %vm5114, %v3341, %v3480
        %v5121 = vsel %vm5114, %v3210, %v3482
        %v5122 = vsel %vm5114, %v3342, %v3484
        %v5123 = vsel %vm5114, %v3216, %v3486
        %v5124 = vsel %vm5114, %v3343, %v3488
        %v5125 = vsel %vm5114, %v3222, %v3490
        %v5126 = vsel %vm5114, %v3344, %v3492
        %v5127 = vsel %vm5114, %v3228, %v3494
        %v5128 = vsel %vm5114, %v3345, %v3496
        %v5129 = vsel %vm5114, %v3234, %v3498
        %v5130 = vsel %vm5114, %v3346, %v3500
        %v5131 = vsel %vm5114, %v3240, %v3502
        %v5132 = vsel %vm5114, %v3347, %v3504
        %v5133 = vsel %vm5114, %v3246, %v3506
        %v5134 = vsel %vm5114, %v3348, %v3508
        %v5135 = vsel %vm5114, %v3252, %v3510
        %v5136 = vsel %vm5114, %v3349, %v3512
        %v5137 = vsel %vm5114, %v3258, %v3514
        %v5138 = vsel %vm5114, %v3350, %v3516
        %v5139 = vsel %vm5114, %v3264, %v3518
        %v5140 = vsel %vm5114, %v3351, %v3520
        %v5141 = vsel %vm5114, %v3270, %v3522
        %v5142 = vsel %vm5114, %v3352, %v3524
        %v5143 = vsel %vm5114, %v3276, %v3526
        %v5144 = vsel %vm344, %v5115, %v3627
        %v5145 = vsel %vm344, %v5116, %v3629
        %v5146 = vsel %vm344, %v5117, %v3631
        %v5147 = vsel %vm344, %v5118, %v3633
        %v5148 = vsel %vm344, %v5119, %v3635
        %v5149 = vsel %vm344, %v5120, %v3637
        %v5150 = vsel %vm344, %v5121, %v3639
        %v5151 = vsel %vm344, %v5122, %v3641
        %v5152 = vsel %vm344, %v5123, %v3643
        %v5153 = vsel %vm344, %v5124, %v3645
        %v5154 = vsel %vm344, %v5125, %v3647
        %v5155 = vsel %vm344, %v5126, %v3649
        %v5156 = vsel %vm344, %v5127, %v3651
        %v5157 = vsel %vm344, %v5128, %v3653
        %v5158 = vsel %vm344, %v5129, %v3655
        %v5159 = vsel %vm344, %v5130, %v3657
        %v5160 = vsel %vm344, %v5131, %v3659
        %v5161 = vsel %vm344, %v5132, %v3661
        %v5162 = vsel %vm344, %v5133, %v3663
        %v5163 = vsel %vm344, %v5134, %v3665
        %v5164 = vsel %vm344, %v5135, %v3667
        %v5165 = vsel %vm344, %v5136, %v3669
        %v5166 = vsel %vm344, %v5137, %v3671
        %v5167 = vsel %vm344, %v5138, %v3673
        %v5168 = vsel %vm344, %v5139, %v3675
        %v5169 = vsel %vm344, %v5140, %v3677
        %v5170 = vsel %vm344, %v5141, %v3679
        %v5171 = vsel %vm344, %v5142, %v3681
        %v5172 = vsel %vm344, %v5143, %v3683
        %vm5173 = vcmask 48128
        %v5174 = vsel %vm5173, %v5144, %v3787
        %v5175 = vsel %vm5173, %v5145, %v3789
        %v5176 = vsel %vm5173, %v5146, %v3791
        %v5177 = vsel %vm5173, %v5147, %v3793
        %v5178 = vsel %vm5173, %v5148, %v3795
        %v5179 = vsel %vm5173, %v5149, %v3797
        %v5180 = vsel %vm5173, %v5150, %v3799
        %v5181 = vsel %vm5173, %v5151, %v3801
        %v5182 = vsel %vm5173, %v5152, %v3803
        %v5183 = vsel %vm5173, %v5153, %v3805
        %v5184 = vsel %vm5173, %v5154, %v3807
        %v5185 = vsel %vm5173, %v5155, %v3809
        %v5186 = vsel %vm5173, %v5156, %v3811
        %v5187 = vsel %vm5173, %v5157, %v3813
        %v5188 = vsel %vm5173, %v5158, %v3815
        %v5189 = vsel %vm5173, %v5159, %v3817
        %v5190 = vsel %vm5173, %v5160, %v3819
        %v5191 = vsel %vm5173, %v5161, %v3821
        %v5192 = vsel %vm5173, %v5162, %v3823
        %v5193 = vsel %vm5173, %v5163, %v3825
        %v5194 = vsel %vm5173, %v5164, %v3827
        %v5195 = vsel %vm5173, %v5165, %v3829
        %v5196 = vsel %vm5173, %v5166, %v3831
        %v5197 = vsel %vm5173, %v5167, %v3833
        %v5198 = vsel %vm5173, %v5168, %v3835
        %v5199 = vsel %vm5173, %v5169, %v3837
        %v5200 = vsel %vm5173, %v5170, %v3839
        %v5201 = vsel %vm5173, %v5171, %v3841
        %v5202 = vsel %vm5173, %v5172, %v3843
        %v5203 = vsel %vm2358, %v5174, %v3946
        %v5204 = vsel %vm2358, %v5175, %v3948
        %v5205 = vsel %vm2358, %v5176, %v3950
        %v5206 = vsel %vm2358, %v5177, %v3952
        %v5207 = vsel %vm2358, %v5178, %v3954
        %v5208 = vsel %vm2358, %v5179, %v3956
        %v5209 = vsel %vm2358, %v5180, %v3958
        %v5210 = vsel %vm2358, %v5181, %v3960
        %v5211 = vsel %vm2358, %v5182, %v3962
        %v5212 = vsel %vm2358, %v5183, %v3964
        %v5213 = vsel %vm2358, %v5184, %v3966
        %v5214 = vsel %vm2358, %v5185, %v3968
        %v5215 = vsel %vm2358, %v5186, %v3970
        %v5216 = vsel %vm2358, %v5187, %v3972
        %v5217 = vsel %vm2358, %v5188, %v3974
        %v5218 = vsel %vm2358, %v5189, %v3976
        %v5219 = vsel %vm2358, %v5190, %v3978
        %v5220 = vsel %vm2358, %v5191, %v3980
        %v5221 = vsel %vm2358, %v5192, %v3982
        %v5222 = vsel %vm2358, %v5193, %v3984
        %v5223 = vsel %vm2358, %v5194, %v3986
        %v5224 = vsel %vm2358, %v5195, %v3988
        %v5225 = vsel %vm2358, %v5196, %v3990
        %v5226 = vsel %vm2358, %v5197, %v3992
        %v5227 = vsel %vm2358, %v5198, %v3994
        %v5228 = vsel %vm2358, %v5199, %v3996
        %v5229 = vsel %vm2358, %v5200, %v3998
        %v5230 = vsel %vm2358, %v5201, %v4000
        %v5231 = vsel %vm2358, %v5202, %v4002
        %vm5232 = vcmask 80896
        %v5233 = vsel %vm5232, %v5203, %v4034
        %v5234 = vsel %vm5232, %v5203, %v4036
        %v5235 = vsel %vm5232, %v5203, %v4038
        %v5236 = vsel %vm5232, %v5204, %v4040
        %v5237 = vsel %vm5232, %v5205, %v4042
        %v5238 = vsel %vm5232, %v5206, %v4044
        %v5239 = vsel %vm5232, %v5207, %v4046
        %v5240 = vsel %vm5232, %v5208, %v4048
        %v5241 = vsel %vm5232, %v5209, %v4050
        %v5242 = vsel %vm5232, %v5210, %v4052
        %v5243 = vsel %vm5232, %v5211, %v4054
        %v5244 = vsel %vm5232, %v5212, %v4056
        %v5245 = vsel %vm5232, %v5213, %v4058
        %v5246 = vsel %vm5232, %v5214, %v4060
        %v5247 = vsel %vm5232, %v5215, %v4062
        %v5248 = vsel %vm5232, %v5216, %v4064
        %v5249 = vsel %vm5232, %v5217, %v4066
        %v5250 = vsel %vm5232, %v5218, %v4068
        %v5251 = vsel %vm5232, %v5219, %v4070
        %v5252 = vsel %vm5232, %v5220, %v4072
        %v5253 = vsel %vm5232, %v5221, %v4074
        %v5254 = vsel %vm5232, %v5222, %v4076
        %v5255 = vsel %vm5232, %v5223, %v4078
        %v5256 = vsel %vm5232, %v5224, %v4080
        %v5257 = vsel %vm5232, %v5225, %v4082
        %v5258 = vsel %vm5232, %v5226, %v4084
        %v5259 = vsel %vm5232, %v5227, %v4086
        %v5260 = vsel %vm5232, %v5228, %v4088
        %v5261 = vsel %vm5232, %v5229, %v4090
        %v5262 = vsel %vm5232, %v5230, %v4092
        %v5263 = vsel %vm5232, %v5231, %v4094
        %v5264 = vsel %vm2390, %v5233, %v4133
        %v5265 = vsel %vm2390, %v5234, %v4135
        %v5266 = vsel %vm2390, %v5235, %v4137
        %v5267 = vsel %vm2390, %v5236, %v4139
        %v5268 = vsel %vm2390, %v5237, %v4141
        %v5269 = vsel %vm2390, %v5238, %v4143
        %v5270 = vsel %vm2390, %v5239, %v4145
        %v5271 = vsel %vm2390, %v5240, %v4147
        %v5272 = vsel %vm2390, %v5241, %v4149
        %v5273 = vsel %vm2390, %v5242, %v4151
        %v5274 = vsel %vm2390, %v5243, %v4153
        %v5275 = vsel %vm2390, %v5244, %v4155
        %v5276 = vsel %vm2390, %v5245, %v4157
        %v5277 = vsel %vm2390, %v5246, %v4159
        %v5278 = vsel %vm2390, %v5247, %v4161
        %v5279 = vsel %vm2390, %v5248, %v4163
        %v5280 = vsel %vm2390, %v5249, %v4165
        %v5281 = vsel %vm2390, %v5250, %v4167
        %v5282 = vsel %vm2390, %v5251, %v4169
        %v5283 = vsel %vm2390, %v5252, %v4171
        %v5284 = vsel %vm2390, %v5253, %v4173
        %v5285 = vsel %vm2390, %v5254, %v4175
        %v5286 = vsel %vm2390, %v5255, %v4177
        %v5287 = vsel %vm2390, %v5256, %v4179
        %v5288 = vsel %vm2390, %v5257, %v4181
        %v5289 = vsel %vm2390, %v5258, %v4183
        %v5290 = vsel %vm2390, %v5259, %v4185
        %v5291 = vsel %vm2390, %v5260, %v4187
        %v5292 = vsel %vm2390, %v5261, %v4189
        %v5293 = vsel %vm2390, %v5262, %v4191
        %v5294 = vsel %vm2390, %v5263, %v4193
        %vm5295 = vcmask 113664
        %v5296 = vsel %vm5295, %v5264, %v4231
        %v5297 = vsel %vm5295, %v5265, %v4233
        %v5298 = vsel %vm5295, %v5266, %v4235
        %v5299 = vsel %vm5295, %v5267, %v4237
        %v5300 = vsel %vm5295, %v5268, %v4239
        %v5301 = vsel %vm5295, %v5269, %v4241
        %v5302 = vsel %vm5295, %v5270, %v4243
        %v5303 = vsel %vm5295, %v5271, %v4245
        %v5304 = vsel %vm5295, %v5272, %v4247
        %v5305 = vsel %vm5295, %v5273, %v4249
        %v5306 = vsel %vm5295, %v5274, %v4251
        %v5307 = vsel %vm5295, %v5275, %v4253
        %v5308 = vsel %vm5295, %v5276, %v4255
        %v5309 = vsel %vm5295, %v5277, %v4257
        %v5310 = vsel %vm5295, %v5278, %v4259
        %v5311 = vsel %vm5295, %v5279, %v4261
        %v5312 = vsel %vm5295, %v5280, %v4263
        %v5313 = vsel %vm5295, %v5281, %v4265
        %v5314 = vsel %vm5295, %v5282, %v4267
        %v5315 = vsel %vm5295, %v5283, %v4269
        %v5316 = vsel %vm5295, %v5284, %v4271
        %v5317 = vsel %vm5295, %v5285, %v4273
        %v5318 = vsel %vm5295, %v5286, %v4275
        %v5319 = vsel %vm5295, %v5287, %v4277
        %v5320 = vsel %vm5295, %v5288, %v4279
        %v5321 = vsel %vm5295, %v5289, %v4281
        %v5322 = vsel %vm5295, %v5290, %v4283
        %v5323 = vsel %vm5295, %v5291, %v4285
        %v5324 = vsel %vm5295, %v5292, %v4287
        %v5325 = vsel %vm5295, %v5293, %v4289
        %v5326 = vsel %vm5295, %v5294, %v4291
        %v5327 = vsel %vm2423, %v5296, %v4329
        %v5328 = vsel %vm2423, %v5297, %v4331
        %v5329 = vsel %vm2423, %v5298, %v4333
        %v5330 = vsel %vm2423, %v5299, %v4335
        %v5331 = vsel %vm2423, %v5300, %v4337
        %v5332 = vsel %vm2423, %v5301, %v4339
        %v5333 = vsel %vm2423, %v5302, %v4341
        %v5334 = vsel %vm2423, %v5303, %v4343
        %v5335 = vsel %vm2423, %v5304, %v4345
        %v5336 = vsel %vm2423, %v5305, %v4347
        %v5337 = vsel %vm2423, %v5306, %v4349
        %v5338 = vsel %vm2423, %v5307, %v4351
        %v5339 = vsel %vm2423, %v5308, %v4353
        %v5340 = vsel %vm2423, %v5309, %v4355
        %v5341 = vsel %vm2423, %v5310, %v4357
        %v5342 = vsel %vm2423, %v5311, %v4359
        %v5343 = vsel %vm2423, %v5312, %v4361
        %v5344 = vsel %vm2423, %v5313, %v4363
        %v5345 = vsel %vm2423, %v5314, %v4365
        %v5346 = vsel %vm2423, %v5315, %v4367
        %v5347 = vsel %vm2423, %v5316, %v4369
        %v5348 = vsel %vm2423, %v5317, %v4371
        %v5349 = vsel %vm2423, %v5318, %v4373
        %v5350 = vsel %vm2423, %v5319, %v4375
        %v5351 = vsel %vm2423, %v5320, %v4377
        %v5352 = vsel %vm2423, %v5321, %v4379
        %v5353 = vsel %vm2423, %v5322, %v4381
        %v5354 = vsel %vm2423, %v5323, %v4383
        %v5355 = vsel %vm2423, %v5324, %v4385
        %v5356 = vsel %vm2423, %v5325, %v4387
        %v5357 = vsel %vm2423, %v5326, %v4389
        %vm5358 = vcmask 146432
        %v5359 = vsel %vm5358, %v5327, %v4427
        %v5360 = vsel %vm5358, %v5328, %v4429
        %v5361 = vsel %vm5358, %v5329, %v4431
        %v5362 = vsel %vm5358, %v5330, %v4433
        %v5363 = vsel %vm5358, %v5331, %v4435
        %v5364 = vsel %vm5358, %v5332, %v4437
        %v5365 = vsel %vm5358, %v5333, %v4439
        %v5366 = vsel %vm5358, %v5334, %v4441
        %v5367 = vsel %vm5358, %v5335, %v4443
        %v5368 = vsel %vm5358, %v5336, %v4445
        %v5369 = vsel %vm5358, %v5337, %v4447
        %v5370 = vsel %vm5358, %v5338, %v4449
        %v5371 = vsel %vm5358, %v5339, %v4451
        %v5372 = vsel %vm5358, %v5340, %v4453
        %v5373 = vsel %vm5358, %v5341, %v4455
        %v5374 = vsel %vm5358, %v5342, %v4457
        %v5375 = vsel %vm5358, %v5343, %v4459
        %v5376 = vsel %vm5358, %v5344, %v4461
        %v5377 = vsel %vm5358, %v5345, %v4463
        %v5378 = vsel %vm5358, %v5346, %v4465
        %v5379 = vsel %vm5358, %v5347, %v4467
        %v5380 = vsel %vm5358, %v5348, %v4469
        %v5381 = vsel %vm5358, %v5349, %v4471
        %v5382 = vsel %vm5358, %v5350, %v4473
        %v5383 = vsel %vm5358, %v5351, %v4475
        %v5384 = vsel %vm5358, %v5352, %v4477
        %v5385 = vsel %vm5358, %v5353, %v4479
        %v5386 = vsel %vm5358, %v5354, %v4481
        %v5387 = vsel %vm5358, %v5355, %v4483
        %v5388 = vsel %vm5358, %v5356, %v4485
        %v5389 = vsel %vm5358, %v5357, %v4487
        %v5390 = vsel %vm2456, %v5359, %v4521
        %v5391 = vsel %vm2456, %v5359, %v4523
        %v5392 = vsel %vm2456, %v5360, %v4525
        %v5393 = vsel %vm2456, %v5361, %v4527
        %v5394 = vsel %vm2456, %v5362, %v4529
        %v5395 = vsel %vm2456, %v5363, %v4531
        %v5396 = vsel %vm2456, %v5364, %v4533
        %v5397 = vsel %vm2456, %v5365, %v4535
        %v5398 = vsel %vm2456, %v5366, %v4537
        %v5399 = vsel %vm2456, %v5367, %v4539
        %v5400 = vsel %vm2456, %v5368, %v4541
        %v5401 = vsel %vm2456, %v5369, %v4543
        %v5402 = vsel %vm2456, %v5370, %v4545
        %v5403 = vsel %vm2456, %v5371, %v4547
        %v5404 = vsel %vm2456, %v5372, %v4549
        %v5405 = vsel %vm2456, %v5373, %v4551
        %v5406 = vsel %vm2456, %v5374, %v4553
        %v5407 = vsel %vm2456, %v5375, %v4555
        %v5408 = vsel %vm2456, %v5376, %v4557
        %v5409 = vsel %vm2456, %v5377, %v4559
        %v5410 = vsel %vm2456, %v5378, %v4561
        %v5411 = vsel %vm2456, %v5379, %v4563
        %v5412 = vsel %vm2456, %v5380, %v4565
        %v5413 = vsel %vm2456, %v5381, %v4567
        %v5414 = vsel %vm2456, %v5382, %v4569
        %v5415 = vsel %vm2456, %v5383, %v4571
        %v5416 = vsel %vm2456, %v5384, %v4573
        %v5417 = vsel %vm2456, %v5385, %v4575
        %v5418 = vsel %vm2456, %v5386, %v4577
        %v5419 = vsel %vm2456, %v5387, %v4579
        %v5420 = vsel %vm2456, %v5388, %v4581
        %v5421 = vsel %vm2456, %v5389, %v4583
        %vm5422 = vcmask 179200
        %v5423 = vsel %vm5422, %v5390, %v4623
        %v5424 = vsel %vm5422, %v5391, %v4625
        %v5425 = vsel %vm5422, %v5392, %v4627
        %v5426 = vsel %vm5422, %v5393, %v4629
        %v5427 = vsel %vm5422, %v5394, %v4631
        %v5428 = vsel %vm5422, %v5395, %v4633
        %v5429 = vsel %vm5422, %v5396, %v4635
        %v5430 = vsel %vm5422, %v5397, %v4637
        %v5431 = vsel %vm5422, %v5398, %v4639
        %v5432 = vsel %vm5422, %v5399, %v4641
        %v5433 = vsel %vm5422, %v5400, %v4643
        %v5434 = vsel %vm5422, %v5401, %v4645
        %v5435 = vsel %vm5422, %v5402, %v4647
        %v5436 = vsel %vm5422, %v5403, %v4649
        %v5437 = vsel %vm5422, %v5404, %v4651
        %v5438 = vsel %vm5422, %v5405, %v4653
        %v5439 = vsel %vm5422, %v5406, %v4655
        %v5440 = vsel %vm5422, %v5407, %v4657
        %v5441 = vsel %vm5422, %v5408, %v4659
        %v5442 = vsel %vm5422, %v5409, %v4661
        %v5443 = vsel %vm5422, %v5410, %v4663
        %v5444 = vsel %vm5422, %v5411, %v4665
        %v5445 = vsel %vm5422, %v5412, %v4667
        %v5446 = vsel %vm5422, %v5413, %v4669
        %v5447 = vsel %vm5422, %v5414, %v4671
        %v5448 = vsel %vm5422, %v5415, %v4673
        %v5449 = vsel %vm5422, %v5416, %v4675
        %v5450 = vsel %vm5422, %v5417, %v4677
        %v5451 = vsel %vm5422, %v5418, %v4679
        %v5452 = vsel %vm5422, %v5419, %v4681
        %v5453 = vsel %vm5422, %v5420, %v4683
        %v5454 = vsel %vm5422, %v5421, %v4685
        %v5455 = vsel %vm2489, %v5423, %v4724
        %v5456 = vsel %vm2489, %v5424, %v4726
        %v5457 = vsel %vm2489, %v5425, %v4728
        %v5458 = vsel %vm2489, %v5426, %v4730
        %v5459 = vsel %vm2489, %v5427, %v4732
        %v5460 = vsel %vm2489, %v5428, %v4734
        %v5461 = vsel %vm2489, %v5429, %v4736
        %v5462 = vsel %vm2489, %v5430, %v4738
        %v5463 = vsel %vm2489, %v5431, %v4740
        %v5464 = vsel %vm2489, %v5432, %v4742
        %v5465 = vsel %vm2489, %v5433, %v4744
        %v5466 = vsel %vm2489, %v5434, %v4746
        %v5467 = vsel %vm2489, %v5435, %v4748
        %v5468 = vsel %vm2489, %v5436, %v4750
        %v5469 = vsel %vm2489, %v5437, %v4752
        %v5470 = vsel %vm2489, %v5438, %v4754
        %v5471 = vsel %vm2489, %v5439, %v4756
        %v5472 = vsel %vm2489, %v5440, %v4758
        %v5473 = vsel %vm2489, %v5441, %v4760
        %v5474 = vsel %vm2489, %v5442, %v4762
        %v5475 = vsel %vm2489, %v5443, %v4764
        %v5476 = vsel %vm2489, %v5444, %v4766
        %v5477 = vsel %vm2489, %v5445, %v4768
        %v5478 = vsel %vm2489, %v5446, %v4770
        %v5479 = vsel %vm2489, %v5447, %v4772
        %v5480 = vsel %vm2489, %v5448, %v4774
        %v5481 = vsel %vm2489, %v5449, %v4776
        %v5482 = vsel %vm2489, %v5450, %v4778
        %v5483 = vsel %vm2489, %v5451, %v4780
        %v5484 = vsel %vm2489, %v5452, %v4782
        %v5485 = vsel %vm2489, %v5453, %v4784
        %v5486 = vsel %vm2489, %v5454, %v4786
        %vm5487 = vcmask 211968
        %v5488 = vsel %vm5487, %v5455, %v4825
        %v5489 = vsel %vm5487, %v5456, %v4827
        %v5490 = vsel %vm5487, %v5457, %v4829
        %v5491 = vsel %vm5487, %v5458, %v4831
        %v5492 = vsel %vm5487, %v5459, %v4833
        %v5493 = vsel %vm5487, %v5460, %v4835
        %v5494 = vsel %vm5487, %v5461, %v4837
        %v5495 = vsel %vm5487, %v5462, %v4839
        %v5496 = vsel %vm5487, %v5463, %v4841
        %v5497 = vsel %vm5487, %v5464, %v4843
        %v5498 = vsel %vm5487, %v5465, %v4845
        %v5499 = vsel %vm5487, %v5466, %v4847
        %v5500 = vsel %vm5487, %v5467, %v4849
        %v5501 = vsel %vm5487, %v5468, %v4851
        %v5502 = vsel %vm5487, %v5469, %v4853
        %v5503 = vsel %vm5487, %v5470, %v4855
        %v5504 = vsel %vm5487, %v5471, %v4857
        %v5505 = vsel %vm5487, %v5472, %v4859
        %v5506 = vsel %vm5487, %v5473, %v4861
        %v5507 = vsel %vm5487, %v5474, %v4863
        %v5508 = vsel %vm5487, %v5475, %v4865
        %v5509 = vsel %vm5487, %v5476, %v4867
        %v5510 = vsel %vm5487, %v5477, %v4869
        %v5511 = vsel %vm5487, %v5478, %v4871
        %v5512 = vsel %vm5487, %v5479, %v4873
        %v5513 = vsel %vm5487, %v5480, %v4875
        %v5514 = vsel %vm5487, %v5481, %v4877
        %v5515 = vsel %vm5487, %v5482, %v4879
        %v5516 = vsel %vm5487, %v5483, %v4881
        %v5517 = vsel %vm5487, %v5484, %v4883
        %v5518 = vsel %vm5487, %v5485, %v4885
        %v5519 = vsel %vm5487, %v5486, %v4887
        %v5520 = vsel %vm2522, %v5488, %v4926
        %v5521 = vsel %vm2522, %v5489, %v4928
        %v5522 = vsel %vm2522, %v5490, %v4930
        %v5523 = vsel %vm2522, %v5491, %v4932
        %v5524 = vsel %vm2522, %v5492, %v4934
        %v5525 = vsel %vm2522, %v5493, %v4936
        %v5526 = vsel %vm2522, %v5494, %v4938
        %v5527 = vsel %vm2522, %v5495, %v4940
        %v5528 = vsel %vm2522, %v5496, %v4942
        %v5529 = vsel %vm2522, %v5497, %v4944
        %v5530 = vsel %vm2522, %v5498, %v4946
        %v5531 = vsel %vm2522, %v5499, %v4948
        %v5532 = vsel %vm2522, %v5500, %v4950
        %v5533 = vsel %vm2522, %v5501, %v4952
        %v5534 = vsel %vm2522, %v5502, %v4954
        %v5535 = vsel %vm2522, %v5503, %v4956
        %v5536 = vsel %vm2522, %v5504, %v4958
        %v5537 = vsel %vm2522, %v5505, %v4960
        %v5538 = vsel %vm2522, %v5506, %v4962
        %v5539 = vsel %vm2522, %v5507, %v4964
        %v5540 = vsel %vm2522, %v5508, %v4966
        %v5541 = vsel %vm2522, %v5509, %v4968
        %v5542 = vsel %vm2522, %v5510, %v4970
        %v5543 = vsel %vm2522, %v5511, %v4972
        %v5544 = vsel %vm2522, %v5512, %v4974
        %v5545 = vsel %vm2522, %v5513, %v4976
        %v5546 = vsel %vm2522, %v5514, %v4978
        %v5547 = vsel %vm2522, %v5515, %v4980
        %v5548 = vsel %vm2522, %v5516, %v4982
        %v5549 = vsel %vm2522, %v5517, %v4984
        %v5550 = vsel %vm2522, %v5518, %v4986
        %v5551 = vsel %vm2522, %v5519, %v4988
        %vm5552 = vcmask 244736
        %v5553 = vsel %vm5552, %v5520, %v5022
        %v5554 = vsel %vm5552, %v5521, %v5024
        %v5555 = vsel %vm5552, %v5522, %v5026
        %v5556 = vsel %vm5552, %v5523, %v5028
        %v5557 = vsel %vm5552, %v5524, %v5030
        %v5558 = vsel %vm5552, %v5525, %v5032
        %v5559 = vsel %vm5552, %v5526, %v5034
        %v5560 = vsel %vm5552, %v5527, %v5036
        %v5561 = vsel %vm5552, %v5528, %v5038
        %v5562 = vsel %vm5552, %v5529, %v5040
        %v5563 = vsel %vm5552, %v5530, %v5042
        %v5564 = vsel %vm5552, %v5531, %v5044
        %v5565 = vsel %vm5552, %v5532, %v5046
        %v5566 = vsel %vm5552, %v5533, %v5048
        %v5567 = vsel %vm5552, %v5534, %v5050
        %v5568 = vsel %vm5552, %v5535, %v5052
        %v5569 = vsel %vm5552, %v5536, %v5054
        %v5570 = vsel %vm5552, %v5537, %v5056
        %v5571 = vsel %vm5552, %v5538, %v5058
        %v5572 = vsel %vm5552, %v5539, %v5060
        %v5573 = vsel %vm5552, %v5540, %v5062
        %v5574 = vsel %vm5552, %v5541, %v5064
        %v5575 = vsel %vm5552, %v5542, %v5066
        %v5576 = vsel %vm5552, %v5543, %v5068
        %v5577 = vsel %vm5552, %v5544, %v5070
        %v5578 = vsel %vm5552, %v5545, %v5072
        %v5579 = vsel %vm5552, %v5546, %v5074
        %v5580 = vsel %vm5552, %v5547, %v5076
        %v5581 = vsel %vm5552, %v5548, %v5078
        %v5582 = vsel %vm5552, %v5549, %v5080
        %v5583 = vsel %vm5552, %v5550, %v5082
        %v5584 = vsel %vm5552, %v5551, %v5082
        %5585 = vrot.lane.b32.xlu0 %v3407, 2
        %v5586 = vpop.permute.xlu0 %5585
        %5587 = vrot.lane.b32.xlu0 %v3412, 2
        %v5588 = vpop.permute.xlu0 %5587
        %5589 = vrot.lane.b32.xlu0 %v3417, 2
        %v5590 = vpop.permute.xlu0 %5589
        %5591 = vrot.lane.b32.xlu0 %v3422, 2
        %v5592 = vpop.permute.xlu0 %5591
        %5593 = vrot.lane.b32.xlu0 %v3427, 2
        %v5594 = vpop.permute.xlu0 %5593
        %5595 = vrot.lane.b32.xlu0 %v3432, 2
        %v5596 = vpop.permute.xlu0 %5595
        %5597 = vrot.lane.b32.xlu0 %v3437, 2
        %v5598 = vpop.permute.xlu0 %5597
        %5599 = vrot.lane.b32.xlu0 %v3442, 2
        %v5600 = vpop.permute.xlu0 %5599
        %5601 = vrot.lane.b32.xlu0 %v3447, 2
        %v5602 = vpop.permute.xlu0 %5601
        %5603 = vrot.lane.b32.xlu0 %v3452, 2
        %v5604 = vpop.permute.xlu0 %5603
        %5605 = vrot.lane.b32.xlu0 %v3457, 2
        %v5606 = vpop.permute.xlu0 %5605
        %5607 = vrot.lane.b32.xlu0 %v3462, 2
        %v5608 = vpop.permute.xlu0 %5607
        %5609 = vrot.lane.b32.xlu0 %v3467, 2
        %v5610 = vpop.permute.xlu0 %5609
        %5611 = vrot.lane.b32.xlu0 %v4129, 2
        %v5612 = vpop.permute.xlu0 %5611
        %5613 = vrot.lane.b32.xlu0 %v4131, 2
        %v5614 = vpop.permute.xlu0 %5613
        %5615 = vrot.lane.b32.xlu0 %v4130, 2
        %v5616 = vpop.permute.xlu0 %5615
        %5617 = vrot.lane.b32.xlu0 %v4619, 2
        %v5618 = vpop.permute.xlu0 %5617
        %5619 = vrot.lane.b32.xlu0 %v4621, 2
        %v5620 = vpop.permute.xlu0 %5619
        %5621 = vrot.lane.b32.xlu0 %v4620, 2
        %v5622 = vpop.permute.xlu0 %5621
        %5623 = vrot.lane.b32.xlu0 %v1408, 2
        %v5624 = vpop.permute.xlu0 %5623
        %5645 = vrot.lane.b32.xlu0 %v3564, 4
        %v5646 = vpop.permute.xlu0 %5645
        %5647 = vrot.lane.b32.xlu0 %v3569, 4
        %v5648 = vpop.permute.xlu0 %5647
        %5649 = vrot.lane.b32.xlu0 %v3574, 4
        %v5650 = vpop.permute.xlu0 %5649
        %5651 = vrot.lane.b32.xlu0 %v3579, 4
        %v5652 = vpop.permute.xlu0 %5651
        %5653 = vrot.lane.b32.xlu0 %v3584, 4
        %v5654 = vpop.permute.xlu0 %5653
        %5655 = vrot.lane.b32.xlu0 %v3589, 4
        %v5656 = vpop.permute.xlu0 %5655
        %5657 = vrot.lane.b32.xlu0 %v3594, 4
        %v5658 = vpop.permute.xlu0 %5657
        %5659 = vrot.lane.b32.xlu0 %v3599, 4
        %v5660 = vpop.permute.xlu0 %5659
        %5661 = vrot.lane.b32.xlu0 %v3604, 4
        %v5662 = vpop.permute.xlu0 %5661
        %5663 = vrot.lane.b32.xlu0 %v3609, 4
        %v5664 = vpop.permute.xlu0 %5663
        %5665 = vrot.lane.b32.xlu0 %v3614, 4
        %v5666 = vpop.permute.xlu0 %5665
        %5667 = vrot.lane.b32.xlu0 %v3619, 4
        %v5668 = vpop.permute.xlu0 %5667
        %5669 = vrot.lane.b32.xlu0 %v3624, 4
        %v5670 = vpop.permute.xlu0 %5669
        %5671 = vrot.lane.b32.xlu0 %v4227, 4
        %v5672 = vpop.permute.xlu0 %5671
        %5673 = vrot.lane.b32.xlu0 %v4229, 4
        %v5674 = vpop.permute.xlu0 %5673
        %5675 = vrot.lane.b32.xlu0 %v4228, 4
        %v5676 = vpop.permute.xlu0 %5675
        %5677 = vrot.lane.b32.xlu0 %v4720, 4
        %v5678 = vpop.permute.xlu0 %5677
        %5679 = vrot.lane.b32.xlu0 %v4722, 4
        %v5680 = vpop.permute.xlu0 %5679
        %5681 = vrot.lane.b32.xlu0 %v4721, 4
        %v5682 = vpop.permute.xlu0 %5681
        %5683 = vrot.lane.b32.xlu0 %v1578, 4
        %v5684 = vpop.permute.xlu0 %5683
        %5705 = vrot.lane.b32.xlu0 %v3724, 6
        %v5706 = vpop.permute.xlu0 %5705
        %5707 = vrot.lane.b32.xlu0 %v3729, 6
        %v5708 = vpop.permute.xlu0 %5707
        %5709 = vrot.lane.b32.xlu0 %v3734, 6
        %v5710 = vpop.permute.xlu0 %5709
        %5711 = vrot.lane.b32.xlu0 %v3739, 6
        %v5712 = vpop.permute.xlu0 %5711
        %5713 = vrot.lane.b32.xlu0 %v3744, 6
        %v5714 = vpop.permute.xlu0 %5713
        %5715 = vrot.lane.b32.xlu0 %v3749, 6
        %v5716 = vpop.permute.xlu0 %5715
        %5717 = vrot.lane.b32.xlu0 %v3754, 6
        %v5718 = vpop.permute.xlu0 %5717
        %5719 = vrot.lane.b32.xlu0 %v3759, 6
        %v5720 = vpop.permute.xlu0 %5719
        %5721 = vrot.lane.b32.xlu0 %v3764, 6
        %v5722 = vpop.permute.xlu0 %5721
        %5723 = vrot.lane.b32.xlu0 %v3769, 6
        %v5724 = vpop.permute.xlu0 %5723
        %5725 = vrot.lane.b32.xlu0 %v3774, 6
        %v5726 = vpop.permute.xlu0 %5725
        %5727 = vrot.lane.b32.xlu0 %v3779, 6
        %v5728 = vpop.permute.xlu0 %5727
        %5729 = vrot.lane.b32.xlu0 %v3784, 6
        %v5730 = vpop.permute.xlu0 %5729
        %5731 = vrot.lane.b32.xlu0 %v4325, 6
        %v5732 = vpop.permute.xlu0 %5731
        %5733 = vrot.lane.b32.xlu0 %v4327, 6
        %v5734 = vpop.permute.xlu0 %5733
        %5735 = vrot.lane.b32.xlu0 %v4326, 6
        %v5736 = vpop.permute.xlu0 %5735
        %5737 = vrot.lane.b32.xlu0 %v4821, 6
        %v5738 = vpop.permute.xlu0 %5737
        %5739 = vrot.lane.b32.xlu0 %v4823, 6
        %v5740 = vpop.permute.xlu0 %5739
        %5741 = vrot.lane.b32.xlu0 %v4822, 6
        %v5742 = vpop.permute.xlu0 %5741
        %5743 = vrot.lane.b32.xlu0 %v3714, 6
        %v5744 = vpop.permute.xlu0 %5743
        %v5765 = vrot.slane %v3341, 7
        %v5766 = vrot.slane %v3210, 7
        %v5767 = vsel %vm702, %v5765, %v5766
        %v5768 = vrot.slane %v3342, 7
        %v5769 = vrot.slane %v3216, 7
        %v5770 = vsel %vm702, %v5768, %v5769
        %v5771 = vrot.slane %v3343, 7
        %v5772 = vrot.slane %v3222, 7
        %v5773 = vsel %vm702, %v5771, %v5772
        %v5774 = vrot.slane %v3344, 7
        %v5775 = vrot.slane %v3228, 7
        %v5776 = vsel %vm702, %v5774, %v5775
        %v5777 = vrot.slane %v3345, 7
        %v5778 = vrot.slane %v3234, 7
        %v5779 = vsel %vm702, %v5777, %v5778
        %v5780 = vrot.slane %v3346, 7
        %v5781 = vrot.slane %v3240, 7
        %v5782 = vsel %vm702, %v5780, %v5781
        %v5783 = vrot.slane %v3347, 7
        %v5784 = vrot.slane %v3246, 7
        %v5785 = vsel %vm702, %v5783, %v5784
        %v5786 = vrot.slane %v3348, 7
        %v5787 = vrot.slane %v3252, 7
        %v5788 = vsel %vm702, %v5786, %v5787
        %v5789 = vrot.slane %v3349, 7
        %v5790 = vrot.slane %v3258, 7
        %v5791 = vsel %vm702, %v5789, %v5790
        %v5792 = vrot.slane %v3350, 7
        %v5793 = vrot.slane %v3264, 7
        %v5794 = vsel %vm702, %v5792, %v5793
        %v5795 = vrot.slane %v3351, 7
        %v5796 = vrot.slane %v3270, 7
        %v5797 = vsel %vm702, %v5795, %v5796
        %v5798 = vrot.slane %v3352, 7
        %v5799 = vrot.slane %v3276, 7
        %v5800 = vsel %vm702, %v5798, %v5799
        %v5801 = vrot.slane %v3353, 7
        %v5802 = vrot.slane %v3282, 7
        %v5803 = vsel %vm702, %v5801, %v5802
        %v5804 = vrot.slane %v3354, 7
        %v5805 = vrot.slane %v3288, 7
        %v5806 = vsel %vm702, %v5804, %v5805
        %v5807 = vrot.slane 0.0, 7
        %v5808 = vsel %vm702, %v5807, %v5807
        %5809 = vrot.lane.b32.xlu0 %v5765, 8
        %v5810 = vpop.permute.xlu0 %5809
        %5811 = vrot.lane.b32.xlu0 %v5767, 8
        %v5812 = vpop.permute.xlu0 %5811
        %5813 = vrot.lane.b32.xlu0 %v5766, 8
        %v5814 = vpop.permute.xlu0 %5813
        %5815 = vrot.lane.b32.xlu0 %v5768, 8
        %v5816 = vpop.permute.xlu0 %5815
        %5817 = vrot.lane.b32.xlu0 %v5770, 8
        %v5818 = vpop.permute.xlu0 %5817
        %5819 = vrot.lane.b32.xlu0 %v5769, 8
        %v5820 = vpop.permute.xlu0 %5819
        %5821 = vrot.lane.b32.xlu0 %v5771, 8
        %v5822 = vpop.permute.xlu0 %5821
        %5823 = vrot.lane.b32.xlu0 %v5773, 8
        %v5824 = vpop.permute.xlu0 %5823
        %5825 = vrot.lane.b32.xlu0 %v5772, 8
        %v5826 = vpop.permute.xlu0 %5825
        %5827 = vrot.lane.b32.xlu0 %v5774, 8
        %v5828 = vpop.permute.xlu0 %5827
        %5829 = vrot.lane.b32.xlu0 %v5776, 8
        %v5830 = vpop.permute.xlu0 %5829
        %5831 = vrot.lane.b32.xlu0 %v5775, 8
        %v5832 = vpop.permute.xlu0 %5831
        %5833 = vrot.lane.b32.xlu0 %v5777, 8
        %v5834 = vpop.permute.xlu0 %5833
        %5835 = vrot.lane.b32.xlu0 %v5779, 8
        %v5836 = vpop.permute.xlu0 %5835
        %5837 = vrot.lane.b32.xlu0 %v5778, 8
        %v5838 = vpop.permute.xlu0 %5837
        %5839 = vrot.lane.b32.xlu0 %v5780, 8
        %v5840 = vpop.permute.xlu0 %5839
        %5841 = vrot.lane.b32.xlu0 %v5782, 8
        %v5842 = vpop.permute.xlu0 %5841
        %5843 = vrot.lane.b32.xlu0 %v5781, 8
        %v5844 = vpop.permute.xlu0 %5843
        %5845 = vrot.lane.b32.xlu0 %v5783, 8
        %v5846 = vpop.permute.xlu0 %5845
        %5847 = vrot.lane.b32.xlu0 %v5785, 8
        %v5848 = vpop.permute.xlu0 %5847
        %5849 = vrot.lane.b32.xlu0 %v5784, 8
        %v5850 = vpop.permute.xlu0 %5849
        %5851 = vrot.lane.b32.xlu0 %v5786, 8
        %v5852 = vpop.permute.xlu0 %5851
        %5853 = vrot.lane.b32.xlu0 %v5788, 8
        %v5854 = vpop.permute.xlu0 %5853
        %5855 = vrot.lane.b32.xlu0 %v5787, 8
        %v5856 = vpop.permute.xlu0 %5855
        %5857 = vrot.lane.b32.xlu0 %v5789, 8
        %v5858 = vpop.permute.xlu0 %5857
        %5859 = vrot.lane.b32.xlu0 %v5791, 8
        %v5860 = vpop.permute.xlu0 %5859
        %5861 = vrot.lane.b32.xlu0 %v5790, 8
        %v5862 = vpop.permute.xlu0 %5861
        %5863 = vrot.lane.b32.xlu0 %v5792, 8
        %v5864 = vpop.permute.xlu0 %5863
        %5865 = vrot.lane.b32.xlu0 %v5794, 8
        %v5866 = vpop.permute.xlu0 %5865
        %5867 = vrot.lane.b32.xlu0 %v5793, 8
        %v5868 = vpop.permute.xlu0 %5867
        %5869 = vrot.lane.b32.xlu0 %v5795, 8
        %v5870 = vpop.permute.xlu0 %5869
        %5871 = vrot.lane.b32.xlu0 %v5797, 8
        %v5872 = vpop.permute.xlu0 %5871
        %5873 = vrot.lane.b32.xlu0 %v5796, 8
        %v5874 = vpop.permute.xlu0 %5873
        %5875 = vrot.lane.b32.xlu0 %v5798, 8
        %v5876 = vpop.permute.xlu0 %5875
        %5877 = vrot.lane.b32.xlu0 %v5800, 8
        %v5878 = vpop.permute.xlu0 %5877
        %5879 = vrot.lane.b32.xlu0 %v5799, 8
        %v5880 = vpop.permute.xlu0 %5879
        %5881 = vrot.lane.b32.xlu0 %v5801, 8
        %v5882 = vpop.permute.xlu0 %5881
        %5883 = vrot.lane.b32.xlu0 %v5803, 8
        %v5884 = vpop.permute.xlu0 %5883
        %5885 = vrot.lane.b32.xlu0 %v5802, 8
        %v5886 = vpop.permute.xlu0 %5885
        %5887 = vrot.lane.b32.xlu0 %v5804, 8
        %v5888 = vpop.permute.xlu0 %5887
        %5889 = vrot.lane.b32.xlu0 %v5806, 8
        %v5890 = vpop.permute.xlu0 %5889
        %5891 = vrot.lane.b32.xlu0 %v5805, 8
        %v5892 = vpop.permute.xlu0 %5891
        %5893 = vrot.lane.b32.xlu0 %v5807, 8
        %v5894 = vpop.permute.xlu0 %5893
        %5895 = vrot.lane.b32.xlu0 %v5808, 8
        %v5896 = vpop.permute.xlu0 %5895
        %5941 = vrot.lane.b32.xlu0 %v3357, 10
        %v5942 = vpop.permute.xlu0 %5941
        %5943 = vrot.lane.b32.xlu0 %v3358, 10
        %v5944 = vpop.permute.xlu0 %5943
        %5945 = vrot.lane.b32.xlu0 %v3359, 10
        %v5946 = vpop.permute.xlu0 %5945
        %5947 = vrot.lane.b32.xlu0 %v3360, 10
        %v5948 = vpop.permute.xlu0 %5947
        %5949 = vrot.lane.b32.xlu0 %v3361, 10
        %v5950 = vpop.permute.xlu0 %5949
        %5951 = vrot.lane.b32.xlu0 %v3362, 10
        %v5952 = vpop.permute.xlu0 %5951
        %5953 = vrot.lane.b32.xlu0 %v3363, 10
        %v5954 = vpop.permute.xlu0 %5953
        %5955 = vrot.lane.b32.xlu0 %v3364, 10
        %v5956 = vpop.permute.xlu0 %5955
        %5957 = vrot.lane.b32.xlu0 %v3365, 10
        %v5958 = vpop.permute.xlu0 %5957
        %5959 = vrot.lane.b32.xlu0 %v3366, 10
        %v5960 = vpop.permute.xlu0 %5959
        %5961 = vrot.lane.b32.xlu0 %v3367, 10
        %v5962 = vpop.permute.xlu0 %5961
        %5963 = vrot.lane.b32.xlu0 %v3368, 10
        %v5964 = vpop.permute.xlu0 %5963
        %5965 = vrot.lane.b32.xlu0 %v3369, 10
        %v5966 = vpop.permute.xlu0 %5965
        %5967 = vrot.lane.b32.xlu0 %v3354, 10
        %v5968 = vpop.permute.xlu0 %5967
        %5969 = vrot.lane.b32.xlu0 %v3288, 10
        %v5970 = vpop.permute.xlu0 %5969
        %5971 = vrot.lane.b32.xlu0 %v3370, 10
        %v5972 = vpop.permute.xlu0 %5971
        %5989 = vrot.lane.b32.xlu0 %v3412, 12
        %v5990 = vpop.permute.xlu0 %5989
        %5991 = vrot.lane.b32.xlu0 %v3417, 12
        %v5992 = vpop.permute.xlu0 %5991
        %5993 = vrot.lane.b32.xlu0 %v3422, 12
        %v5994 = vpop.permute.xlu0 %5993
        %5995 = vrot.lane.b32.xlu0 %v3427, 12
        %v5996 = vpop.permute.xlu0 %5995
        %5997 = vrot.lane.b32.xlu0 %v3432, 12
        %v5998 = vpop.permute.xlu0 %5997
        %5999 = vrot.lane.b32.xlu0 %v3437, 12
        %v6000 = vpop.permute.xlu0 %5999
        %6001 = vrot.lane.b32.xlu0 %v3442, 12
        %v6002 = vpop.permute.xlu0 %6001
        %6003 = vrot.lane.b32.xlu0 %v3447, 12
        %v6004 = vpop.permute.xlu0 %6003
        %6005 = vrot.lane.b32.xlu0 %v3452, 12
        %v6006 = vpop.permute.xlu0 %6005
        %6007 = vrot.lane.b32.xlu0 %v3457, 12
        %v6008 = vpop.permute.xlu0 %6007
        %6009 = vrot.lane.b32.xlu0 %v3462, 12
        %v6010 = vpop.permute.xlu0 %6009
        %6011 = vrot.lane.b32.xlu0 %v3467, 12
        %v6012 = vpop.permute.xlu0 %6011
        %6013 = vrot.lane.b32.xlu0 %v4130, 12
        %v6014 = vpop.permute.xlu0 %6013
        %6015 = vrot.lane.b32.xlu0 %v4619, 12
        %v6016 = vpop.permute.xlu0 %6015
        %6017 = vrot.lane.b32.xlu0 %v4621, 12
        %v6018 = vpop.permute.xlu0 %6017
        %6019 = vrot.lane.b32.xlu0 %v4620, 12
        %v6020 = vpop.permute.xlu0 %6019
        %6021 = vrot.lane.b32.xlu0 %v1408, 12
        %v6022 = vpop.permute.xlu0 %6021
        %6040 = vrot.lane.b32.xlu0 %v3569, 14
        %v6041 = vpop.permute.xlu0 %6040
        %6042 = vrot.lane.b32.xlu0 %v3574, 14
        %v6043 = vpop.permute.xlu0 %6042
        %6044 = vrot.lane.b32.xlu0 %v3579, 14
        %v6045 = vpop.permute.xlu0 %6044
        %6046 = vrot.lane.b32.xlu0 %v3584, 14
        %v6047 = vpop.permute.xlu0 %6046
        %6048 = vrot.lane.b32.xlu0 %v3589, 14
        %v6049 = vpop.permute.xlu0 %6048
        %6050 = vrot.lane.b32.xlu0 %v3594, 14
        %v6051 = vpop.permute.xlu0 %6050
        %6052 = vrot.lane.b32.xlu0 %v3599, 14
        %v6053 = vpop.permute.xlu0 %6052
        %6054 = vrot.lane.b32.xlu0 %v3604, 14
        %v6055 = vpop.permute.xlu0 %6054
        %6056 = vrot.lane.b32.xlu0 %v3609, 14
        %v6057 = vpop.permute.xlu0 %6056
        %6058 = vrot.lane.b32.xlu0 %v3614, 14
        %v6059 = vpop.permute.xlu0 %6058
        %6060 = vrot.lane.b32.xlu0 %v3619, 14
        %v6061 = vpop.permute.xlu0 %6060
        %6062 = vrot.lane.b32.xlu0 %v3624, 14
        %v6063 = vpop.permute.xlu0 %6062
        %6064 = vrot.lane.b32.xlu0 %v4228, 14
        %v6065 = vpop.permute.xlu0 %6064
        %6066 = vrot.lane.b32.xlu0 %v4720, 14
        %v6067 = vpop.permute.xlu0 %6066
        %6068 = vrot.lane.b32.xlu0 %v4722, 14
        %v6069 = vpop.permute.xlu0 %6068
        %6070 = vrot.lane.b32.xlu0 %v4721, 14
        %v6071 = vpop.permute.xlu0 %6070
        %6072 = vrot.lane.b32.xlu0 %v1578, 14
        %v6073 = vpop.permute.xlu0 %6072
        %6091 = vrot.lane.b32.xlu0 %v3729, 16
        %v6092 = vpop.permute.xlu0 %6091
        %6093 = vrot.lane.b32.xlu0 %v3734, 16
        %v6094 = vpop.permute.xlu0 %6093
        %6095 = vrot.lane.b32.xlu0 %v3739, 16
        %v6096 = vpop.permute.xlu0 %6095
        %6097 = vrot.lane.b32.xlu0 %v3744, 16
        %v6098 = vpop.permute.xlu0 %6097
        %6099 = vrot.lane.b32.xlu0 %v3749, 16
        %v6100 = vpop.permute.xlu0 %6099
        %6101 = vrot.lane.b32.xlu0 %v3754, 16
        %v6102 = vpop.permute.xlu0 %6101
        %6103 = vrot.lane.b32.xlu0 %v3759, 16
        %v6104 = vpop.permute.xlu0 %6103
        %6105 = vrot.lane.b32.xlu0 %v3764, 16
        %v6106 = vpop.permute.xlu0 %6105
        %6107 = vrot.lane.b32.xlu0 %v3769, 16
        %v6108 = vpop.permute.xlu0 %6107
        %6109 = vrot.lane.b32.xlu0 %v3774, 16
        %v6110 = vpop.permute.xlu0 %6109
        %6111 = vrot.lane.b32.xlu0 %v3779, 16
        %v6112 = vpop.permute.xlu0 %6111
        %6113 = vrot.lane.b32.xlu0 %v3784, 16
        %v6114 = vpop.permute.xlu0 %6113
        %6115 = vrot.lane.b32.xlu0 %v4326, 16
        %v6116 = vpop.permute.xlu0 %6115
        %6117 = vrot.lane.b32.xlu0 %v4821, 16
        %v6118 = vpop.permute.xlu0 %6117
        %6119 = vrot.lane.b32.xlu0 %v4823, 16
        %v6120 = vpop.permute.xlu0 %6119
        %6121 = vrot.lane.b32.xlu0 %v4822, 16
        %v6122 = vpop.permute.xlu0 %6121
        %6123 = vrot.lane.b32.xlu0 %v3714, 16
        %v6124 = vpop.permute.xlu0 %6123
        %v6142 = vsel %vm5114, %v3356, %v5586
        %v6143 = vsel %vm5114, %v3357, %v5588
        %v6144 = vsel %vm5114, %v3358, %v5590
        %v6145 = vsel %vm5114, %v3359, %v5592
        %v6146 = vsel %vm5114, %v3360, %v5594
        %v6147 = vsel %vm5114, %v3361, %v5596
        %v6148 = vsel %vm5114, %v3362, %v5598
        %v6149 = vsel %vm5114, %v3363, %v5600
        %v6150 = vsel %vm5114, %v3364, %v5602
        %v6151 = vsel %vm5114, %v3365, %v5604
        %v6152 = vsel %vm5114, %v3366, %v5606
        %v6153 = vsel %vm5114, %v3367, %v5608
        %v6154 = vsel %vm5114, %v3368, %v5610
        %v6155 = vsel %vm5114, %v3353, %v5612
        %v6156 = vsel %vm5114, %v3282, %v5614
        %v6157 = vsel %vm5114, %v3369, %v5616
        %v6158 = vsel %vm5114, %v3354, %v5618
        %v6159 = vsel %vm5114, %v3288, %v5620
        %v6160 = vsel %vm5114, %v3370, %v5622
        %v6161 = vsel %vm5114, 0.0, %v5624
        %v6162 = vsel %vm344, %v6142, %v5646
        %v6163 = vsel %vm344, %v6143, %v5648
        %v6164 = vsel %vm344, %v6144, %v5650
        %v6165 = vsel %vm344, %v6145, %v5652
        %v6166 = vsel %vm344, %v6146, %v5654
        %v6167 = vsel %vm344, %v6147, %v5656
        %v6168 = vsel %vm344, %v6148, %v5658
        %v6169 = vsel %vm344, %v6149, %v5660
        %v6170 = vsel %vm344, %v6150, %v5662
        %v6171 = vsel %vm344, %v6151, %v5664
        %v6172 = vsel %vm344, %v6152, %v5666
        %v6173 = vsel %vm344, %v6153, %v5668
        %v6174 = vsel %vm344, %v6154, %v5670
        %v6175 = vsel %vm344, %v6155, %v5672
        %v6176 = vsel %vm344, %v6156, %v5674
        %v6177 = vsel %vm344, %v6157, %v5676
        %v6178 = vsel %vm344, %v6158, %v5678
        %v6179 = vsel %vm344, %v6159, %v5680
        %v6180 = vsel %vm344, %v6160, %v5682
        %v6181 = vsel %vm344, %v6161, %v5684
        %v6182 = vsel %vm5173, %v6162, %v5706
        %v6183 = vsel %vm5173, %v6163, %v5708
        %v6184 = vsel %vm5173, %v6164, %v5710
        %v6185 = vsel %vm5173, %v6165, %v5712
        %v6186 = vsel %vm5173, %v6166, %v5714
        %v6187 = vsel %vm5173, %v6167, %v5716
        %v6188 = vsel %vm5173, %v6168, %v5718
        %v6189 = vsel %vm5173, %v6169, %v5720
        %v6190 = vsel %vm5173, %v6170, %v5722
        %v6191 = vsel %vm5173, %v6171, %v5724
        %v6192 = vsel %vm5173, %v6172, %v5726
        %v6193 = vsel %vm5173, %v6173, %v5728
        %v6194 = vsel %vm5173, %v6174, %v5730
        %v6195 = vsel %vm5173, %v6175, %v5732
        %v6196 = vsel %vm5173, %v6176, %v5734
        %v6197 = vsel %vm5173, %v6177, %v5736
        %v6198 = vsel %vm5173, %v6178, %v5738
        %v6199 = vsel %vm5173, %v6179, %v5740
        %v6200 = vsel %vm5173, %v6180, %v5742
        %v6201 = vsel %vm5173, %v6181, %v5744
        %v6202 = vsel %vm2358, %v5177, %v5810
        %v6203 = vsel %vm2358, %v5178, %v5812
        %v6204 = vsel %vm2358, %v6182, %v5814
        %v6205 = vsel %vm2358, %v5179, %v5816
        %v6206 = vsel %vm2358, %v5180, %v5818
        %v6207 = vsel %vm2358, %v6183, %v5820
        %v6208 = vsel %vm2358, %v5181, %v5822
        %v6209 = vsel %vm2358, %v5182, %v5824
        %v6210 = vsel %vm2358, %v6184, %v5826
        %v6211 = vsel %vm2358, %v5183, %v5828
        %v6212 = vsel %vm2358, %v5184, %v5830
        %v6213 = vsel %vm2358, %v6185, %v5832
        %v6214 = vsel %vm2358, %v5185, %v5834
        %v6215 = vsel %vm2358, %v5186, %v5836
        %v6216 = vsel %vm2358, %v6186, %v5838
        %v6217 = vsel %vm2358, %v5187, %v5840
        %v6218 = vsel %vm2358, %v5188, %v5842
        %v6219 = vsel %vm2358, %v6187, %v5844
        %v6220 = vsel %vm2358, %v5189, %v5846
        %v6221 = vsel %vm2358, %v5190, %v5848
        %v6222 = vsel %vm2358, %v6188, %v5850
        %v6223 = vsel %vm2358, %v5191, %v5852
        %v6224 = vsel %vm2358, %v5192, %v5854
        %v6225 = vsel %vm2358, %v6189, %v5856
        %v6226 = vsel %vm2358, %v5193, %v5858
        %v6227 = vsel %vm2358, %v5194, %v5860
        %v6228 = vsel %vm2358, %v6190, %v5862
        %v6229 = vsel %vm2358, %v5195, %v5864
        %v6230 = vsel %vm2358, %v5196, %v5866
        %v6231 = vsel %vm2358, %v6191, %v5868
        %v6232 = vsel %vm2358, %v5197, %v5870
        %v6233 = vsel %vm2358, %v5198, %v5872
        %v6234 = vsel %vm2358, %v6192, %v5874
        %v6235 = vsel %vm2358, %v5199, %v5876
        %v6236 = vsel %vm2358, %v5200, %v5878
        %v6237 = vsel %vm2358, %v6193, %v5880
        %v6238 = vsel %vm2358, %v5201, %v5882
        %v6239 = vsel %vm2358, %v5202, %v5884
        %v6240 = vsel %vm2358, %v6194, %v5886
        %v6241 = vsel %vm2358, %v6195, %v5888
        %v6242 = vsel %vm2358, %v6196, %v5890
        %v6243 = vsel %vm2358, %v6197, %v5892
        %v6244 = vsel %vm2358, %v6198, %v5894
        %v6245 = vsel %vm2358, %v6199, %v5896
        %v6246 = vsel %vm2358, %v6200, %v5894
        %v6247 = vsel %vm2358, %v5174, %v5894
        %v6248 = vsel %vm2358, %v5174, %v5896
        %v6249 = vsel %vm2358, %v6201, %v5894
        %v6250 = vsel %vm5232, %v6202, %v4044
        %v6251 = vsel %vm5232, %v6203, %v4046
        %v6252 = vsel %vm5232, %v6204, %v5942
        %v6253 = vsel %vm5232, %v6205, %v4048
        %v6254 = vsel %vm5232, %v6206, %v4050
        %v6255 = vsel %vm5232, %v6207, %v5944
        %v6256 = vsel %vm5232, %v6208, %v4052
        %v6257 = vsel %vm5232, %v6209, %v4054
        %v6258 = vsel %vm5232, %v6210, %v5946
        %v6259 = vsel %vm5232, %v6211, %v4056
        %v6260 = vsel %vm5232, %v6212, %v4058
        %v6261 = vsel %vm5232, %v6213, %v5948
        %v6262 = vsel %vm5232, %v6214, %v4060
        %v6263 = vsel %vm5232, %v6215, %v4062
        %v6264 = vsel %vm5232, %v6216, %v5950
        %v6265 = vsel %vm5232, %v6217, %v4064
        %v6266 = vsel %vm5232, %v6218, %v4066
        %v6267 = vsel %vm5232, %v6219, %v5952
        %v6268 = vsel %vm5232, %v6220, %v4068
        %v6269 = vsel %vm5232, %v6221, %v4070
        %v6270 = vsel %vm5232, %v6222, %v5954
        %v6271 = vsel %vm5232, %v6223, %v4072
        %v6272 = vsel %vm5232, %v6224, %v4074
        %v6273 = vsel %vm5232, %v6225, %v5956
        %v6274 = vsel %vm5232, %v6226, %v4076
        %v6275 = vsel %vm5232, %v6227, %v4078
        %v6276 = vsel %vm5232, %v6228, %v5958
        %v6277 = vsel %vm5232, %v6229, %v4080
        %v6278 = vsel %vm5232, %v6230, %v4082
        %v6279 = vsel %vm5232, %v6231, %v5960
        %v6280 = vsel %vm5232, %v6232, %v4084
        %v6281 = vsel %vm5232, %v6233, %v4086
        %v6282 = vsel %vm5232, %v6234, %v5962
        %v6283 = vsel %vm5232, %v6235, %v4088
        %v6284 = vsel %vm5232, %v6236, %v4090
        %v6285 = vsel %vm5232, %v6237, %v5964
        %v6286 = vsel %vm5232, %v6238, %v4092
        %v6287 = vsel %vm5232, %v6239, %v4094
        %v6288 = vsel %vm5232, %v6240, %v5966
        %v6289 = vsel %vm5232, %v6241, %v5968
        %v6290 = vsel %vm5232, %v6242, %v5970
        %v6291 = vsel %vm5232, %v6243, %v5972
        %v6292 = vsel %vm5232, %v6244, %v4034
        %v6293 = vsel %vm5232, %v6245, %v4034
        %v6294 = vsel %vm5232, %v6246, %v4034
        %v6295 = vsel %vm5232, %v6247, %v4034
        %v6296 = vsel %vm5232, %v6248, %v4034
        %v6297 = vsel %vm5232, %v6249, %v4034
        %v6298 = vsel %vm2390, %v6250, %v4143
        %v6299 = vsel %vm2390, %v6251, %v4145
        %v6300 = vsel %vm2390, %v6252, %v5990
        %v6301 = vsel %vm2390, %v6253, %v4147
        %v6302 = vsel %vm2390, %v6254, %v4149
        %v6303 = vsel %vm2390, %v6255, %v5992
        %v6304 = vsel %vm2390, %v6256, %v4151
        %v6305 = vsel %vm2390, %v6257, %v4153
        %v6306 = vsel %vm2390, %v6258, %v5994
        %v6307 = vsel %vm2390, %v6259, %v4155
        %v6308 = vsel %vm2390, %v6260, %v4157
        %v6309 = vsel %vm2390, %v6261, %v5996
        %v6310 = vsel %vm2390, %v6262, %v4159
        %v6311 = vsel %vm2390, %v6263, %v4161
        %v6312 = vsel %vm2390, %v6264, %v5998
        %v6313 = vsel %vm2390, %v6265, %v4163
        %v6314 = vsel %vm2390, %v6266, %v4165
        %v6315 = vsel %vm2390, %v6267, %v6000
        %v6316 = vsel %vm2390, %v6268, %v4167
        %v6317 = vsel %vm2390, %v6269, %v4169
        %v6318 = vsel %vm2390, %v6270, %v6002
        %v6319 = vsel %vm2390, %v6271, %v4171
        %v6320 = vsel %vm2390, %v6272, %v4173
        %v6321 = vsel %vm2390, %v6273, %v6004
        %v6322 = vsel %vm2390, %v6274, %v4175
        %v6323 = vsel %vm2390, %v6275, %v4177
        %v6324 = vsel %vm2390, %v6276, %v6006
        %v6325 = vsel %vm2390, %v6277, %v4179
        %v6326 = vsel %vm2390, %v6278, %v4181
        %v6327 = vsel %vm2390, %v6279, %v6008
        %v6328 = vsel %vm2390, %v6280, %v4183
        %v6329 = vsel %vm2390, %v6281, %v4185
        %v6330 = vsel %vm2390, %v6282, %v6010
        %v6331 = vsel %vm2390, %v6283, %v4187
        %v6332 = vsel %vm2390, %v6284, %v4189
        %v6333 = vsel %vm2390, %v6285, %v6012
        %v6334 = vsel %vm2390, %v6286, %v4191
        %v6335 = vsel %vm2390, %v6287, %v4193
        %v6336 = vsel %vm2390, %v6288, %v6014
        %v6337 = vsel %vm2390, %v6289, %v6016
        %v6338 = vsel %vm2390, %v6290, %v6018
        %v6339 = vsel %vm2390, %v6291, %v6020
        %v6340 = vsel %vm2390, %v6292, %v4133
        %v6341 = vsel %vm2390, %v6293, %v4133
        %v6342 = vsel %vm2390, %v6294, %v6022
        %v6343 = vsel %vm2390, %v6295, %v4133
        %v6344 = vsel %vm2390, %v6296, %v4133
        %v6345 = vsel %vm2390, %v6297, %v6022
        %v6346 = vsel %vm5295, %v6298, %v4241
        %v6347 = vsel %vm5295, %v6299, %v4243
        %v6348 = vsel %vm5295, %v6300, %v6041
        %v6349 = vsel %vm5295, %v6301, %v4245
        %v6350 = vsel %vm5295, %v6302, %v4247
        %v6351 = vsel %vm5295, %v6303, %v6043
        %v6352 = vsel %vm5295, %v6304, %v4249
        %v6353 = vsel %vm5295, %v6305, %v4251
        %v6354 = vsel %vm5295, %v6306, %v6045
        %v6355 = vsel %vm5295, %v6307, %v4253
        %v6356 = vsel %vm5295, %v6308, %v4255
        %v6357 = vsel %vm5295, %v6309, %v6047
        %v6358 = vsel %vm5295, %v6310, %v4257
        %v6359 = vsel %vm5295, %v6311, %v4259
        %v6360 = vsel %vm5295, %v6312, %v6049
        %v6361 = vsel %vm5295, %v6313, %v4261
        %v6362 = vsel %vm5295, %v6314, %v4263
        %v6363 = vsel %vm5295, %v6315, %v6051
        %v6364 = vsel %vm5295, %v6316, %v4265
        %v6365 = vsel %vm5295, %v6317, %v4267
        %v6366 = vsel %vm5295, %v6318, %v6053
        %v6367 = vsel %vm5295, %v6319, %v4269
        %v6368 = vsel %vm5295, %v6320, %v4271
        %v6369 = vsel %vm5295, %v6321, %v6055
        %v6370 = vsel %vm5295, %v6322, %v4273
        %v6371 = vsel %vm5295, %v6323, %v4275
        %v6372 = vsel %vm5295, %v6324, %v6057
        %v6373 = vsel %vm5295, %v6325, %v4277
        %v6374 = vsel %vm5295, %v6326, %v4279
        %v6375 = vsel %vm5295, %v6327, %v6059
        %v6376 = vsel %vm5295, %v6328, %v4281
        %v6377 = vsel %vm5295, %v6329, %v4283
        %v6378 = vsel %vm5295, %v6330, %v6061
        %v6379 = vsel %vm5295, %v6331, %v4285
        %v6380 = vsel %vm5295, %v6332, %v4287
        %v6381 = vsel %vm5295, %v6333, %v6063
        %v6382 = vsel %vm5295, %v6334, %v4289
        %v6383 = vsel %vm5295, %v6335, %v4291
        %v6384 = vsel %vm5295, %v6336, %v6065
        %v6385 = vsel %vm5295, %v6337, %v6067
        %v6386 = vsel %vm5295, %v6338, %v6069
        %v6387 = vsel %vm5295, %v6339, %v6071
        %v6388 = vsel %vm5295, %v6340, %v4231
        %v6389 = vsel %vm5295, %v6341, %v4231
        %v6390 = vsel %vm5295, %v6342, %v6073
        %v6391 = vsel %vm5295, %v6343, %v4231
        %v6392 = vsel %vm5295, %v6344, %v4231
        %v6393 = vsel %vm5295, %v6345, %v6073
        %v6394 = vsel %vm2423, %v6346, %v4339
        %v6395 = vsel %vm2423, %v6347, %v4341
        %v6396 = vsel %vm2423, %v6348, %v6092
        %v6397 = vsel %vm2423, %v6349, %v4343
        %v6398 = vsel %vm2423, %v6350, %v4345
        %v6399 = vsel %vm2423, %v6351, %v6094
        %v6400 = vsel %vm2423, %v6352, %v4347
        %v6401 = vsel %vm2423, %v6353, %v4349
        %v6402 = vsel %vm2423, %v6354, %v6096
        %v6403 = vsel %vm2423, %v6355, %v4351
        %v6404 = vsel %vm2423, %v6356, %v4353
        %v6405 = vsel %vm2423, %v6357, %v6098
        %v6406 = vsel %vm2423, %v6358, %v4355
        %v6407 = vsel %vm2423, %v6359, %v4357
        %v6408 = vsel %vm2423, %v6360, %v6100
        %v6409 = vsel %vm2423, %v6361, %v4359
        %v6410 = vsel %vm2423, %v6362, %v4361
        %v6411 = vsel %vm2423, %v6363, %v6102
        %v6412 = vsel %vm2423, %v6364, %v4363
        %v6413 = vsel %vm2423, %v6365, %v4365
        %v6414 = vsel %vm2423, %v6366, %v6104
        %v6415 = vsel %vm2423, %v6367, %v4367
        %v6416 = vsel %vm2423, %v6368, %v4369
        %v6417 = vsel %vm2423, %v6369, %v6106
        %v6418 = vsel %vm2423, %v6370, %v4371
        %v6419 = vsel %vm2423, %v6371, %v4373
        %v6420 = vsel %vm2423, %v6372, %v6108
        %v6421 = vsel %vm2423, %v6373, %v4375
        %v6422 = vsel %vm2423, %v6374, %v4377
        %v6423 = vsel %vm2423, %v6375, %v6110
        %v6424 = vsel %vm2423, %v6376, %v4379
        %v6425 = vsel %vm2423, %v6377, %v4381
        %v6426 = vsel %vm2423, %v6378, %v6112
        %v6427 = vsel %vm2423, %v6379, %v4383
        %v6428 = vsel %vm2423, %v6380, %v4385
        %v6429 = vsel %vm2423, %v6381, %v6114
        %v6430 = vsel %vm2423, %v6382, %v4387
        %v6431 = vsel %vm2423, %v6383, %v4389
        %v6432 = vsel %vm2423, %v6384, %v6116
        %v6433 = vsel %vm2423, %v6385, %v6118
        %v6434 = vsel %vm2423, %v6386, %v6120
        %v6435 = vsel %vm2423, %v6387, %v6122
        %v6436 = vsel %vm2423, %v6388, %v4329
        %v6437 = vsel %vm2423, %v6389, %v4329
        %v6438 = vsel %vm2423, %v6390, %v6124
        %v6439 = vsel %vm2423, %v6391, %v4329
        %v6440 = vsel %vm2423, %v6392, %v4329
        %v6441 = vsel %vm2423, %v6393, %v6124
        %v6490 = vrot.slane %v6394, 1
        %v6491 = vrot.slane %v6395, 1
        %v6492 = vsel %vm863, %v6490, %v6491
        %v6493 = vrot.slane %v6396, 1
        %v6494 = vsel %vm863, %v6491, %v6493
        %v6495 = vrot.slane %v6397, 1
        %v6496 = vrot.slane %v6398, 1
        %v6497 = vsel %vm863, %v6495, %v6496
        %v6498 = vrot.slane %v6399, 1
        %v6499 = vsel %vm863, %v6496, %v6498
        %v6500 = vrot.slane %v6400, 1
        %v6501 = vrot.slane %v6401, 1
        %v6502 = vsel %vm863, %v6500, %v6501
        %v6503 = vrot.slane %v6402, 1
        %v6504 = vsel %vm863, %v6501, %v6503
        %v6505 = vrot.slane %v6403, 1
        %v6506 = vrot.slane %v6404, 1
        %v6507 = vsel %vm863, %v6505, %v6506
        %v6508 = vrot.slane %v6405, 1
        %v6509 = vsel %vm863, %v6506, %v6508
        %v6510 = vrot.slane %v6406, 1
        %v6511 = vrot.slane %v6407, 1
        %v6512 = vsel %vm863, %v6510, %v6511
        %v6513 = vrot.slane %v6408, 1
        %v6514 = vsel %vm863, %v6511, %v6513
        %v6515 = vrot.slane %v6409, 1
        %v6516 = vrot.slane %v6410, 1
        %v6517 = vsel %vm863, %v6515, %v6516
        %v6518 = vrot.slane %v6411, 1
        %v6519 = vsel %vm863, %v6516, %v6518
        %v6520 = vrot.slane %v6412, 1
        %v6521 = vrot.slane %v6413, 1
        %v6522 = vsel %vm863, %v6520, %v6521
        %v6523 = vrot.slane %v6414, 1
        %v6524 = vsel %vm863, %v6521, %v6523
        %v6525 = vrot.slane %v6415, 1
        %v6526 = vrot.slane %v6416, 1
        %v6527 = vsel %vm863, %v6525, %v6526
        %v6528 = vrot.slane %v6417, 1
        %v6529 = vsel %vm863, %v6526, %v6528
        %v6530 = vrot.slane %v6418, 1
        %v6531 = vrot.slane %v6419, 1
        %v6532 = vsel %vm863, %v6530, %v6531
        %v6533 = vrot.slane %v6420, 1
        %v6534 = vsel %vm863, %v6531, %v6533
        %v6535 = vrot.slane %v6421, 1
        %v6536 = vrot.slane %v6422, 1
        %v6537 = vsel %vm863, %v6535, %v6536
        %v6538 = vrot.slane %v6423, 1
        %v6539 = vsel %vm863, %v6536, %v6538
        %v6540 = vrot.slane %v6424, 1
        %v6541 = vrot.slane %v6425, 1
        %v6542 = vsel %vm863, %v6540, %v6541
        %v6543 = vrot.slane %v6426, 1
        %v6544 = vsel %vm863, %v6541, %v6543
        %v6545 = vrot.slane %v6427, 1
        %v6546 = vrot.slane %v6428, 1
        %v6547 = vsel %vm863, %v6545, %v6546
        %v6548 = vrot.slane %v6429, 1
        %v6549 = vsel %vm863, %v6546, %v6548
        %v6550 = vrot.slane %v6430, 1
        %v6551 = vrot.slane %v6431, 1
        %v6552 = vsel %vm863, %v6550, %v6551
        %v6553 = vrot.slane %v6432, 1
        %v6554 = vsel %vm863, %v6551, %v6553
        %v6555 = vrot.slane %v6433, 1
        %v6556 = vrot.slane %v6434, 1
        %v6557 = vsel %vm863, %v6555, %v6556
        %v6558 = vrot.slane %v6435, 1
        %v6559 = vsel %vm863, %v6556, %v6558
        %v6560 = vrot.slane %v6436, 1
        %v6561 = vrot.slane %v6437, 1
        %v6562 = vsel %vm863, %v6560, %v6561
        %v6563 = vrot.slane %v6438, 1
        %v6564 = vsel %vm863, %v6561, %v6563
        %v6565 = vrot.slane %v6439, 1
        %v6566 = vrot.slane %v6440, 1
        %v6567 = vsel %vm863, %v6565, %v6566
        %v6568 = vrot.slane %v6441, 1
        %v6569 = vsel %vm863, %v6566, %v6568
        %6570 = vrot.lane.b32.xlu0 %v6492, 32
        %v6571 = vpop.permute.xlu0 %6570
        %6572 = vrot.lane.b32.xlu0 %v6494, 32
        %v6573 = vpop.permute.xlu0 %6572
        %6574 = vrot.lane.b32.xlu0 %v6497, 32
        %v6575 = vpop.permute.xlu0 %6574
        %6576 = vrot.lane.b32.xlu0 %v6499, 32
        %v6577 = vpop.permute.xlu0 %6576
        %6578 = vrot.lane.b32.xlu0 %v6502, 32
        %v6579 = vpop.permute.xlu0 %6578
        %6580 = vrot.lane.b32.xlu0 %v6504, 32
        %v6581 = vpop.permute.xlu0 %6580
        %6582 = vrot.lane.b32.xlu0 %v6507, 32
        %v6583 = vpop.permute.xlu0 %6582
        %6584 = vrot.lane.b32.xlu0 %v6509, 32
        %v6585 = vpop.permute.xlu0 %6584
        %6586 = vrot.lane.b32.xlu0 %v6512, 32
        %v6587 = vpop.permute.xlu0 %6586
        %6588 = vrot.lane.b32.xlu0 %v6514, 32
        %v6589 = vpop.permute.xlu0 %6588
        %6590 = vrot.lane.b32.xlu0 %v6517, 32
        %v6591 = vpop.permute.xlu0 %6590
        %6592 = vrot.lane.b32.xlu0 %v6519, 32
        %v6593 = vpop.permute.xlu0 %6592
        %6594 = vrot.lane.b32.xlu0 %v6522, 32
        %v6595 = vpop.permute.xlu0 %6594
        %6596 = vrot.lane.b32.xlu0 %v6524, 32
        %v6597 = vpop.permute.xlu0 %6596
        %6598 = vrot.lane.b32.xlu0 %v6527, 32
        %v6599 = vpop.permute.xlu0 %6598
        %6600 = vrot.lane.b32.xlu0 %v6529, 32
        %v6601 = vpop.permute.xlu0 %6600
        %6602 = vrot.lane.b32.xlu0 %v6532, 32
        %v6603 = vpop.permute.xlu0 %6602
        %6604 = vrot.lane.b32.xlu0 %v6534, 32
        %v6605 = vpop.permute.xlu0 %6604
        %6606 = vrot.lane.b32.xlu0 %v6537, 32
        %v6607 = vpop.permute.xlu0 %6606
        %6608 = vrot.lane.b32.xlu0 %v6539, 32
        %v6609 = vpop.permute.xlu0 %6608
        %6610 = vrot.lane.b32.xlu0 %v6542, 32
        %v6611 = vpop.permute.xlu0 %6610
        %6612 = vrot.lane.b32.xlu0 %v6544, 32
        %v6613 = vpop.permute.xlu0 %6612
        %6614 = vrot.lane.b32.xlu0 %v6547, 32
        %v6615 = vpop.permute.xlu0 %6614
        %6616 = vrot.lane.b32.xlu0 %v6549, 32
        %v6617 = vpop.permute.xlu0 %6616
        %6618 = vrot.lane.b32.xlu0 %v6552, 32
        %v6619 = vpop.permute.xlu0 %6618
        %6620 = vrot.lane.b32.xlu0 %v6554, 32
        %v6621 = vpop.permute.xlu0 %6620
        %6622 = vrot.lane.b32.xlu0 %v6557, 32
        %v6623 = vpop.permute.xlu0 %6622
        %6624 = vrot.lane.b32.xlu0 %v6559, 32
        %v6625 = vpop.permute.xlu0 %6624
        %6626 = vrot.lane.b32.xlu0 %v6562, 32
        %v6627 = vpop.permute.xlu0 %6626
        %6628 = vrot.lane.b32.xlu0 %v6564, 32
        %v6629 = vpop.permute.xlu0 %6628
        %6630 = vrot.lane.b32.xlu0 %v6567, 32
        %v6631 = vpop.permute.xlu0 %6630
        %6632 = vrot.lane.b32.xlu0 %v6569, 32
        %v6633 = vpop.permute.xlu0 %6632
        %v6666 = vsel %vm2555, %v5553, %v6571
        %v6667 = vsel %vm2555, %v5554, %v6573
        %v6668 = vsel %vm2555, %v5555, %v6575
        %v6669 = vsel %vm2555, %v5556, %v6577
        %v6670 = vsel %vm2555, %v5557, %v6579
        %v6671 = vsel %vm2555, %v5558, %v6581
        %v6672 = vsel %vm2555, %v5559, %v6583
        %v6673 = vsel %vm2555, %v5560, %v6585
        %v6674 = vsel %vm2555, %v5561, %v6587
        %v6675 = vsel %vm2555, %v5562, %v6589
        %v6676 = vsel %vm2555, %v5563, %v6591
        %v6677 = vsel %vm2555, %v5564, %v6593
        %v6678 = vsel %vm2555, %v5565, %v6595
        %v6679 = vsel %vm2555, %v5566, %v6597
        %v6680 = vsel %vm2555, %v5567, %v6599
        %v6681 = vsel %vm2555, %v5568, %v6601
        %v6682 = vsel %vm2555, %v5569, %v6603
        %v6683 = vsel %vm2555, %v5570, %v6605
        %v6684 = vsel %vm2555, %v5571, %v6607
        %v6685 = vsel %vm2555, %v5572, %v6609
        %v6686 = vsel %vm2555, %v5573, %v6611
        %v6687 = vsel %vm2555, %v5574, %v6613
        %v6688 = vsel %vm2555, %v5575, %v6615
        %v6689 = vsel %vm2555, %v5576, %v6617
        %v6690 = vsel %vm2555, %v5577, %v6619
        %v6691 = vsel %vm2555, %v5578, %v6621
        %v6692 = vsel %vm2555, %v5579, %v6623
        %v6693 = vsel %vm2555, %v5580, %v6625
        %v6694 = vsel %vm2555, %v5581, %v6627
        %v6695 = vsel %vm2555, %v5582, %v6629
        %v6696 = vsel %vm2555, %v5583, %v6631
        %v6697 = vsel %vm2555, %v5584, %v6633
        %v6698 = vld [vmem:[%s5] sm:$0xff]
        %v6699 = vld [vmem:[%s5 + $0x8] sm:$0xff]
        %v6700 = vld [vmem:[%s5 + $0x10] sm:$0xff]
        %v6701 = vld [vmem:[%s5 + $0x18] sm:$0xff]
        %v6702 = vld [vmem:[%s5 + $0x20] sm:$0xff]
        %v6703 = vld [vmem:[%s5 + $0x28] sm:$0xff]
        %v6704 = vld [vmem:[%s5 + $0x30] sm:$0x3]
        %vm6705 = vcmask 408576
        %v6707 = vsel %vm6705, %v6666, 0
        %v6710 = vsel %vm6705, %v6667, 0
        %v6713 = vsel %vm6705, %v6668, 0
        %v6716 = vsel %vm6705, %v6669, 0
        %v6719 = vsel %vm6705, %v6670, 0
        %v6722 = vsel %vm6705, %v6671, 0
        %v6725 = vsel %vm6705, %v6672, 0
        %v6728 = vsel %vm6705, %v6673, 0
        %v6731 = vsel %vm6705, %v6674, 0
        %v6734 = vsel %vm6705, %v6675, 0
        %v6737 = vsel %vm6705, %v6676, 0
        %v6740 = vsel %vm6705, %v6677, 0
        %v6743 = vsel %vm6705, %v6678, 0
        %v6746 = vsel %vm6705, %v6679, 0
        %v6749 = vsel %vm6705, %v6680, 0
        %v6752 = vsel %vm6705, %v6681, 0
        %v6755 = vsel %vm6705, %v6682, 0
        %v6758 = vsel %vm6705, %v6683, 0
        %v6761 = vsel %vm6705, %v6684, 0
        %v6764 = vsel %vm6705, %v6685, 0
        %v6767 = vsel %vm6705, %v6686, 0
        %v6770 = vsel %vm6705, %v6687, 0
        %v6773 = vsel %vm6705, %v6688, 0
        %v6776 = vsel %vm6705, %v6689, 0
        %v6779 = vsel %vm6705, %v6690, 0
        %v6782 = vsel %vm6705, %v6691, 0
        %v6785 = vsel %vm6705, %v6692, 0
        %v6788 = vsel %vm6705, %v6693, 0
        %v6791 = vsel %vm6705, %v6694, 0
        %v6794 = vsel %vm6705, %v6695, 0
        %v6797 = vsel %vm6705, %v6696, 0
        %v6800 = vsel %vm6705, %v6697, 0
        %v6803 = vsel %vm3146, %v6704, 0
        %6805 = vmatprep.subr.mxu0 0.0
        %6806 = vmatpush1.msra.mxu0 %v6698
        %6807 = vmatprep.subr.mxu0 0.0
        %6808 = vmatpush1.msra.mxu0 %v6699
        %6809 = vmatprep.subr.mxu0 0.0
        %6810 = vmatpush1.msra.mxu0 %v6700
        %6811 = vmatprep.subr.mxu0 0.0
        %6812 = vmatpush1.msra.mxu0 %v6701
        %6813 = vmatprep.subr.mxu0 0.0
        %6814 = vmatpush1.msra.mxu0 %v6702
        %6815 = vmatprep.subr.mxu0 0.0
        %6816 = vmatpush1.msra.mxu0 %v6703
        %6817 = vmatprep.subr.mxu0 0.0
        %6818 = vmatpush1.msra.mxu0 %v6803
        %6819 = vmatprep.subr.mxu0 0.0
        %6820 = vmatpush1.msra.mxu0 0.0
        %6821 = vmatprep.subr.mxu0 0.0
        %6822 = vmatpush1.msra.mxu0 0.0
        %6823 = vmatprep.subr.mxu0 0.0
        %6824 = vmatpush1.msra.mxu0 0.0
        %6825 = vmatprep.subr.mxu0 0.0
        %6826 = vmatpush1.msra.mxu0 0.0
        %6827 = vmatprep.subr.mxu0 0.0
        %6828 = vmatpush1.msra.mxu0 0.0
        %6829 = vmatprep.subr.mxu0 0.0
        %6830 = vmatpush1.msra.mxu0 0.0
        %6831 = vmatprep.subr.mxu0 0.0
        %6832 = vmatpush1.msra.mxu0 0.0
        %6833 = vmatprep.subr.mxu0 0.0
        %6834 = vmatpush1.msra.mxu0 0.0
        %6835 = vmatprep.subr.mxu0 0.0
        %6836 = vmatpush1.msra.mxu0 0.0
        %6837 = vmatprep.subr.mxu0 0.0
        %6838 = vmatpush1.msra.mxu0 0.0
        %6839 = vmatprep.subr.mxu0 0.0
        %6840 = vmatpush1.msra.mxu0 0.0
        %6841 = vmatprep.subr.mxu0 0.0
        %6842 = vmatpush1.msra.mxu0 0.0
        %6843 = vmatprep.subr.mxu0 0.0
        %6844 = vmatpush1.msra.mxu0 0.0
        %6845 = vmatprep.subr.mxu0 0.0
        %6846 = vmatpush1.msra.mxu0 0.0
        %6847 = vmatprep.subr.mxu0 0.0
        %6848 = vmatpush1.msra.mxu0 0.0
        %6849 = vmatprep.subr.mxu0 0.0
        %6850 = vmatpush1.msra.mxu0 0.0
        %6851 = vmatprep.subr.mxu0 0.0
        %6852 = vmatpush1.msra.mxu0 0.0
        %6853 = vmatprep.subr.mxu0 0.0
        %6854 = vmatpush1.msra.mxu0 0.0
        %6855 = vmatprep.subr.mxu0 0.0
        %6856 = vmatpush1.msra.mxu0 0.0
        %6857 = vmatprep.subr.mxu0 0.0
        %6858 = vmatpush1.msra.mxu0 0.0
        %6859 = vmatprep.subr.mxu0 0.0
        %6860 = vmatpush1.msra.mxu0 0.0
        %6861 = vmatprep.subr.mxu0 0.0
        %6862 = vmatpush1.msra.mxu0 0.0
        %6863 = vmatprep.subr.mxu0 0.0
        %6864 = vmatpush1.msra.mxu0 0.0
        %6865 = vmatprep.subr.mxu0 0.0
        %6866 = vmatpush1.msra.mxu0 0.0
        %6867 = vmatprep.subr.mxu0 0.0
        %6868 = vmatpush1.msra.mxu0 0.0
        %6869 = vmatprep.mubr.f32.mxu0 0.0
        %6870 = vmatmul.mubr.f32.gmra.mrb[0].mxu0 %v6707
        %v6871 = vpop.f32.mrb[0].mxu0
        %v6872 = vadd.f32 0.0, %v6871
        %v6873 = vpop.f32.mrb[0].mxu0
        %6874 = vmatprep.mubr.f32.mxu0 0.0
        %6875 = vmatmul.mubr.f32.gmra.mrb[0].mxu0 %v6710
        %v6876 = vpop.f32.mrb[0].mxu0
        %v6877 = vadd.f32 0.0, %v6876
        %v6878 = vpop.f32.mrb[0].mxu0
        %6879 = vmatprep.mubr.f32.mxu0 0.0
        %6880 = vmatmul.mubr.f32.gmra.mrb[0].mxu0 %v6713
        %v6881 = vpop.f32.mrb[0].mxu0
        %v6882 = vadd.f32 0.0, %v6881
        %v6883 = vpop.f32.mrb[0].mxu0
        %6884 = vmatprep.mubr.f32.mxu0 0.0
        %6885 = vmatmul.mubr.f32.gmra.mrb[0].mxu0 %v6716
        %v6886 = vpop.f32.mrb[0].mxu0
        %v6887 = vadd.f32 0.0, %v6886
        %v6888 = vpop.f32.mrb[0].mxu0
        %6889 = vmatprep.mubr.f32.mxu0 0.0
        %6890 = vmatmul.mubr.f32.gmra.mrb[0].mxu0 %v6719
        %v6891 = vpop.f32.mrb[0].mxu0
        %v6892 = vadd.f32 0.0, %v6891
        %v6893 = vpop.f32.mrb[0].mxu0
        %6894 = vmatprep.mubr.f32.mxu0 0.0
        %6895 = vmatmul.mubr.f32.gmra.mrb[0].mxu0 %v6722
        %v6896 = vpop.f32.mrb[0].mxu0
        %v6897 = vadd.f32 0.0, %v6896
        %v6898 = vpop.f32.mrb[0].mxu0
        %6899 = vmatprep.mubr.f32.mxu0 0.0
        %6900 = vmatmul.mubr.f32.gmra.mrb[0].mxu0 %v6725
        %v6901 = vpop.f32.mrb[0].mxu0
        %v6902 = vadd.f32 0.0, %v6901
        %v6903 = vpop.f32.mrb[0].mxu0
        %6904 = vmatprep.mubr.f32.mxu0 0.0
        %6905 = vmatmul.mubr.f32.gmra.mrb[0].mxu0 %v6728
        %v6906 = vpop.f32.mrb[0].mxu0
        %v6907 = vadd.f32 0.0, %v6906
        %v6908 = vpop.f32.mrb[0].mxu0
        %6909 = vmatprep.mubr.f32.mxu0 0.0
        %6910 = vmatmul.mubr.f32.gmra.mrb[0].mxu0 %v6731
        %v6911 = vpop.f32.mrb[0].mxu0
        %v6912 = vadd.f32 0.0, %v6911
        %v6913 = vpop.f32.mrb[0].mxu0
        %6914 = vmatprep.mubr.f32.mxu0 0.0
        %6915 = vmatmul.mubr.f32.gmra.mrb[0].mxu0 %v6734
        %v6916 = vpop.f32.mrb[0].mxu0
        %v6917 = vadd.f32 0.0, %v6916
        %v6918 = vpop.f32.mrb[0].mxu0
        %6919 = vmatprep.mubr.f32.mxu0 0.0
        %6920 = vmatmul.mubr.f32.gmra.mrb[0].mxu0 %v6737
        %v6921 = vpop.f32.mrb[0].mxu0
        %v6922 = vadd.f32 0.0, %v6921
        %v6923 = vpop.f32.mrb[0].mxu0
        %6924 = vmatprep.mubr.f32.mxu0 0.0
        %6925 = vmatmul.mubr.f32.gmra.mrb[0].mxu0 %v6740
        %v6926 = vpop.f32.mrb[0].mxu0
        %v6927 = vadd.f32 0.0, %v6926
        %v6928 = vpop.f32.mrb[0].mxu0
        %6929 = vmatprep.mubr.f32.mxu0 0.0
        %6930 = vmatmul.mubr.f32.gmra.mrb[0].mxu0 %v6743
        %v6931 = vpop.f32.mrb[0].mxu0
        %v6932 = vadd.f32 0.0, %v6931
        %v6933 = vpop.f32.mrb[0].mxu0
        %6934 = vmatprep.mubr.f32.mxu0 0.0
        %6935 = vmatmul.mubr.f32.gmra.mrb[0].mxu0 %v6746
        %v6936 = vpop.f32.mrb[0].mxu0
        %v6937 = vadd.f32 0.0, %v6936
        %v6938 = vpop.f32.mrb[0].mxu0
        %6939 = vmatprep.mubr.f32.mxu0 0.0
        %6940 = vmatmul.mubr.f32.gmra.mrb[0].mxu0 %v6749
        %v6941 = vpop.f32.mrb[0].mxu0
        %v6942 = vadd.f32 0.0, %v6941
        %v6943 = vpop.f32.mrb[0].mxu0
        %6944 = vmatprep.mubr.f32.mxu0 0.0
        %6945 = vmatmul.mubr.f32.gmra.mrb[0].mxu0 %v6752
        %v6946 = vpop.f32.mrb[0].mxu0
        %v6947 = vadd.f32 0.0, %v6946
        %v6948 = vpop.f32.mrb[0].mxu0
        %6949 = vmatprep.mubr.f32.mxu0 0.0
        %6950 = vmatmul.mubr.f32.gmra.mrb[0].mxu0 %v6755
        %v6951 = vpop.f32.mrb[0].mxu0
        %v6952 = vadd.f32 0.0, %v6951
        %v6953 = vpop.f32.mrb[0].mxu0
        %6954 = vmatprep.mubr.f32.mxu0 0.0
        %6955 = vmatmul.mubr.f32.gmra.mrb[0].mxu0 %v6758
        %v6956 = vpop.f32.mrb[0].mxu0
        %v6957 = vadd.f32 0.0, %v6956
        %v6958 = vpop.f32.mrb[0].mxu0
        %6959 = vmatprep.mubr.f32.mxu0 0.0
        %6960 = vmatmul.mubr.f32.gmra.mrb[0].mxu0 %v6761
        %v6961 = vpop.f32.mrb[0].mxu0
        %v6962 = vadd.f32 0.0, %v6961
        %v6963 = vpop.f32.mrb[0].mxu0
        %6964 = vmatprep.mubr.f32.mxu0 0.0
        %6965 = vmatmul.mubr.f32.gmra.mrb[0].mxu0 %v6764
        %v6966 = vpop.f32.mrb[0].mxu0
        %v6967 = vadd.f32 0.0, %v6966
        %v6968 = vpop.f32.mrb[0].mxu0
        %6969 = vmatprep.mubr.f32.mxu0 0.0
        %6970 = vmatmul.mubr.f32.gmra.mrb[0].mxu0 %v6767
        %v6971 = vpop.f32.mrb[0].mxu0
        %v6972 = vadd.f32 0.0, %v6971
        %v6973 = vpop.f32.mrb[0].mxu0
        %6974 = vmatprep.mubr.f32.mxu0 0.0
        %6975 = vmatmul.mubr.f32.gmra.mrb[0].mxu0 %v6770
        %v6976 = vpop.f32.mrb[0].mxu0
        %v6977 = vadd.f32 0.0, %v6976
        %v6978 = vpop.f32.mrb[0].mxu0
        %6979 = vmatprep.mubr.f32.mxu0 0.0
        %6980 = vmatmul.mubr.f32.gmra.mrb[0].mxu0 %v6773
        %v6981 = vpop.f32.mrb[0].mxu0
        %v6982 = vadd.f32 0.0, %v6981
        %v6983 = vpop.f32.mrb[0].mxu0
        %6984 = vmatprep.mubr.f32.mxu0 0.0
        %6985 = vmatmul.mubr.f32.gmra.mrb[0].mxu0 %v6776
        %v6986 = vpop.f32.mrb[0].mxu0
        %v6987 = vadd.f32 0.0, %v6986
        %v6988 = vpop.f32.mrb[0].mxu0
        %6989 = vmatprep.mubr.f32.mxu0 0.0
        %6990 = vmatmul.mubr.f32.gmra.mrb[0].mxu0 %v6779
        %v6991 = vpop.f32.mrb[0].mxu0
        %v6992 = vadd.f32 0.0, %v6991
        %v6993 = vpop.f32.mrb[0].mxu0
        %6994 = vmatprep.mubr.f32.mxu0 0.0
        %6995 = vmatmul.mubr.f32.gmra.mrb[0].mxu0 %v6782
        %v6996 = vpop.f32.mrb[0].mxu0
        %v6997 = vadd.f32 0.0, %v6996
        %v6998 = vpop.f32.mrb[0].mxu0
        %6999 = vmatprep.mubr.f32.mxu0 0.0
        %7000 = vmatmul.mubr.f32.gmra.mrb[0].mxu0 %v6785
        %v7001 = vpop.f32.mrb[0].mxu0
        %v7002 = vadd.f32 0.0, %v7001
        %v7003 = vpop.f32.mrb[0].mxu0
        %7004 = vmatprep.mubr.f32.mxu0 0.0
        %7005 = vmatmul.mubr.f32.gmra.mrb[0].mxu0 %v6788
        %v7006 = vpop.f32.mrb[0].mxu0
        %v7007 = vadd.f32 0.0, %v7006
        %v7008 = vpop.f32.mrb[0].mxu0
        %7009 = vmatprep.mubr.f32.mxu0 0.0
        %7010 = vmatmul.mubr.f32.gmra.mrb[0].mxu0 %v6791
        %v7011 = vpop.f32.mrb[0].mxu0
        %v7012 = vadd.f32 0.0, %v7011
        %v7013 = vpop.f32.mrb[0].mxu0
        %7014 = vmatprep.mubr.f32.mxu0 0.0
        %7015 = vmatmul.mubr.f32.gmra.mrb[0].mxu0 %v6794
        %v7016 = vpop.f32.mrb[0].mxu0
        %v7017 = vadd.f32 0.0, %v7016
        %v7018 = vpop.f32.mrb[0].mxu0
        %7019 = vmatprep.mubr.f32.mxu0 0.0
        %7020 = vmatmul.mubr.f32.gmra.mrb[0].mxu0 %v6797
        %v7021 = vpop.f32.mrb[0].mxu0
        %v7022 = vadd.f32 0.0, %v7021
        %v7023 = vpop.f32.mrb[0].mxu0
        %7024 = vmatprep.mubr.f32.mxu0 0.0
        %7025 = vmatmul.mubr.f32.gmra.mrb[0].mxu0 %v6800
        %v7026 = vpop.f32.mrb[0].mxu0
        %v7027 = vadd.f32 0.0, %v7026
        %v7028 = vpop.f32.mrb[0].mxu0
        %7029 = vdwg.mxu0
        %v7030 = vadd.f32 %v2988, %v6872
        %v7031 = vadd.f32 %v2993, %v6877
        %v7032 = vadd.f32 %v2998, %v6882
        %v7033 = vadd.f32 %v3003, %v6887
        %v7034 = vadd.f32 %v3008, %v6892
        %v7035 = vadd.f32 %v3013, %v6897
        %v7036 = vadd.f32 %v3018, %v6902
        %v7037 = vadd.f32 %v3023, %v6907
        %v7038 = vadd.f32 %v3028, %v6912
        %v7039 = vadd.f32 %v3033, %v6917
        %v7040 = vadd.f32 %v3038, %v6922
        %v7041 = vadd.f32 %v3043, %v6927
        %v7042 = vadd.f32 %v3048, %v6932
        %v7043 = vadd.f32 %v3053, %v6937
        %v7044 = vadd.f32 %v3058, %v6942
        %v7045 = vadd.f32 %v3063, %v6947
        %v7046 = vadd.f32 %v3068, %v6952
        %v7047 = vadd.f32 %v3073, %v6957
        %v7048 = vadd.f32 %v3078, %v6962
        %v7049 = vadd.f32 %v3083, %v6967
        %v7050 = vadd.f32 %v3088, %v6972
        %v7051 = vadd.f32 %v3093, %v6977
        %v7052 = vadd.f32 %v3098, %v6982
        %v7053 = vadd.f32 %v3103, %v6987
        %v7054 = vadd.f32 %v3108, %v6992
        %v7055 = vadd.f32 %v3113, %v6997
        %v7056 = vadd.f32 %v3118, %v7002
        %v7057 = vadd.f32 %v3123, %v7007
        %v7058 = vadd.f32 %v3128, %v7012
        %v7059 = vadd.f32 %v3133, %v7017
        %v7060 = vadd.f32 %v3138, %v7022
        %v7061 = vadd.f32 %v3143, %v7027
        %v7062 = vld [vmem:[%s6] sm:$0xf]
        %v7064 = vsel %vm344, %v1185, 0
        %v7067 = vsel %vm344, %v1186, 0
        %v7070 = vsel %vm344, %v1187, 0
        %v7073 = vsel %vm344, %v1188, 0
        %v7076 = vsel %vm344, %v1189, 0
        %v7079 = vsel %vm344, %v1190, 0
        %v7082 = vsel %vm344, %v1191, 0
        %v7085 = vsel %vm344, %v1192, 0
        %v7088 = vsel %vm344, %v1193, 0
        %v7091 = vsel %vm344, %v1194, 0
        %v7094 = vsel %vm344, %v1195, 0
        %v7097 = vsel %vm344, %v1196, 0
        %v7100 = vsel %vm344, %v1197, 0
        %v7103 = vsel %vm344, %v1198, 0
        %v7106 = vsel %vm344, %v1199, 0
        %v7109 = vsel %vm344, %v1200, 0
        %v7112 = vsel %vm344, %v1201, 0
        %v7115 = vsel %vm344, %v1202, 0
        %v7118 = vsel %vm344, %v1203, 0
        %v7121 = vsel %vm344, %v1204, 0
        %v7124 = vsel %vm344, %v1205, 0
        %v7127 = vsel %vm344, %v1206, 0
        %v7130 = vsel %vm344, %v1207, 0
        %v7133 = vsel %vm344, %v1208, 0
        %v7136 = vsel %vm344, %v1209, 0
        %v7139 = vsel %vm344, %v1210, 0
        %v7142 = vsel %vm344, %v1211, 0
        %v7145 = vsel %vm344, %v1212, 0
        %v7148 = vsel %vm344, %v1213, 0
        %v7151 = vsel %vm344, %v1214, 0
        %v7154 = vsel %vm344, %v1215, 0
        %v7157 = vsel %vm344, %v1216, 0
        %v7160 = vsel %vm441, %v7062, 0
        %7162 = vmatprep.subr.mxu0 0.0
        %7163 = vmatpush1.msra.mxu0 %v7160
        %7164 = vmatprep.subr.mxu0 0.0
        %7165 = vmatpush1.msra.mxu0 0.0
        %7166 = vmatprep.subr.mxu0 0.0
        %7167 = vmatpush1.msra.mxu0 0.0
        %7168 = vmatprep.subr.mxu0 0.0
        %7169 = vmatpush1.msra.mxu0 0.0
        %7170 = vmatprep.subr.mxu0 0.0
        %7171 = vmatpush1.msra.mxu0 0.0
        %7172 = vmatprep.subr.mxu0 0.0
        %7173 = vmatpush1.msra.mxu0 0.0
        %7174 = vmatprep.subr.mxu0 0.0
        %7175 = vmatpush1.msra.mxu0 0.0
        %7176 = vmatprep.subr.mxu0 0.0
        %7177 = vmatpush1.msra.mxu0 0.0
        %7178 = vmatprep.subr.mxu0 0.0
        %7179 = vmatpush1.msra.mxu0 0.0
        %7180 = vmatprep.subr.mxu0 0.0
        %7181 = vmatpush1.msra.mxu0 0.0
        %7182 = vmatprep.subr.mxu0 0.0
        %7183 = vmatpush1.msra.mxu0 0.0
        %7184 = vmatprep.subr.mxu0 0.0
        %7185 = vmatpush1.msra.mxu0 0.0
        %7186 = vmatprep.subr.mxu0 0.0
        %7187 = vmatpush1.msra.mxu0 0.0
        %7188 = vmatprep.subr.mxu0 0.0
        %7189 = vmatpush1.msra.mxu0 0.0
        %7190 = vmatprep.subr.mxu0 0.0
        %7191 = vmatpush1.msra.mxu0 0.0
        %7192 = vmatprep.subr.mxu0 0.0
        %7193 = vmatpush1.msra.mxu0 0.0
        %7194 = vmatprep.subr.mxu0 0.0
        %7195 = vmatpush1.msra.mxu0 0.0
        %7196 = vmatprep.subr.mxu0 0.0
        %7197 = vmatpush1.msra.mxu0 0.0
        %7198 = vmatprep.subr.mxu0 0.0
        %7199 = vmatpush1.msra.mxu0 0.0
        %7200 = vmatprep.subr.mxu0 0.0
        %7201 = vmatpush1.msra.mxu0 0.0
        %7202 = vmatprep.subr.mxu0 0.0
        %7203 = vmatpush1.msra.mxu0 0.0
        %7204 = vmatprep.subr.mxu0 0.0
        %7205 = vmatpush1.msra.mxu0 0.0
        %7206 = vmatprep.subr.mxu0 0.0
        %7207 = vmatpush1.msra.mxu0 0.0
        %7208 = vmatprep.subr.mxu0 0.0
        %7209 = vmatpush1.msra.mxu0 0.0
        %7210 = vmatprep.subr.mxu0 0.0
        %7211 = vmatpush1.msra.mxu0 0.0
        %7212 = vmatprep.subr.mxu0 0.0
        %7213 = vmatpush1.msra.mxu0 0.0
        %7214 = vmatprep.subr.mxu0 0.0
        %7215 = vmatpush1.msra.mxu0 0.0
        %7216 = vmatprep.subr.mxu0 0.0
        %7217 = vmatpush1.msra.mxu0 0.0
        %7218 = vmatprep.subr.mxu0 0.0
        %7219 = vmatpush1.msra.mxu0 0.0
        %7220 = vmatprep.subr.mxu0 0.0
        %7221 = vmatpush1.msra.mxu0 0.0
        %7222 = vmatprep.subr.mxu0 0.0
        %7223 = vmatpush1.msra.mxu0 0.0
        %7224 = vmatprep.subr.mxu0 0.0
        %7225 = vmatpush1.msra.mxu0 0.0
        %7226 = vmatprep.mubr.f32.mxu0 0.0
        %7227 = vmatmul.mubr.f32.gmra.mrb[0].mxu0 %v7064
        %v7228 = vpop.f32.mrb[0].mxu0
        %v7229 = vadd.f32 0.0, %v7228
        %v7230 = vpop.f32.mrb[0].mxu0
        %7231 = vmatprep.mubr.f32.mxu0 0.0
        %7232 = vmatmul.mubr.f32.gmra.mrb[0].mxu0 %v7067
        %v7233 = vpop.f32.mrb[0].mxu0
        %v7234 = vadd.f32 0.0, %v7233
        %v7235 = vpop.f32.mrb[0].mxu0
        %7236 = vmatprep.mubr.f32.mxu0 0.0
        %7237 = vmatmul.mubr.f32.gmra.mrb[0].mxu0 %v7070
        %v7238 = vpop.f32.mrb[0].mxu0
        %v7239 = vadd.f32 0.0, %v7238
        %v7240 = vpop.f32.mrb[0].mxu0
        %7241 = vmatprep.mubr.f32.mxu0 0.0
        %7242 = vmatmul.mubr.f32.gmra.mrb[0].mxu0 %v7073
        %v7243 = vpop.f32.mrb[0].mxu0
        %v7244 = vadd.f32 0.0, %v7243
        %v7245 = vpop.f32.mrb[0].mxu0
        %7246 = vmatprep.mubr.f32.mxu0 0.0
        %7247 = vmatmul.mubr.f32.gmra.mrb[0].mxu0 %v7076
        %v7248 = vpop.f32.mrb[0].mxu0
        %v7249 = vadd.f32 0.0, %v7248
        %v7250 = vpop.f32.mrb[0].mxu0
        %7251 = vmatprep.mubr.f32.mxu0 0.0
        %7252 = vmatmul.mubr.f32.gmra.mrb[0].mxu0 %v7079
        %v7253 = vpop.f32.mrb[0].mxu0
        %v7254 = vadd.f32 0.0, %v7253
        %v7255 = vpop.f32.mrb[0].mxu0
        %7256 = vmatprep.mubr.f32.mxu0 0.0
        %7257 = vmatmul.mubr.f32.gmra.mrb[0].mxu0 %v7082
        %v7258 = vpop.f32.mrb[0].mxu0
        %v7259 = vadd.f32 0.0, %v7258
        %v7260 = vpop.f32.mrb[0].mxu0
        %7261 = vmatprep.mubr.f32.mxu0 0.0
        %7262 = vmatmul.mubr.f32.gmra.mrb[0].mxu0 %v7085
        %v7263 = vpop.f32.mrb[0].mxu0
        %v7264 = vadd.f32 0.0, %v7263
        %v7265 = vpop.f32.mrb[0].mxu0
        %7266 = vmatprep.mubr.f32.mxu0 0.0
        %7267 = vmatmul.mubr.f32.gmra.mrb[0].mxu0 %v7088
        %v7268 = vpop.f32.mrb[0].mxu0
        %v7269 = vadd.f32 0.0, %v7268
        %v7270 = vpop.f32.mrb[0].mxu0
        %7271 = vmatprep.mubr.f32.mxu0 0.0
        %7272 = vmatmul.mubr.f32.gmra.mrb[0].mxu0 %v7091
        %v7273 = vpop.f32.mrb[0].mxu0
        %v7274 = vadd.f32 0.0, %v7273
        %v7275 = vpop.f32.mrb[0].mxu0
        %7276 = vmatprep.mubr.f32.mxu0 0.0
        %7277 = vmatmul.mubr.f32.gmra.mrb[0].mxu0 %v7094
        %v7278 = vpop.f32.mrb[0].mxu0
        %v7279 = vadd.f32 0.0, %v7278
        %v7280 = vpop.f32.mrb[0].mxu0
        %7281 = vmatprep.mubr.f32.mxu0 0.0
        %7282 = vmatmul.mubr.f32.gmra.mrb[0].mxu0 %v7097
        %v7283 = vpop.f32.mrb[0].mxu0
        %v7284 = vadd.f32 0.0, %v7283
        %v7285 = vpop.f32.mrb[0].mxu0
        %7286 = vmatprep.mubr.f32.mxu0 0.0
        %7287 = vmatmul.mubr.f32.gmra.mrb[0].mxu0 %v7100
        %v7288 = vpop.f32.mrb[0].mxu0
        %v7289 = vadd.f32 0.0, %v7288
        %v7290 = vpop.f32.mrb[0].mxu0
        %7291 = vmatprep.mubr.f32.mxu0 0.0
        %7292 = vmatmul.mubr.f32.gmra.mrb[0].mxu0 %v7103
        %v7293 = vpop.f32.mrb[0].mxu0
        %v7294 = vadd.f32 0.0, %v7293
        %v7295 = vpop.f32.mrb[0].mxu0
        %7296 = vmatprep.mubr.f32.mxu0 0.0
        %7297 = vmatmul.mubr.f32.gmra.mrb[0].mxu0 %v7106
        %v7298 = vpop.f32.mrb[0].mxu0
        %v7299 = vadd.f32 0.0, %v7298
        %v7300 = vpop.f32.mrb[0].mxu0
        %7301 = vmatprep.mubr.f32.mxu0 0.0
        %7302 = vmatmul.mubr.f32.gmra.mrb[0].mxu0 %v7109
        %v7303 = vpop.f32.mrb[0].mxu0
        %v7304 = vadd.f32 0.0, %v7303
        %v7305 = vpop.f32.mrb[0].mxu0
        %7306 = vmatprep.mubr.f32.mxu0 0.0
        %7307 = vmatmul.mubr.f32.gmra.mrb[0].mxu0 %v7112
        %v7308 = vpop.f32.mrb[0].mxu0
        %v7309 = vadd.f32 0.0, %v7308
        %v7310 = vpop.f32.mrb[0].mxu0
        %7311 = vmatprep.mubr.f32.mxu0 0.0
        %7312 = vmatmul.mubr.f32.gmra.mrb[0].mxu0 %v7115
        %v7313 = vpop.f32.mrb[0].mxu0
        %v7314 = vadd.f32 0.0, %v7313
        %v7315 = vpop.f32.mrb[0].mxu0
        %7316 = vmatprep.mubr.f32.mxu0 0.0
        %7317 = vmatmul.mubr.f32.gmra.mrb[0].mxu0 %v7118
        %v7318 = vpop.f32.mrb[0].mxu0
        %v7319 = vadd.f32 0.0, %v7318
        %v7320 = vpop.f32.mrb[0].mxu0
        %7321 = vmatprep.mubr.f32.mxu0 0.0
        %7322 = vmatmul.mubr.f32.gmra.mrb[0].mxu0 %v7121
        %v7323 = vpop.f32.mrb[0].mxu0
        %v7324 = vadd.f32 0.0, %v7323
        %v7325 = vpop.f32.mrb[0].mxu0
        %7326 = vmatprep.mubr.f32.mxu0 0.0
        %7327 = vmatmul.mubr.f32.gmra.mrb[0].mxu0 %v7124
        %v7328 = vpop.f32.mrb[0].mxu0
        %v7329 = vadd.f32 0.0, %v7328
        %v7330 = vpop.f32.mrb[0].mxu0
        %7331 = vmatprep.mubr.f32.mxu0 0.0
        %7332 = vmatmul.mubr.f32.gmra.mrb[0].mxu0 %v7127
        %v7333 = vpop.f32.mrb[0].mxu0
        %v7334 = vadd.f32 0.0, %v7333
        %v7335 = vpop.f32.mrb[0].mxu0
        %7336 = vmatprep.mubr.f32.mxu0 0.0
        %7337 = vmatmul.mubr.f32.gmra.mrb[0].mxu0 %v7130
        %v7338 = vpop.f32.mrb[0].mxu0
        %v7339 = vadd.f32 0.0, %v7338
        %v7340 = vpop.f32.mrb[0].mxu0
        %7341 = vmatprep.mubr.f32.mxu0 0.0
        %7342 = vmatmul.mubr.f32.gmra.mrb[0].mxu0 %v7133
        %v7343 = vpop.f32.mrb[0].mxu0
        %v7344 = vadd.f32 0.0, %v7343
        %v7345 = vpop.f32.mrb[0].mxu0
        %7346 = vmatprep.mubr.f32.mxu0 0.0
        %7347 = vmatmul.mubr.f32.gmra.mrb[0].mxu0 %v7136
        %v7348 = vpop.f32.mrb[0].mxu0
        %v7349 = vadd.f32 0.0, %v7348
        %v7350 = vpop.f32.mrb[0].mxu0
        %7351 = vmatprep.mubr.f32.mxu0 0.0
        %7352 = vmatmul.mubr.f32.gmra.mrb[0].mxu0 %v7139
        %v7353 = vpop.f32.mrb[0].mxu0
        %v7354 = vadd.f32 0.0, %v7353
        %v7355 = vpop.f32.mrb[0].mxu0
        %7356 = vmatprep.mubr.f32.mxu0 0.0
        %7357 = vmatmul.mubr.f32.gmra.mrb[0].mxu0 %v7142
        %v7358 = vpop.f32.mrb[0].mxu0
        %v7359 = vadd.f32 0.0, %v7358
        %v7360 = vpop.f32.mrb[0].mxu0
        %7361 = vmatprep.mubr.f32.mxu0 0.0
        %7362 = vmatmul.mubr.f32.gmra.mrb[0].mxu0 %v7145
        %v7363 = vpop.f32.mrb[0].mxu0
        %v7364 = vadd.f32 0.0, %v7363
        %v7365 = vpop.f32.mrb[0].mxu0
        %7366 = vmatprep.mubr.f32.mxu0 0.0
        %7367 = vmatmul.mubr.f32.gmra.mrb[0].mxu0 %v7148
        %v7368 = vpop.f32.mrb[0].mxu0
        %v7369 = vadd.f32 0.0, %v7368
        %v7370 = vpop.f32.mrb[0].mxu0
        %7371 = vmatprep.mubr.f32.mxu0 0.0
        %7372 = vmatmul.mubr.f32.gmra.mrb[0].mxu0 %v7151
        %v7373 = vpop.f32.mrb[0].mxu0
        %v7374 = vadd.f32 0.0, %v7373
        %v7375 = vpop.f32.mrb[0].mxu0
        %7376 = vmatprep.mubr.f32.mxu0 0.0
        %7377 = vmatmul.mubr.f32.gmra.mrb[0].mxu0 %v7154
        %v7378 = vpop.f32.mrb[0].mxu0
        %v7379 = vadd.f32 0.0, %v7378
        %v7380 = vpop.f32.mrb[0].mxu0
        %7381 = vmatprep.mubr.f32.mxu0 0.0
        %7382 = vmatmul.mubr.f32.gmra.mrb[0].mxu0 %v7157
        %v7383 = vpop.f32.mrb[0].mxu0
        %v7384 = vadd.f32 0.0, %v7383
        %v7385 = vpop.f32.mrb[0].mxu0
        %7386 = vdwg.mxu0
        %v7387 = vadd.f32 %v7030, %v7229
        %v7388 = vadd.f32 %v7031, %v7234
        %v7389 = vadd.f32 %v7032, %v7239
        %v7390 = vadd.f32 %v7033, %v7244
        %v7391 = vadd.f32 %v7034, %v7249
        %v7392 = vadd.f32 %v7035, %v7254
        %v7393 = vadd.f32 %v7036, %v7259
        %v7394 = vadd.f32 %v7037, %v7264
        %v7395 = vadd.f32 %v7038, %v7269
        %v7396 = vadd.f32 %v7039, %v7274
        %v7397 = vadd.f32 %v7040, %v7279
        %v7398 = vadd.f32 %v7041, %v7284
        %v7399 = vadd.f32 %v7042, %v7289
        %v7400 = vadd.f32 %v7043, %v7294
        %v7401 = vadd.f32 %v7044, %v7299
        %v7402 = vadd.f32 %v7045, %v7304
        %v7403 = vadd.f32 %v7046, %v7309
        %v7404 = vadd.f32 %v7047, %v7314
        %v7405 = vadd.f32 %v7048, %v7319
        %v7406 = vadd.f32 %v7049, %v7324
        %v7407 = vadd.f32 %v7050, %v7329
        %v7408 = vadd.f32 %v7051, %v7334
        %v7409 = vadd.f32 %v7052, %v7339
        %v7410 = vadd.f32 %v7053, %v7344
        %v7411 = vadd.f32 %v7054, %v7349
        %v7412 = vadd.f32 %v7055, %v7354
        %v7413 = vadd.f32 %v7056, %v7359
        %v7414 = vadd.f32 %v7057, %v7364
        %v7415 = vadd.f32 %v7058, %v7369
        %v7416 = vadd.f32 %v7059, %v7374
        %v7417 = vadd.f32 %v7060, %v7379
        %v7418 = vadd.f32 %v7061, %v7384
        %v7419 = vld [vmem:[%s7] sm:$0x1]
        %v7421 = vlaneseq
        %v7422 = vshrl.u32 %v7421, 7
        %v7423 = vsub.s32 0, %v7422
        %v7424 = vrot.slane %v7419, %v7423
        %v7426 = vadd.f32 %v7387, %v7424
        %v7427 = vadd.f32 %v7388, %v7424
        %v7428 = vadd.f32 %v7389, %v7424
        %v7429 = vadd.f32 %v7390, %v7424
        %v7430 = vadd.f32 %v7391, %v7424
        %v7431 = vadd.f32 %v7392, %v7424
        %v7432 = vadd.f32 %v7393, %v7424
        %v7433 = vadd.f32 %v7394, %v7424
        %v7434 = vadd.f32 %v7395, %v7424
        %v7435 = vadd.f32 %v7396, %v7424
        %v7436 = vadd.f32 %v7397, %v7424
        %v7437 = vadd.f32 %v7398, %v7424
        %v7438 = vadd.f32 %v7399, %v7424
        %v7439 = vadd.f32 %v7400, %v7424
        %v7440 = vadd.f32 %v7401, %v7424
        %v7441 = vadd.f32 %v7402, %v7424
        %v7442 = vadd.f32 %v7403, %v7424
        %v7443 = vadd.f32 %v7404, %v7424
        %v7444 = vadd.f32 %v7405, %v7424
        %v7445 = vadd.f32 %v7406, %v7424
        %v7446 = vadd.f32 %v7407, %v7424
        %v7447 = vadd.f32 %v7408, %v7424
        %v7448 = vadd.f32 %v7409, %v7424
        %v7449 = vadd.f32 %v7410, %v7424
        %v7450 = vadd.f32 %v7411, %v7424
        %v7451 = vadd.f32 %v7412, %v7424
        %v7452 = vadd.f32 %v7413, %v7424
        %v7453 = vadd.f32 %v7414, %v7424
        %v7454 = vadd.f32 %v7415, %v7424
        %v7455 = vadd.f32 %v7416, %v7424
        %v7456 = vadd.f32 %v7417, %v7424
        %v7457 = vadd.f32 %v7418, %v7424
        %v7458 = vmax.f32 %v7426, 0.0
        %v7459 = vmax.f32 %v7427, 0.0
        %v7460 = vmax.f32 %v7428, 0.0
        %v7461 = vmax.f32 %v7429, 0.0
        %v7462 = vmax.f32 %v7430, 0.0
        %v7463 = vmax.f32 %v7431, 0.0
        %v7464 = vmax.f32 %v7432, 0.0
        %v7465 = vmax.f32 %v7433, 0.0
        %v7466 = vmax.f32 %v7434, 0.0
        %v7467 = vmax.f32 %v7435, 0.0
        %v7468 = vmax.f32 %v7436, 0.0
        %v7469 = vmax.f32 %v7437, 0.0
        %v7470 = vmax.f32 %v7438, 0.0
        %v7471 = vmax.f32 %v7439, 0.0
        %v7472 = vmax.f32 %v7440, 0.0
        %v7473 = vmax.f32 %v7441, 0.0
        %v7474 = vmax.f32 %v7442, 0.0
        %v7475 = vmax.f32 %v7443, 0.0
        %v7476 = vmax.f32 %v7444, 0.0
        %v7477 = vmax.f32 %v7445, 0.0
        %v7478 = vmax.f32 %v7446, 0.0
        %v7479 = vmax.f32 %v7447, 0.0
        %v7480 = vmax.f32 %v7448, 0.0
        %v7481 = vmax.f32 %v7449, 0.0
        %v7482 = vmax.f32 %v7450, 0.0
        %v7483 = vmax.f32 %v7451, 0.0
        %v7484 = vmax.f32 %v7452, 0.0
        %v7485 = vmax.f32 %v7453, 0.0
        %v7486 = vmax.f32 %v7454, 0.0
        %v7487 = vmax.f32 %v7455, 0.0
        %v7488 = vmax.f32 %v7456, 0.0
        %v7489 = vmax.f32 %v7457, 0.0
        %7490 = vst.msk [vmem:[%s298] sm:$0xff] %vm2456, %v7458
        %7491 = vst.msk [vmem:[%s298 + $0x8] sm:$0xff] %vm2456, %v7459
        %7492 = vst.msk [vmem:[%s298 + $0x10] sm:$0xff] %vm2456, %v7460
        %7493 = vst.msk [vmem:[%s298 + $0x18] sm:$0xff] %vm2456, %v7461
        %7494 = vst.msk [vmem:[%s298 + $0x20] sm:$0xff] %vm2456, %v7462
        %7495 = vst.msk [vmem:[%s298 + $0x28] sm:$0xff] %vm2456, %v7463
        %7496 = vst.msk [vmem:[%s298 + $0x30] sm:$0xff] %vm2456, %v7464
        %7497 = vst.msk [vmem:[%s298 + $0x38] sm:$0xff] %vm2456, %v7465
        %7498 = vst.msk [vmem:[%s298 + $0x40] sm:$0xff] %vm2456, %v7466
        %7499 = vst.msk [vmem:[%s298 + $0x48] sm:$0xff] %vm2456, %v7467
        %7500 = vst.msk [vmem:[%s298 + $0x50] sm:$0xff] %vm2456, %v7468
        %7501 = vst.msk [vmem:[%s298 + $0x58] sm:$0xff] %vm2456, %v7469
        %7502 = vst.msk [vmem:[%s298 + $0x60] sm:$0xff] %vm2456, %v7470
        %7503 = vst.msk [vmem:[%s298 + $0x68] sm:$0xff] %vm2456, %v7471
        %7504 = vst.msk [vmem:[%s298 + $0x70] sm:$0xff] %vm2456, %v7472
        %7505 = vst.msk [vmem:[%s298 + $0x78] sm:$0xff] %vm2456, %v7473
        %7506 = vst.msk [vmem:[%s298 + $0x80] sm:$0xff] %vm2456, %v7474
        %7507 = vst.msk [vmem:[%s298 + $0x88] sm:$0xff] %vm2456, %v7475
        %7508 = vst.msk [vmem:[%s298 + $0x90] sm:$0xff] %vm2456, %v7476
        %7509 = vst.msk [vmem:[%s298 + $0x98] sm:$0xff] %vm2456, %v7477
        %7510 = vst.msk [vmem:[%s298 + $0xa0] sm:$0xff] %vm2456, %v7478
        %7511 = vst.msk [vmem:[%s298 + $0xa8] sm:$0xff] %vm2456, %v7479
        %7512 = vst.msk [vmem:[%s298 + $0xb0] sm:$0xff] %vm2456, %v7480
        %7513 = vst.msk [vmem:[%s298 + $0xb8] sm:$0xff] %vm2456, %v7481
        %7514 = vst.msk [vmem:[%s298 + $0xc0] sm:$0xff] %vm2456, %v7482
        %7515 = vst.msk [vmem:[%s298 + $0xc8] sm:$0xff] %vm2456, %v7483
        %7516 = vst.msk [vmem:[%s298 + $0xd0] sm:$0xff] %vm2456, %v7484
        %7517 = vst.msk [vmem:[%s298 + $0xd8] sm:$0xff] %vm2456, %v7485
        %7518 = vst.msk [vmem:[%s298 + $0xe0] sm:$0xff] %vm2456, %v7486
        %7519 = vst.msk [vmem:[%s298 + $0xe8] sm:$0xff] %vm2456, %v7487
        %7520 = vst.msk [vmem:[%s298 + $0xf0] sm:$0xff] %vm2456, %v7488
        %7521 = vst.msk [vmem:[%s298 + $0xf8] sm:$0xff] %vm2456, %v7489
        %s7522 = sand.u32 %s203, 1
        %s7523 = scalar_lea.sflag [#allocation3], %s7522
        %s7524 = sand.u32 %s203, 1
        %s7525 = smul.addr %s7524, 256
        %s7526 = scalar_lea.vmem [#allocation2], %s7525
        // Predicated region
        $region53: #{tpu_custom_call.1} parent=51 // pred_check
          %p7527 = pneg %p213
        $region54: #{tpu_custom_call.1} parent=51 // pred_check_branch
          %7529 = sbr.rel (%p7527) target = $region56
        $region55: #{tpu_custom_call.1} parent=51 // pred_region
          %s7531 = ssub.s32 4096, 4096
          %7532 = vsyncadd %s7523, %s7531
          %s7533 = smul.addr %s22, 32
          %s7534 = smul.addr %s7533, 128
          %s7535 = scalar_lea.hbm %s8, %s7534
          %s7536 = sshll.u32 %s7526, 4
          %s7537 = int_to_ptr.vmem [resolvable:$true] %s7536
          %7542 = dma.vmem_to_hbm [thread:$0]  %s7537, 4096, %s7535, %s7523, 128, 128, 8
        $region56: #{tpu_custom_call.1} parent=51 // pred_fallthru
          _
      $region52: #{tpu_custom_call.1} parent=5 // pred_fallthru
        _
      %p7543 = scmp.le.s32.totalorder 2, %s17
      // Predicated region
      $region57: #{tpu_custom_call.1} parent=5 // pred_check
        %p7544 = pneg %p7543
      $region58: #{tpu_custom_call.1} parent=5 // pred_check_branch
        %7546 = sbr.rel (%p7544) target = $region60
      $region59: #{tpu_custom_call.1} parent=5 // pred_region
        %s7547 = ssub.s32 %s17, 2
        // Predicated region
        $region61: #{tpu_custom_call.1} parent=59 // pred_check
          %p7548 = pneg %p219
        $region62: #{tpu_custom_call.1} parent=59 // pred_check_branch
          %7550 = sbr.rel (%p7548) target = $region64
        $region63: #{tpu_custom_call.1} parent=59 // pred_region
          %s7551 = sand.u32 %s204, 1
          %s7552 = scalar_lea.sflag [#allocation3], %s7551
          %s7553 = sand.u32 %s204, 1
          %s7554 = smul.addr %s7553, 256
          %s7555 = scalar_lea.vmem [#allocation2], %s7554
          %7556 = dma.done %s7552, 4096
        $region64: #{tpu_custom_call.1} parent=59 // pred_fallthru
          _
      $region60: #{tpu_custom_call.1} parent=5 // pred_fallthru
        _
    $region6: #{tpu_custom_call.1} parent=1 // loop_footer
      %s21 = sadd.s32 1, %s17
    $region7: #{tpu_custom_call.1} parent=1 // loop_footer_branch
      %16 = sbr.rel target = $region3
    $region8: #{tpu_custom_call.1} parent=1 // loop_exit
      _
    %7557 = vsyncpa [#allocation3], 1
    %s7558 = scalar_lea.sflag [#allocation3], 1
    %7559 = vsyncpa %s7558, 1

</llo_original>
